<compile_context>
chip_gen: v7x
topology: tpu7x:2x2x1
jax: 0.10.0
libtpu: 0.0.40
codegen_flags: <defaults>
</compile_context>

<pallas_src>
import functools

import numpy as np
import jax
import jax.numpy as jnp
from jax.experimental import pallas as pl
from jax.experimental.pallas import tpu as pltpu


# ----------------------------------------------------------------------------
# Fixed constants from the PyTorch module
# ----------------------------------------------------------------------------
_FILTER_1 = np.array([[0, 0, 0, 0, 0],
                      [0, -1, 2, -1, 0],
                      [0, 2, 4, 2, 0],
                      [0, -1, 2, -1, 0],
                      [0, 0, 0, 0, 0]], dtype=np.float32)
_FILTER_2 = np.array([[-1, 2, -2, 2, -1],
                      [2, -6, 8, -6, 2],
                      [-2, 8, -12, 8, -2],
                      [2, -6, 8, -6, 2],
                      [-1, 2, -2, 2, -1]], dtype=np.float32)
_FILTER_3 = np.array([[0, 0, 0, 0, 0],
                      [0, 0, 0, 0, 0],
                      [0, 1, -2, 1, 0],
                      [0, 0, 0, 0, 0],
                      [0, 0, 0, 0, 0]], dtype=np.float32)

# db4 analysis filters (pywt convention: Wavelet('db4').dec_lo / dec_hi).
_DB4_DEC_LO = np.array([
    -0.010597401784997278, 0.032883011666982945, 0.030841381835986965,
    -0.18703481171888114, -0.02798376941698385, 0.6308807679295904,
    0.7148465705525415, 0.23037781330885523], dtype=np.float64)
_DB4_DEC_HI = np.array(
    [(-1.0) ** (k + 1) * _DB4_DEC_LO[len(_DB4_DEC_LO) - 1 - k]
     for k in range(len(_DB4_DEC_LO))], dtype=np.float64)


def _nonzero_taps(filt):
    return [(ki, kj, float(filt[ki, kj]))
            for ki in range(filt.shape[0]) for kj in range(filt.shape[1])
            if float(filt[ki, kj]) != 0.0]


def _round_up(v, m):
    return -(-v // m) * m


# ----------------------------------------------------------------------------
# Precomputed linear operators (trace-time numpy, become VMEM-resident consts)
# ----------------------------------------------------------------------------
def _dwt_matrix(n, filt):
    """Single-level 1-D DWT with 'symmetric' (half-sample) extension as an
    (O, n) matrix; O = (n + L - 1) // 2 and out[o] = sum_j f[j] * x_ext[2o+1-j]
    (pywt downsampling-convolution convention)."""
    L = len(filt)
    out_len = (n + L - 1) // 2
    mat = np.zeros((out_len, n), dtype=np.float64)
    period = 2 * n
    for o in range(out_len):
        for j in range(L):
            idx = (2 * o + 1 - j) % period
            src = idx if idx < n else period - 1 - idx
            mat[o, src] += filt[j]
    return mat.astype(np.float32)


def _bilinear_matrix(dst, src):
    """torch.nn.functional.interpolate(mode='bilinear', align_corners=False)
    along a single axis, as a (dst, src) matrix."""
    mat = np.zeros((dst, src), dtype=np.float64)
    if src == 1:
        mat[:, 0] = 1.0
        return mat.astype(np.float32)
    scale = src / dst
    for i in range(dst):
        s = (i + 0.5) * scale - 0.5
        s = max(s, 0.0)
        s0 = int(np.floor(s))
        lam = s - s0
        s0 = min(s0, src - 1)
        s1 = min(s0 + 1, src - 1)
        mat[i, s0] += 1.0 - lam
        mat[i, s1] += lam
    return mat.astype(np.float32)


# ----------------------------------------------------------------------------
# Per-generation VMEM budget
# ----------------------------------------------------------------------------
@functools.lru_cache(maxsize=None)
def _vmem_limit_bytes():
    """Scoped-VMEM limit with headroom: 48 MiB on v7x (64 MiB physical per TC),
    64 MiB on v5e / v6e (128 MiB physical)."""
    try:
        cap = int(pltpu.get_tpu_info().vmem_capacity_bytes)
    except Exception:  # query unavailable (e.g. interpret mode) -> conservative
        cap = 64 * 1024 * 1024
    return max(16 * 1024 * 1024,
               min(cap - 16 * 1024 * 1024, 64 * 1024 * 1024))


# ----------------------------------------------------------------------------
# Fused Pallas kernel: residual conv chain + wavelet branch + add, per tile
# ----------------------------------------------------------------------------
def _make_kernel(tile_p, H, W):
    f1_taps = _nonzero_taps(_FILTER_1)
    f2_taps = _nonzero_taps(_FILTER_2)
    f3_taps = _nonzero_taps(_FILTER_3)

    def kernel(x_ref, lwT_ref, hwT_ref, lhT_ref, hhT_ref, uyT_ref, uxT_ref,
               out_ref, s_ref):
        # x_ref : (T, H, W)       unpadded input planes for this grid step
        # s_ref : (T, H+4, W+4)   persistent VMEM scratch = zero-padded image
        #                         buffer for the three chained 5x5 convs.

        # Zero only the thin 2-wide border frame; the interior is fully
        # overwritten below.  Re-done every step (cheap) instead of
        # pl.when(step==0) because scratch is per-core when the grid axis is
        # split across v7x's two TensorCores.
        zrow = jnp.zeros((tile_p, 2, W + 4), jnp.float32)
        zcol = jnp.zeros((tile_p, H + 4, 2), jnp.float32)
        s_ref[:, 0:2, :] = zrow
        s_ref[:, H + 2:H + 4, :] = zrow
        s_ref[:, :, 0:2] = zcol
        s_ref[:, :, W + 2:W + 4] = zcol

        x = x_ref[...]                                       # (T, H, W)

        def dwconv5(taps):
            acc = None
            for ki, kj, w in taps:
                v = w * s_ref[:, ki:ki + H, kj:kj + W]
                acc = v if acc is None else acc + v
            return acc

        # ---- residual branch: three chained depthwise 5x5 convs, pad=2 ----
        s_ref[:, 2:2 + H, 2:2 + W] = x                       # in-kernel zero pad
        y = dwconv5(f1_taps)
        s_ref[:, 2:2 + H, 2:2 + W] = y
        y = dwconv5(f2_taps)
        s_ref[:, 2:2 + H, 2:2 + W] = y
        residual = dwconv5(f3_taps)                          # (T, H, W)
        # TODO(synk): at large H,W fold the kj lane shifts into pltpu.roll on
        # per-row band loads (5 loads/conv instead of 25) to relieve vld.

        # ---- wavelet branch: db4 DWT -> |LH|+|HL|+|HH| -> bilinear upsample --
        # Every contraction is "last dim of a plane-collapsed tensor x shared
        # 2-D constant" (one large matmul per tile, no per-plane broadcast of
        # the constants); H-direction contractions use minor-dim swapaxes.
        f32 = jnp.float32
        xl = jnp.einsum('phw,wq->phq', x, lwT_ref[...],
                        preferred_element_type=f32)           # (T, H, Ow) low-W
        xh = jnp.einsum('phw,wq->phq', x, hwT_ref[...],
                        preferred_element_type=f32)           # (T, H, Ow) high-W
        xlT = jnp.swapaxes(xl, 1, 2)                          # (T, Ow, H)
        xhT = jnp.swapaxes(xh, 1, 2)                          # (T, Ow, H)
        b_hl = jnp.einsum('pqh,ho->pqo', xlT, hhT_ref[...],
                          preferred_element_type=f32)         # (T, Ow, Oh)
        b_lh = jnp.einsum('pqh,ho->pqo', xhT, lhT_ref[...],
                          preferred_element_type=f32)
        b_hh = jnp.einsum('pqh,ho->pqo', xhT, hhT_ref[...],
                          preferred_element_type=f32)
        freq = jnp.abs(b_hl) + jnp.abs(b_lh) + jnp.abs(b_hh)  # (T, Ow, Oh)
        upy = jnp.einsum('pqo,oy->pqy', freq, uyT_ref[...],
                         preferred_element_type=f32)          # (T, Ow, H)
        up = jnp.swapaxes(upy, 1, 2)                          # (T, H, Ow)
        wave = jnp.einsum('pyq,qx->pyx', up, uxT_ref[...],
                          preferred_element_type=f32)         # (T, H, W)

        # TODO(synk): output last dim (=W) is not lane-dense; a (P, H*W)
        # packed or plane-last (H, W, P) layout would make the stores unmasked
        # vst, but needs an in-kernel minor-dim reshape/transpose of the result
        # which we judged a lowering risk at these shapes.
        # TODO(synk): optionally cast einsum operands to bf16 (f32 accumulate)
        # on v6e/v7x if relaxed tolerance vs the pywt/torch reference is OK.
        out_ref[...] = wave + residual

    return kernel


# ----------------------------------------------------------------------------
# Forward pass (== composite_feature_extractor(in_channels=C).forward)
# ----------------------------------------------------------------------------
@jax.jit
def composite_feature_extractor(x):
    """x: (N, C, H, W) float32  ->  (N, C, H, W) float32."""
    N, C, H, W = x.shape
    L = len(_DB4_DEC_LO)
    Oh = (H + L - 1) // 2
    Ow = (W + L - 1) // 2

    # Small constant operators; constant index_maps keep them VMEM-resident
    # across the whole grid.
    lwT = jnp.asarray(_dwt_matrix(W, _DB4_DEC_LO).T)      # (W, Ow)  low  along W
    hwT = jnp.asarray(_dwt_matrix(W, _DB4_DEC_HI).T)      # (W, Ow)  high along W
    lhT = jnp.asarray(_dwt_matrix(H, _DB4_DEC_LO).T)      # (H, Oh)  low  along H
    hhT = jnp.asarray(_dwt_matrix(H, _DB4_DEC_HI).T)      # (H, Oh)  high along H
    uyT = jnp.asarray(_bilinear_matrix(H, Oh).T)          # (Oh, H)  upsample H
    uxT = jnp.asarray(_bilinear_matrix(W, Ow).T)          # (Ow, W)  upsample W

    # ---- tile_p from (8,128)-tiled VMEM bytes (not raw bytes) ----
    P = N * C
    vmem_limit = _vmem_limit_bytes()

    def tiled_bytes(r, c):                 # one f32 (r, c) plane in VMEM tiling
        return 4 * _round_up(max(r, 1), 8) * _round_up(max(c, 1), 128)

    per_plane = (
        2 * tiled_bytes(H, W)              # input block, double-buffered
        + 2 * tiled_bytes(H, W)            # output block, double-buffered
        + tiled_bytes(H + 4, W + 4)        # padded conv scratch
        + 4 * tiled_bytes(H, Ow)           # xl, xh, upy/up intermediates
        + 2 * tiled_bytes(Ow, H)           # xlT, xhT
        + 4 * tiled_bytes(Ow, Oh)          # b_hl, b_lh, b_hh, freq
        + 3 * tiled_bytes(H, W)            # wave, residual, conv accumulator
    )
    tile_p = max(1, ((vmem_limit * 3) // 4) // per_plane)
    if P >= 2:
        tile_p = min(tile_p, -(-P // 2))   # grid >= 2: both v7x TCs get work
    tile_p = min(tile_p, P)
    num_steps = -(-P // tile_p)
    p_pad = num_steps * tile_p

    planes = x.reshape(P, H, W).astype(jnp.float32)
    if p_pad != P:                         # at most tile_p - 1 dummy planes
        planes = jnp.pad(planes, ((0, p_pad - P), (0, 0), (0, 0)))

    kernel = _make_kernel(tile_p, H, W)

    out = pl.pallas_call(
        kernel,
        out_shape=jax.ShapeDtypeStruct((p_pad, H, W), jnp.float32),
        grid_spec=pltpu.PrefetchScalarGridSpec(
            num_scalar_prefetch=0,
            grid=(num_steps,),
            in_specs=[
                pl.BlockSpec((tile_p, H, W), lambda i: (i, 0, 0)),
                pl.BlockSpec((W, Ow), lambda i: (0, 0)),
                pl.BlockSpec((W, Ow), lambda i: (0, 0)),
                pl.BlockSpec((H, Oh), lambda i: (0, 0)),
                pl.BlockSpec((H, Oh), lambda i: (0, 0)),
                pl.BlockSpec((Oh, H), lambda i: (0, 0)),
                pl.BlockSpec((Ow, W), lambda i: (0, 0)),
            ],
            out_specs=pl.BlockSpec((tile_p, H, W), lambda i: (i, 0, 0)),
            scratch_shapes=[pltpu.VMEM((tile_p, H + 4, W + 4), jnp.float32)],
        ),
        compiler_params=pltpu.CompilerParams(
            dimension_semantics=("parallel",),   # shard planes over v7x's 2 TCs
            vmem_limit_bytes=int(vmem_limit),
        ),
    )(planes, lwT, hwT, lhT, hhT, uyT, uxT)

    return out[:P].reshape(N, C, H, W)


if __name__ == "__main__":
    key = jax.random.PRNGKey(0)
    x = jax.random.normal(key, (2, 4, 16, 16), jnp.float32)   # NCHW, like torch

    out = composite_feature_extractor(x)
    out = jax.block_until_ready(out)

    assert out.shape == (2, 4, 16, 16), out.shape
    assert bool(jnp.all(jnp.isfinite(out)))
    print("KERNEL_OK")
</pallas_src>

<mosaic_0001>
module attributes {stable_mosaic.version = 11 : i64} {
  func.func @kernel(%arg0: i32, %arg1: memref<4x16x16xf32, #tpu.memory_space<vmem>>, %arg2: memref<16x11xf32, #tpu.memory_space<vmem>>, %arg3: memref<16x11xf32, #tpu.memory_space<vmem>>, %arg4: memref<16x11xf32, #tpu.memory_space<vmem>>, %arg5: memref<16x11xf32, #tpu.memory_space<vmem>>, %arg6: memref<11x16xf32, #tpu.memory_space<vmem>>, %arg7: memref<11x16xf32, #tpu.memory_space<vmem>>, %arg8: memref<4x16x16xf32, #tpu.memory_space<vmem>>, %arg9: memref<4x20x20xf32, #tpu.memory_space<vmem>>) attributes {dimension_semantics = [#tpu.dimension_semantics<parallel>], iteration_bounds = array<i64: 2>, scalar_prefetch = 0 : i64, scratch_operands = 1 : i64, tpu.core_type = #tpu.core_type<tc>, window_params = [{transform_indices = @transform_0, window_bounds = array<i64: 4, 16, 16>}, {pipeline_mode = #tpu.pipeline_mode<synchronous>, transform_indices = @transform_1, window_bounds = array<i64: 16, 11>}, {pipeline_mode = #tpu.pipeline_mode<synchronous>, transform_indices = @transform_2, window_bounds = array<i64: 16, 11>}, {pipeline_mode = #tpu.pipeline_mode<synchronous>, transform_indices = @transform_3, window_bounds = array<i64: 16, 11>}, {pipeline_mode = #tpu.pipeline_mode<synchronous>, transform_indices = @transform_4, window_bounds = array<i64: 16, 11>}, {pipeline_mode = #tpu.pipeline_mode<synchronous>, transform_indices = @transform_5, window_bounds = array<i64: 11, 16>}, {pipeline_mode = #tpu.pipeline_mode<synchronous>, transform_indices = @transform_6, window_bounds = array<i64: 11, 16>}, {transform_indices = @transform_7, window_bounds = array<i64: 4, 16, 16>}]} {
    %cst = arith.constant 0.000000e+00 : f32
    %0 = vector.broadcast %cst : f32 to vector<4x2x20xf32>
    %cst_0 = arith.constant 0.000000e+00 : f32
    %1 = vector.broadcast %cst_0 : f32 to vector<4x20x2xf32>
    %c0 = arith.constant 0 : index
    %c0_1 = arith.constant 0 : index
    %c0_2 = arith.constant 0 : index
    %2 = vector.load %arg9[%c0, %c0_1, %c0_2] : memref<4x20x20xf32, #tpu.memory_space<vmem>>, vector<4x2x20xf32>
    tpu.vector_store %arg9[%c0, %c0_1, %c0_2], %0 {strides = array<i32>} : memref<4x20x20xf32, #tpu.memory_space<vmem>>, vector<4x2x20xf32>,
    %c0_3 = arith.constant 0 : index
    %c18 = arith.constant 18 : index
    %c0_4 = arith.constant 0 : index
    %3 = vector.load %arg9[%c0_3, %c18, %c0_4] : memref<4x20x20xf32, #tpu.memory_space<vmem>>, vector<4x2x20xf32>
    tpu.vector_store %arg9[%c0_3, %c18, %c0_4], %0 {strides = array<i32>} : memref<4x20x20xf32, #tpu.memory_space<vmem>>, vector<4x2x20xf32>,
    %c0_5 = arith.constant 0 : index
    %c0_6 = arith.constant 0 : index
    %c0_7 = arith.constant 0 : index
    %4 = vector.load %arg9[%c0_5, %c0_6, %c0_7] : memref<4x20x20xf32, #tpu.memory_space<vmem>>, vector<4x20x2xf32>
    tpu.vector_store %arg9[%c0_5, %c0_6, %c0_7], %1 {strides = array<i32>} : memref<4x20x20xf32, #tpu.memory_space<vmem>>, vector<4x20x2xf32>,
    %c0_8 = arith.constant 0 : index
    %c0_9 = arith.constant 0 : index
    %c18_10 = arith.constant 18 : index
    %5 = vector.load %arg9[%c0_8, %c0_9, %c18_10] : memref<4x20x20xf32, #tpu.memory_space<vmem>>, vector<4x20x2xf32>
    tpu.vector_store %arg9[%c0_8, %c0_9, %c18_10], %1 {strides = array<i32>} : memref<4x20x20xf32, #tpu.memory_space<vmem>>, vector<4x20x2xf32>,
    %c0_11 = arith.constant 0 : index
    %c0_12 = arith.constant 0 : index
    %c0_13 = arith.constant 0 : index
    %6 = vector.load %arg1[%c0_11, %c0_12, %c0_13] : memref<4x16x16xf32, #tpu.memory_space<vmem>>, vector<4x16x16xf32>
    %c0_14 = arith.constant 0 : index
    %c2 = arith.constant 2 : index
    %c2_15 = arith.constant 2 : index
    %7 = vector.load %arg9[%c0_14, %c2, %c2_15] : memref<4x20x20xf32, #tpu.memory_space<vmem>>, vector<4x16x16xf32>
    tpu.vector_store %arg9[%c0_14, %c2, %c2_15], %6 {strides = array<i32>} : memref<4x20x20xf32, #tpu.memory_space<vmem>>, vector<4x16x16xf32>,
    %c0_16 = arith.constant 0 : index
    %c1 = arith.constant 1 : index
    %c1_17 = arith.constant 1 : index
    %8 = vector.load %arg9[%c0_16, %c1, %c1_17] : memref<4x20x20xf32, #tpu.memory_space<vmem>>, vector<4x16x16xf32>
    %cst_18 = arith.constant -1.000000e+00 : f32
    %9 = vector.broadcast %cst_18 : f32 to vector<4x16x16xf32>
    %10 = arith.mulf %9, %8 : vector<4x16x16xf32>
    %c0_19 = arith.constant 0 : index
    %c1_20 = arith.constant 1 : index
    %c2_21 = arith.constant 2 : index
    %11 = vector.load %arg9[%c0_19, %c1_20, %c2_21] : memref<4x20x20xf32, #tpu.memory_space<vmem>>, vector<4x16x16xf32>
    %cst_22 = arith.constant 2.000000e+00 : f32
    %12 = vector.broadcast %cst_22 : f32 to vector<4x16x16xf32>
    %13 = arith.mulf %12, %11 : vector<4x16x16xf32>
    %14 = arith.addf %10, %13 : vector<4x16x16xf32>
    %c0_23 = arith.constant 0 : index
    %c1_24 = arith.constant 1 : index
    %c3 = arith.constant 3 : index
    %15 = vector.load %arg9[%c0_23, %c1_24, %c3] : memref<4x20x20xf32, #tpu.memory_space<vmem>>, vector<4x16x16xf32>
    %cst_25 = arith.constant -1.000000e+00 : f32
    %16 = vector.broadcast %cst_25 : f32 to vector<4x16x16xf32>
    %17 = arith.mulf %16, %15 : vector<4x16x16xf32>
    %18 = arith.addf %14, %17 : vector<4x16x16xf32>
    %c0_26 = arith.constant 0 : index
    %c2_27 = arith.constant 2 : index
    %c1_28 = arith.constant 1 : index
    %19 = vector.load %arg9[%c0_26, %c2_27, %c1_28] : memref<4x20x20xf32, #tpu.memory_space<vmem>>, vector<4x16x16xf32>
    %cst_29 = arith.constant 2.000000e+00 : f32
    %20 = vector.broadcast %cst_29 : f32 to vector<4x16x16xf32>
    %21 = arith.mulf %20, %19 : vector<4x16x16xf32>
    %22 = arith.addf %18, %21 : vector<4x16x16xf32>
    %c0_30 = arith.constant 0 : index
    %c2_31 = arith.constant 2 : index
    %c2_32 = arith.constant 2 : index
    %23 = vector.load %arg9[%c0_30, %c2_31, %c2_32] : memref<4x20x20xf32, #tpu.memory_space<vmem>>, vector<4x16x16xf32>
    %cst_33 = arith.constant 4.000000e+00 : f32
    %24 = vector.broadcast %cst_33 : f32 to vector<4x16x16xf32>
    %25 = arith.mulf %24, %23 : vector<4x16x16xf32>
    %26 = arith.addf %22, %25 : vector<4x16x16xf32>
    %c0_34 = arith.constant 0 : index
    %c2_35 = arith.constant 2 : index
    %c3_36 = arith.constant 3 : index
    %27 = vector.load %arg9[%c0_34, %c2_35, %c3_36] : memref<4x20x20xf32, #tpu.memory_space<vmem>>, vector<4x16x16xf32>
    %cst_37 = arith.constant 2.000000e+00 : f32
    %28 = vector.broadcast %cst_37 : f32 to vector<4x16x16xf32>
    %29 = arith.mulf %28, %27 : vector<4x16x16xf32>
    %30 = arith.addf %26, %29 : vector<4x16x16xf32>
    %c0_38 = arith.constant 0 : index
    %c3_39 = arith.constant 3 : index
    %c1_40 = arith.constant 1 : index
    %31 = vector.load %arg9[%c0_38, %c3_39, %c1_40] : memref<4x20x20xf32, #tpu.memory_space<vmem>>, vector<4x16x16xf32>
    %cst_41 = arith.constant -1.000000e+00 : f32
    %32 = vector.broadcast %cst_41 : f32 to vector<4x16x16xf32>
    %33 = arith.mulf %32, %31 : vector<4x16x16xf32>
    %34 = arith.addf %30, %33 : vector<4x16x16xf32>
    %c0_42 = arith.constant 0 : index
    %c3_43 = arith.constant 3 : index
    %c2_44 = arith.constant 2 : index
    %35 = vector.load %arg9[%c0_42, %c3_43, %c2_44] : memref<4x20x20xf32, #tpu.memory_space<vmem>>, vector<4x16x16xf32>
    %cst_45 = arith.constant 2.000000e+00 : f32
    %36 = vector.broadcast %cst_45 : f32 to vector<4x16x16xf32>
    %37 = arith.mulf %36, %35 : vector<4x16x16xf32>
    %38 = arith.addf %34, %37 : vector<4x16x16xf32>
    %c0_46 = arith.constant 0 : index
    %c3_47 = arith.constant 3 : index
    %c3_48 = arith.constant 3 : index
    %39 = vector.load %arg9[%c0_46, %c3_47, %c3_48] : memref<4x20x20xf32, #tpu.memory_space<vmem>>, vector<4x16x16xf32>
    %cst_49 = arith.constant -1.000000e+00 : f32
    %40 = vector.broadcast %cst_49 : f32 to vector<4x16x16xf32>
    %41 = arith.mulf %40, %39 : vector<4x16x16xf32>
    %42 = arith.addf %38, %41 : vector<4x16x16xf32>
    %c0_50 = arith.constant 0 : index
    %c2_51 = arith.constant 2 : index
    %c2_52 = arith.constant 2 : index
    %43 = vector.load %arg9[%c0_50, %c2_51, %c2_52] : memref<4x20x20xf32, #tpu.memory_space<vmem>>, vector<4x16x16xf32>
    tpu.vector_store %arg9[%c0_50, %c2_51, %c2_52], %42 {strides = array<i32>} : memref<4x20x20xf32, #tpu.memory_space<vmem>>, vector<4x16x16xf32>,
    %c0_53 = arith.constant 0 : index
    %c0_54 = arith.constant 0 : index
    %c0_55 = arith.constant 0 : index
    %44 = vector.load %arg9[%c0_53, %c0_54, %c0_55] : memref<4x20x20xf32, #tpu.memory_space<vmem>>, vector<4x16x16xf32>
    %cst_56 = arith.constant -1.000000e+00 : f32
    %45 = vector.broadcast %cst_56 : f32 to vector<4x16x16xf32>
    %46 = arith.mulf %45, %44 : vector<4x16x16xf32>
    %c0_57 = arith.constant 0 : index
    %c0_58 = arith.constant 0 : index
    %c1_59 = arith.constant 1 : index
    %47 = vector.load %arg9[%c0_57, %c0_58, %c1_59] : memref<4x20x20xf32, #tpu.memory_space<vmem>>, vector<4x16x16xf32>
    %cst_60 = arith.constant 2.000000e+00 : f32
    %48 = vector.broadcast %cst_60 : f32 to vector<4x16x16xf32>
    %49 = arith.mulf %48, %47 : vector<4x16x16xf32>
    %50 = arith.addf %46, %49 : vector<4x16x16xf32>
    %c0_61 = arith.constant 0 : index
    %c0_62 = arith.constant 0 : index
    %c2_63 = arith.constant 2 : index
    %51 = vector.load %arg9[%c0_61, %c0_62, %c2_63] : memref<4x20x20xf32, #tpu.memory_space<vmem>>, vector<4x16x16xf32>
    %cst_64 = arith.constant -2.000000e+00 : f32
    %52 = vector.broadcast %cst_64 : f32 to vector<4x16x16xf32>
    %53 = arith.mulf %52, %51 : vector<4x16x16xf32>
    %54 = arith.addf %50, %53 : vector<4x16x16xf32>
    %c0_65 = arith.constant 0 : index
    %c0_66 = arith.constant 0 : index
    %c3_67 = arith.constant 3 : index
    %55 = vector.load %arg9[%c0_65, %c0_66, %c3_67] : memref<4x20x20xf32, #tpu.memory_space<vmem>>, vector<4x16x16xf32>
    %cst_68 = arith.constant 2.000000e+00 : f32
    %56 = vector.broadcast %cst_68 : f32 to vector<4x16x16xf32>
    %57 = arith.mulf %56, %55 : vector<4x16x16xf32>
    %58 = arith.addf %54, %57 : vector<4x16x16xf32>
    %c0_69 = arith.constant 0 : index
    %c0_70 = arith.constant 0 : index
    %c4 = arith.constant 4 : index
    %59 = vector.load %arg9[%c0_69, %c0_70, %c4] : memref<4x20x20xf32, #tpu.memory_space<vmem>>, vector<4x16x16xf32>
    %cst_71 = arith.constant -1.000000e+00 : f32
    %60 = vector.broadcast %cst_71 : f32 to vector<4x16x16xf32>
    %61 = arith.mulf %60, %59 : vector<4x16x16xf32>
    %62 = arith.addf %58, %61 : vector<4x16x16xf32>
    %c0_72 = arith.constant 0 : index
    %c1_73 = arith.constant 1 : index
    %c0_74 = arith.constant 0 : index
    %63 = vector.load %arg9[%c0_72, %c1_73, %c0_74] : memref<4x20x20xf32, #tpu.memory_space<vmem>>, vector<4x16x16xf32>
    %cst_75 = arith.constant 2.000000e+00 : f32
    %64 = vector.broadcast %cst_75 : f32 to vector<4x16x16xf32>
    %65 = arith.mulf %64, %63 : vector<4x16x16xf32>
    %66 = arith.addf %62, %65 : vector<4x16x16xf32>
    %c0_76 = arith.constant 0 : index
    %c1_77 = arith.constant 1 : index
    %c1_78 = arith.constant 1 : index
    %67 = vector.load %arg9[%c0_76, %c1_77, %c1_78] : memref<4x20x20xf32, #tpu.memory_space<vmem>>, vector<4x16x16xf32>
    %cst_79 = arith.constant -6.000000e+00 : f32
    %68 = vector.broadcast %cst_79 : f32 to vector<4x16x16xf32>
    %69 = arith.mulf %68, %67 : vector<4x16x16xf32>
    %70 = arith.addf %66, %69 : vector<4x16x16xf32>
    %c0_80 = arith.constant 0 : index
    %c1_81 = arith.constant 1 : index
    %c2_82 = arith.constant 2 : index
    %71 = vector.load %arg9[%c0_80, %c1_81, %c2_82] : memref<4x20x20xf32, #tpu.memory_space<vmem>>, vector<4x16x16xf32>
    %cst_83 = arith.constant 8.000000e+00 : f32
    %72 = vector.broadcast %cst_83 : f32 to vector<4x16x16xf32>
    %73 = arith.mulf %72, %71 : vector<4x16x16xf32>
    %74 = arith.addf %70, %73 : vector<4x16x16xf32>
    %c0_84 = arith.constant 0 : index
    %c1_85 = arith.constant 1 : index
    %c3_86 = arith.constant 3 : index
    %75 = vector.load %arg9[%c0_84, %c1_85, %c3_86] : memref<4x20x20xf32, #tpu.memory_space<vmem>>, vector<4x16x16xf32>
    %cst_87 = arith.constant -6.000000e+00 : f32
    %76 = vector.broadcast %cst_87 : f32 to vector<4x16x16xf32>
    %77 = arith.mulf %76, %75 : vector<4x16x16xf32>
    %78 = arith.addf %74, %77 : vector<4x16x16xf32>
    %c0_88 = arith.constant 0 : index
    %c1_89 = arith.constant 1 : index
    %c4_90 = arith.constant 4 : index
    %79 = vector.load %arg9[%c0_88, %c1_89, %c4_90] : memref<4x20x20xf32, #tpu.memory_space<vmem>>, vector<4x16x16xf32>
    %cst_91 = arith.constant 2.000000e+00 : f32
    %80 = vector.broadcast %cst_91 : f32 to vector<4x16x16xf32>
    %81 = arith.mulf %80, %79 : vector<4x16x16xf32>
    %82 = arith.addf %78, %81 : vector<4x16x16xf32>
    %c0_92 = arith.constant 0 : index
    %c2_93 = arith.constant 2 : index
    %c0_94 = arith.constant 0 : index
    %83 = vector.load %arg9[%c0_92, %c2_93, %c0_94] : memref<4x20x20xf32, #tpu.memory_space<vmem>>, vector<4x16x16xf32>
    %cst_95 = arith.constant -2.000000e+00 : f32
    %84 = vector.broadcast %cst_95 : f32 to vector<4x16x16xf32>
    %85 = arith.mulf %84, %83 : vector<4x16x16xf32>
    %86 = arith.addf %82, %85 : vector<4x16x16xf32>
    %c0_96 = arith.constant 0 : index
    %c2_97 = arith.constant 2 : index
    %c1_98 = arith.constant 1 : index
    %87 = vector.load %arg9[%c0_96, %c2_97, %c1_98] : memref<4x20x20xf32, #tpu.memory_space<vmem>>, vector<4x16x16xf32>
    %cst_99 = arith.constant 8.000000e+00 : f32
    %88 = vector.broadcast %cst_99 : f32 to vector<4x16x16xf32>
    %89 = arith.mulf %88, %87 : vector<4x16x16xf32>
    %90 = arith.addf %86, %89 : vector<4x16x16xf32>
    %c0_100 = arith.constant 0 : index
    %c2_101 = arith.constant 2 : index
    %c2_102 = arith.constant 2 : index
    %91 = vector.load %arg9[%c0_100, %c2_101, %c2_102] : memref<4x20x20xf32, #tpu.memory_space<vmem>>, vector<4x16x16xf32>
    %cst_103 = arith.constant -1.200000e+01 : f32
    %92 = vector.broadcast %cst_103 : f32 to vector<4x16x16xf32>
    %93 = arith.mulf %92, %91 : vector<4x16x16xf32>
    %94 = arith.addf %90, %93 : vector<4x16x16xf32>
    %c0_104 = arith.constant 0 : index
    %c2_105 = arith.constant 2 : index
    %c3_106 = arith.constant 3 : index
    %95 = vector.load %arg9[%c0_104, %c2_105, %c3_106] : memref<4x20x20xf32, #tpu.memory_space<vmem>>, vector<4x16x16xf32>
    %cst_107 = arith.constant 8.000000e+00 : f32
    %96 = vector.broadcast %cst_107 : f32 to vector<4x16x16xf32>
    %97 = arith.mulf %96, %95 : vector<4x16x16xf32>
    %98 = arith.addf %94, %97 : vector<4x16x16xf32>
    %c0_108 = arith.constant 0 : index
    %c2_109 = arith.constant 2 : index
    %c4_110 = arith.constant 4 : index
    %99 = vector.load %arg9[%c0_108, %c2_109, %c4_110] : memref<4x20x20xf32, #tpu.memory_space<vmem>>, vector<4x16x16xf32>
    %cst_111 = arith.constant -2.000000e+00 : f32
    %100 = vector.broadcast %cst_111 : f32 to vector<4x16x16xf32>
    %101 = arith.mulf %100, %99 : vector<4x16x16xf32>
    %102 = arith.addf %98, %101 : vector<4x16x16xf32>
    %c0_112 = arith.constant 0 : index
    %c3_113 = arith.constant 3 : index
    %c0_114 = arith.constant 0 : index
    %103 = vector.load %arg9[%c0_112, %c3_113, %c0_114] : memref<4x20x20xf32, #tpu.memory_space<vmem>>, vector<4x16x16xf32>
    %cst_115 = arith.constant 2.000000e+00 : f32
    %104 = vector.broadcast %cst_115 : f32 to vector<4x16x16xf32>
    %105 = arith.mulf %104, %103 : vector<4x16x16xf32>
    %106 = arith.addf %102, %105 : vector<4x16x16xf32>
    %c0_116 = arith.constant 0 : index
    %c3_117 = arith.constant 3 : index
    %c1_118 = arith.constant 1 : index
    %107 = vector.load %arg9[%c0_116, %c3_117, %c1_118] : memref<4x20x20xf32, #tpu.memory_space<vmem>>, vector<4x16x16xf32>
    %cst_119 = arith.constant -6.000000e+00 : f32
    %108 = vector.broadcast %cst_119 : f32 to vector<4x16x16xf32>
    %109 = arith.mulf %108, %107 : vector<4x16x16xf32>
    %110 = arith.addf %106, %109 : vector<4x16x16xf32>
    %c0_120 = arith.constant 0 : index
    %c3_121 = arith.constant 3 : index
    %c2_122 = arith.constant 2 : index
    %111 = vector.load %arg9[%c0_120, %c3_121, %c2_122] : memref<4x20x20xf32, #tpu.memory_space<vmem>>, vector<4x16x16xf32>
    %cst_123 = arith.constant 8.000000e+00 : f32
    %112 = vector.broadcast %cst_123 : f32 to vector<4x16x16xf32>
    %113 = arith.mulf %112, %111 : vector<4x16x16xf32>
    %114 = arith.addf %110, %113 : vector<4x16x16xf32>
    %c0_124 = arith.constant 0 : index
    %c3_125 = arith.constant 3 : index
    %c3_126 = arith.constant 3 : index
    %115 = vector.load %arg9[%c0_124, %c3_125, %c3_126] : memref<4x20x20xf32, #tpu.memory_space<vmem>>, vector<4x16x16xf32>
    %cst_127 = arith.constant -6.000000e+00 : f32
    %116 = vector.broadcast %cst_127 : f32 to vector<4x16x16xf32>
    %117 = arith.mulf %116, %115 : vector<4x16x16xf32>
    %118 = arith.addf %114, %117 : vector<4x16x16xf32>
    %c0_128 = arith.constant 0 : index
    %c3_129 = arith.constant 3 : index
    %c4_130 = arith.constant 4 : index
    %119 = vector.load %arg9[%c0_128, %c3_129, %c4_130] : memref<4x20x20xf32, #tpu.memory_space<vmem>>, vector<4x16x16xf32>
    %cst_131 = arith.constant 2.000000e+00 : f32
    %120 = vector.broadcast %cst_131 : f32 to vector<4x16x16xf32>
    %121 = arith.mulf %120, %119 : vector<4x16x16xf32>
    %122 = arith.addf %118, %121 : vector<4x16x16xf32>
    %c0_132 = arith.constant 0 : index
    %c4_133 = arith.constant 4 : index
    %c0_134 = arith.constant 0 : index
    %123 = vector.load %arg9[%c0_132, %c4_133, %c0_134] : memref<4x20x20xf32, #tpu.memory_space<vmem>>, vector<4x16x16xf32>
    %cst_135 = arith.constant -1.000000e+00 : f32
    %124 = vector.broadcast %cst_135 : f32 to vector<4x16x16xf32>
    %125 = arith.mulf %124, %123 : vector<4x16x16xf32>
    %126 = arith.addf %122, %125 : vector<4x16x16xf32>
    %c0_136 = arith.constant 0 : index
    %c4_137 = arith.constant 4 : index
    %c1_138 = arith.constant 1 : index
    %127 = vector.load %arg9[%c0_136, %c4_137, %c1_138] : memref<4x20x20xf32, #tpu.memory_space<vmem>>, vector<4x16x16xf32>
    %cst_139 = arith.constant 2.000000e+00 : f32
    %128 = vector.broadcast %cst_139 : f32 to vector<4x16x16xf32>
    %129 = arith.mulf %128, %127 : vector<4x16x16xf32>
    %130 = arith.addf %126, %129 : vector<4x16x16xf32>
    %c0_140 = arith.constant 0 : index
    %c4_141 = arith.constant 4 : index
    %c2_142 = arith.constant 2 : index
    %131 = vector.load %arg9[%c0_140, %c4_141, %c2_142] : memref<4x20x20xf32, #tpu.memory_space<vmem>>, vector<4x16x16xf32>
    %cst_143 = arith.constant -2.000000e+00 : f32
    %132 = vector.broadcast %cst_143 : f32 to vector<4x16x16xf32>
    %133 = arith.mulf %132, %131 : vector<4x16x16xf32>
    %134 = arith.addf %130, %133 : vector<4x16x16xf32>
    %c0_144 = arith.constant 0 : index
    %c4_145 = arith.constant 4 : index
    %c3_146 = arith.constant 3 : index
    %135 = vector.load %arg9[%c0_144, %c4_145, %c3_146] : memref<4x20x20xf32, #tpu.memory_space<vmem>>, vector<4x16x16xf32>
    %cst_147 = arith.constant 2.000000e+00 : f32
    %136 = vector.broadcast %cst_147 : f32 to vector<4x16x16xf32>
    %137 = arith.mulf %136, %135 : vector<4x16x16xf32>
    %138 = arith.addf %134, %137 : vector<4x16x16xf32>
    %c0_148 = arith.constant 0 : index
    %c4_149 = arith.constant 4 : index
    %c4_150 = arith.constant 4 : index
    %139 = vector.load %arg9[%c0_148, %c4_149, %c4_150] : memref<4x20x20xf32, #tpu.memory_space<vmem>>, vector<4x16x16xf32>
    %cst_151 = arith.constant -1.000000e+00 : f32
    %140 = vector.broadcast %cst_151 : f32 to vector<4x16x16xf32>
    %141 = arith.mulf %140, %139 : vector<4x16x16xf32>
    %142 = arith.addf %138, %141 : vector<4x16x16xf32>
    %c0_152 = arith.constant 0 : index
    %c2_153 = arith.constant 2 : index
    %c2_154 = arith.constant 2 : index
    %143 = vector.load %arg9[%c0_152, %c2_153, %c2_154] : memref<4x20x20xf32, #tpu.memory_space<vmem>>, vector<4x16x16xf32>
    tpu.vector_store %arg9[%c0_152, %c2_153, %c2_154], %142 {strides = array<i32>} : memref<4x20x20xf32, #tpu.memory_space<vmem>>, vector<4x16x16xf32>,
    %c0_155 = arith.constant 0 : index
    %c2_156 = arith.constant 2 : index
    %c1_157 = arith.constant 1 : index
    %144 = vector.load %arg9[%c0_155, %c2_156, %c1_157] : memref<4x20x20xf32, #tpu.memory_space<vmem>>, vector<4x16x16xf32>
    %cst_158 = arith.constant 1.000000e+00 : f32
    %145 = vector.broadcast %cst_158 : f32 to vector<4x16x16xf32>
    %146 = arith.mulf %145, %144 : vector<4x16x16xf32>
    %c0_159 = arith.constant 0 : index
    %c2_160 = arith.constant 2 : index
    %c2_161 = arith.constant 2 : index
    %147 = vector.load %arg9[%c0_159, %c2_160, %c2_161] : memref<4x20x20xf32, #tpu.memory_space<vmem>>, vector<4x16x16xf32>
    %cst_162 = arith.constant -2.000000e+00 : f32
    %148 = vector.broadcast %cst_162 : f32 to vector<4x16x16xf32>
    %149 = arith.mulf %148, %147 : vector<4x16x16xf32>
    %150 = arith.addf %146, %149 : vector<4x16x16xf32>
    %c0_163 = arith.constant 0 : index
    %c2_164 = arith.constant 2 : index
    %c3_165 = arith.constant 3 : index
    %151 = vector.load %arg9[%c0_163, %c2_164, %c3_165] : memref<4x20x20xf32, #tpu.memory_space<vmem>>, vector<4x16x16xf32>
    %cst_166 = arith.constant 1.000000e+00 : f32
    %152 = vector.broadcast %cst_166 : f32 to vector<4x16x16xf32>
    %153 = arith.mulf %152, %151 : vector<4x16x16xf32>
    %154 = arith.addf %150, %153 : vector<4x16x16xf32>
    %c0_167 = arith.constant 0 : index
    %c0_168 = arith.constant 0 : index
    %155 = vector.load %arg2[%c0_167, %c0_168] : memref<16x11xf32, #tpu.memory_space<vmem>>, vector<16x11xf32>
    "tpu.trace_start"() <{level = 10 : i32, message = "phw,wq->phq"}> : () -> ()
    %cst_169 = arith.constant dense<0.000000e+00> : vector<4x16x11xf32>
    %156 = tpu.matmul %6, %155, %cst_169 {dimension_numbers = #tpu.dot_dimension_numbers<[2], [0], [0, 1], [1], [0, 0, 0, 1, 1, 1], [], []>} : vector<4x16x16xf32>, vector<16x11xf32>, vector<4x16x11xf32> -> vector<4x16x11xf32>
    "tpu.trace_stop"() : () -> ()
    %c0_170 = arith.constant 0 : index
    %c0_171 = arith.constant 0 : index
    %157 = vector.load %arg3[%c0_170, %c0_171] : memref<16x11xf32, #tpu.memory_space<vmem>>, vector<16x11xf32>
    "tpu.trace_start"() <{level = 10 : i32, message = "phw,wq->phq"}> : () -> ()
    %cst_172 = arith.constant dense<0.000000e+00> : vector<4x16x11xf32>
    %158 = tpu.matmul %6, %157, %cst_172 {dimension_numbers = #tpu.dot_dimension_numbers<[2], [0], [0, 1], [1], [0, 0, 0, 1, 1, 1], [], []>} : vector<4x16x16xf32>, vector<16x11xf32>, vector<4x16x11xf32> -> vector<4x16x11xf32>
    "tpu.trace_stop"() : () -> ()
    %159 = tpu.transpose %156, [0, 2, 1] : vector<4x16x11xf32> -> vector<4x11x16xf32>
    %160 = tpu.transpose %158, [0, 2, 1] : vector<4x16x11xf32> -> vector<4x11x16xf32>
    %c0_173 = arith.constant 0 : index
    %c0_174 = arith.constant 0 : index
    %161 = vector.load %arg5[%c0_173, %c0_174] : memref<16x11xf32, #tpu.memory_space<vmem>>, vector<16x11xf32>
    "tpu.trace_start"() <{level = 10 : i32, message = "pqh,ho->pqo"}> : () -> ()
    %cst_175 = arith.constant dense<0.000000e+00> : vector<4x11x11xf32>
    %162 = tpu.matmul %159, %161, %cst_175 {dimension_numbers = #tpu.dot_dimension_numbers<[2], [0], [0, 1], [1], [0, 0, 0, 1, 1, 1], [], []>} : vector<4x11x16xf32>, vector<16x11xf32>, vector<4x11x11xf32> -> vector<4x11x11xf32>
    "tpu.trace_stop"() : () -> ()
    %c0_176 = arith.constant 0 : index
    %c0_177 = arith.constant 0 : index
    %163 = vector.load %arg4[%c0_176, %c0_177] : memref<16x11xf32, #tpu.memory_space<vmem>>, vector<16x11xf32>
    "tpu.trace_start"() <{level = 10 : i32, message = "pqh,ho->pqo"}> : () -> ()
    %cst_178 = arith.constant dense<0.000000e+00> : vector<4x11x11xf32>
    %164 = tpu.matmul %160, %163, %cst_178 {dimension_numbers = #tpu.dot_dimension_numbers<[2], [0], [0, 1], [1], [0, 0, 0, 1, 1, 1], [], []>} : vector<4x11x16xf32>, vector<16x11xf32>, vector<4x11x11xf32> -> vector<4x11x11xf32>
    "tpu.trace_stop"() : () -> ()
    %c0_179 = arith.constant 0 : index
    %c0_180 = arith.constant 0 : index
    %165 = vector.load %arg5[%c0_179, %c0_180] : memref<16x11xf32, #tpu.memory_space<vmem>>, vector<16x11xf32>
    "tpu.trace_start"() <{level = 10 : i32, message = "pqh,ho->pqo"}> : () -> ()
    %cst_181 = arith.constant dense<0.000000e+00> : vector<4x11x11xf32>
    %166 = tpu.matmul %160, %165, %cst_181 {dimension_numbers = #tpu.dot_dimension_numbers<[2], [0], [0, 1], [1], [0, 0, 0, 1, 1, 1], [], []>} : vector<4x11x16xf32>, vector<16x11xf32>, vector<4x11x11xf32> -> vector<4x11x11xf32>
    "tpu.trace_stop"() : () -> ()
    %167 = math.absf %162 : vector<4x11x11xf32>
    %168 = math.absf %164 : vector<4x11x11xf32>
    %169 = arith.addf %167, %168 : vector<4x11x11xf32>
    %170 = math.absf %166 : vector<4x11x11xf32>
    %171 = arith.addf %169, %170 : vector<4x11x11xf32>
    %c0_182 = arith.constant 0 : index
    %c0_183 = arith.constant 0 : index
    %172 = vector.load %arg6[%c0_182, %c0_183] : memref<11x16xf32, #tpu.memory_space<vmem>>, vector<11x16xf32>
    "tpu.trace_start"() <{level = 10 : i32, message = "pqo,oy->pqy"}> : () -> ()
    %cst_184 = arith.constant dense<0.000000e+00> : vector<4x11x16xf32>
    %173 = tpu.matmul %171, %172, %cst_184 {dimension_numbers = #tpu.dot_dimension_numbers<[2], [0], [0, 1], [1], [0, 0, 0, 1, 1, 1], [], []>} : vector<4x11x11xf32>, vector<11x16xf32>, vector<4x11x16xf32> -> vector<4x11x16xf32>
    "tpu.trace_stop"() : () -> ()
    %174 = tpu.transpose %173, [0, 2, 1] : vector<4x11x16xf32> -> vector<4x16x11xf32>
    %c0_185 = arith.constant 0 : index
    %c0_186 = arith.constant 0 : index
    %175 = vector.load %arg7[%c0_185, %c0_186] : memref<11x16xf32, #tpu.memory_space<vmem>>, vector<11x16xf32>
    "tpu.trace_start"() <{level = 10 : i32, message = "pyq,qx->pyx"}> : () -> ()
    %cst_187 = arith.constant dense<0.000000e+00> : vector<4x16x16xf32>
    %176 = tpu.matmul %174, %175, %cst_187 {dimension_numbers = #tpu.dot_dimension_numbers<[2], [0], [0, 1], [1], [0, 0, 0, 1, 1, 1], [], []>} : vector<4x16x11xf32>, vector<11x16xf32>, vector<4x16x16xf32> -> vector<4x16x16xf32>
    "tpu.trace_stop"() : () -> ()
    %177 = arith.addf %176, %154 : vector<4x16x16xf32>
    %c0_188 = arith.constant 0 : index
    %c0_189 = arith.constant 0 : index
    %c0_190 = arith.constant 0 : index
    %178 = vector.load %arg8[%c0_188, %c0_189, %c0_190] : memref<4x16x16xf32, #tpu.memory_space<vmem>>, vector<4x16x16xf32>
    tpu.vector_store %arg8[%c0_188, %c0_189, %c0_190], %177 {strides = array<i32>} : memref<4x16x16xf32, #tpu.memory_space<vmem>>, vector<4x16x16xf32>,
    return
  }
  func.func @transform_0(%arg0: i32) -> (i32, i32, i32) {
    %c0_i32 = arith.constant 0 : i32
    %c0_i32_0 = arith.constant 0 : i32
    %c0_i32_1 = arith.constant 0 : i32
    return %arg0, %c0_i32, %c0_i32_0 : i32, i32, i32
  }
  func.func @transform_1(%arg0: i32) -> (i32, i32) {
    %c0_i32 = arith.constant 0 : i32
    %c0_i32_0 = arith.constant 0 : i32
    %c0_i32_1 = arith.constant 0 : i32
    return %c0_i32, %c0_i32_0 : i32, i32
  }
  func.func @transform_2(%arg0: i32) -> (i32, i32) {
    %c0_i32 = arith.constant 0 : i32
    %c0_i32_0 = arith.constant 0 : i32
    %c0_i32_1 = arith.constant 0 : i32
    return %c0_i32, %c0_i32_0 : i32, i32
  }
  func.func @transform_3(%arg0: i32) -> (i32, i32) {
    %c0_i32 = arith.constant 0 : i32
    %c0_i32_0 = arith.constant 0 : i32
    %c0_i32_1 = arith.constant 0 : i32
    return %c0_i32, %c0_i32_0 : i32, i32
  }
  func.func @transform_4(%arg0: i32) -> (i32, i32) {
    %c0_i32 = arith.constant 0 : i32
    %c0_i32_0 = arith.constant 0 : i32
    %c0_i32_1 = arith.constant 0 : i32
    return %c0_i32, %c0_i32_0 : i32, i32
  }
  func.func @transform_5(%arg0: i32) -> (i32, i32) {
    %c0_i32 = arith.constant 0 : i32
    %c0_i32_0 = arith.constant 0 : i32
    %c0_i32_1 = arith.constant 0 : i32
    return %c0_i32, %c0_i32_0 : i32, i32
  }
  func.func @transform_6(%arg0: i32) -> (i32, i32) {
    %c0_i32 = arith.constant 0 : i32
    %c0_i32_0 = arith.constant 0 : i32
    %c0_i32_1 = arith.constant 0 : i32
    return %c0_i32, %c0_i32_0 : i32, i32
  }
  func.func @transform_7(%arg0: i32) -> (i32, i32, i32) {
    %c0_i32 = arith.constant 0 : i32
    %c0_i32_0 = arith.constant 0 : i32
    %c0_i32_1 = arith.constant 0 : i32
    return %arg0, %c0_i32, %c0_i32_0 : i32, i32, i32
  }
}

</mosaic_0001>

<llo_original>
// kernel: composite_feature_extractor.1
$region0: #{composite_feature_extractor.1}
  #allocation0 [shape = 'u32[]', space=smem, size = 0x4, offset = 0x4, fixed_abs, tag = 'smem constant byte address 0x4 - core index']
  #allocation1 [shape = 'u32[144,128]{1,0:T(1,128)}', space=vmem, size = 0x12000, scoped, tag = 'internal scratch']
  #allocation2 [shape = 'f32[4,20,20]{2,1,0:T(8,128)}', space=vmem, size = 0xc000, scoped, tag = 'scratch operand']
  %s0 = inlined_call_operand.hbm [shape: f32[8,16,16], index: 0, kind: input, shape index: {}]
  %s1 = inlined_call_operand.hbm [shape: f32[16,11], index: 1, kind: input, shape index: {}, may-alias: {1,3}]
  %s2 = inlined_call_operand.hbm [shape: f32[16,11], index: 2, kind: input, shape index: {}, may-alias: {2,4}]
  %s3 = inlined_call_operand.hbm [shape: f32[16,11], index: 3, kind: input, shape index: {}, may-alias: {1,3}]
  %s4 = inlined_call_operand.hbm [shape: f32[16,11], index: 4, kind: input, shape index: {}, may-alias: {2,4}]
  %s5 = inlined_call_operand.hbm [shape: f32[11,16], index: 5, kind: input, shape index: {}, may-alias: {5,6}]
  %s6 = inlined_call_operand.hbm [shape: f32[11,16], index: 6, kind: input, shape index: {}, may-alias: {5,6}]
  %s7 = inlined_call_operand.hbm [shape: f32[8,16,16], index: 7, kind: output, shape index: {}]
  %s8 = sld [smem:[#allocation0]]
  $region89: #{composite_feature_extractor.1} parent=0
    _
  %s10 = ssub.s32 1, %s8
  %s11 = scalar_select 0, %s10, %s8
  $region1: #{composite_feature_extractor.1} parent=0
    #allocation3 [shape = 'u8[65536]{0}', space=vmem, size = 0x10000, scoped, tag = 'input window, operand 0']
    #allocation4 [shape = 's32[2]{0}', space=sflag, size = 0x8, scoped, tag = 'scoped memory for composite_feature_extractor.1']
    #allocation5 [shape = 's32[2]{0}', space=sflag, size = 0x8, scoped, tag = 'scoped memory for composite_feature_extractor.1']
    #allocation6 [shape = 'u8[8192]{0}', space=vmem, size = 0x2000, scoped, tag = 'input window, operand 1, single buffered']
    #allocation7 [shape = 's32[1]{0}', space=sflag, size = 0x4, scoped, tag = 'scoped memory for composite_feature_extractor.1']
    #allocation8 [shape = 'u8[8192]{0}', space=vmem, size = 0x2000, scoped, tag = 'input window, operand 2, single buffered']
    #allocation9 [shape = 'u8[8192]{0}', space=vmem, size = 0x2000, scoped, tag = 'input window, operand 3, single buffered']
    #allocation10 [shape = 's32[1]{0}', space=sflag, size = 0x4, scoped, tag = 'scoped memory for composite_feature_extractor.1']
    #allocation11 [shape = 'u8[8192]{0}', space=vmem, size = 0x2000, scoped, tag = 'input window, operand 4, single buffered']
    #allocation12 [shape = 'u8[8192]{0}', space=vmem, size = 0x2000, scoped, tag = 'input window, operand 5, single buffered']
    #allocation13 [shape = 's32[1]{0}', space=sflag, size = 0x4, scoped, tag = 'scoped memory for composite_feature_extractor.1']
    #allocation14 [shape = 'u8[8192]{0}', space=vmem, size = 0x2000, scoped, tag = 'input window, operand 6, single buffered']
    #allocation15 [shape = 'u8[65536]{0}', space=vmem, size = 0x10000, scoped, tag = 'output window, operand 0']
    %12 = vsyncpa [#allocation4], 0
    %s13 = scalar_lea.sflag [#allocation4], 1
    %14 = vsyncpa %s13, 0
    %15 = vsyncpa [#allocation7], 0
    %16 = vsyncpa [#allocation10], 0
    %17 = vsyncpa [#allocation13], 0
    %18 = vsyncpa [#allocation5], 0
    %s19 = scalar_lea.sflag [#allocation5], 1
    %20 = vsyncpa %s19, 0
    loop: start=0, step=1, limit=4
    $region2: #{composite_feature_extractor.1} parent=1 // loop_pre_header
      _
    $region3: #{composite_feature_extractor.1} parent=1 // loop_header
      %s22 = sphi 0, %s26
      %p23 = scmp.ge.s32.totalorder %s22, 4
      %s32 = sphi 0, %s34
      %s35 = sphi 0, %s32
      %s36 = sphi 0, %s35
      %s52 = sphi 0, %s36
      %s56 = sphi 0, %s56
      %s58 = sphi 0, %s56
      %s59 = sphi 0, %s58
      %s73 = sphi 0, %s59
      %s77 = sphi 0, %s77
      %s79 = sphi 0, %s77
      %s80 = sphi 0, %s79
      %s94 = sphi 0, %s80
      %s98 = sphi 0, %s98
      %s100 = sphi 0, %s98
      %s101 = sphi 0, %s100
      %s115 = sphi 0, %s101
      %s119 = sphi 0, %s119
      %s121 = sphi 0, %s119
      %s122 = sphi 0, %s121
      %s136 = sphi 0, %s122
      %s140 = sphi 0, %s140
      %s142 = sphi 0, %s140
      %s143 = sphi 0, %s142
      %s157 = sphi 0, %s143
      %s161 = sphi 0, %s161
      %s163 = sphi 0, %s161
      %s164 = sphi 0, %s163
      %s178 = sphi 0, %s164
      %s184 = sphi 0, %s186
      %s187 = sphi 0, %s184
      %s188 = sphi 0, %s187
      %s204 = sphi 0, %s188
    $region4: #{composite_feature_extractor.1} parent=1 // loop_header_branch
      %25 = sbr.rel (%p23) target = $region8
    $region5: #{composite_feature_extractor.1} parent=1 // loop_body
      %s27 = ssub.s32 %s22, 1
      %s28 = ssub.s32 %s22, 2
      %s29 = sadd.s32 %s22, 1
      %s30 = ssub.s32 %s22, %s29
      %p31 = scmp.eq.s32.totalorder %s30, 0
      %s33 = sadd.s32 %s32, 1
      %s34 = scalar_select %p31, %s32, %s33
      %p37 = pneg %p31
      %p38 = scmp.eq.s32.totalorder %s22, 1
      %p39 = por %p37, %p38
      %p40 = scmp.ne.s32.totalorder %s32, %s35
      %p41 = scmp.eq.s32.totalorder %s22, 0
      %p42 = por %p40, %p41
      %p43 = scmp.ne.s32.totalorder %s32, %s35
      %p44 = scmp.eq.s32.totalorder %s27, 1
      %p45 = por %p43, %p44
      %p46 = scmp.ne.s32.totalorder %s35, %s36
      %p47 = scmp.eq.s32.totalorder %s27, 0
      %p48 = por %p46, %p47
      %p49 = scmp.ne.s32.totalorder %s35, %s36
      %p50 = scmp.eq.s32.totalorder %s28, 1
      %p51 = por %p49, %p50
      %p53 = scmp.ne.s32.totalorder %s36, %s52
      %p54 = scmp.eq.s32.totalorder %s28, 0
      %p55 = por %p53, %p54
      %s57 = sadd.s32 %s56, 1
      %p60 = scmp.eq.s32.totalorder %s22, 1
      %p61 = scmp.ne.s32.totalorder %s56, %s58
      %p62 = scmp.eq.s32.totalorder %s22, 0
      %p63 = por %p61, %p62
      %p64 = scmp.ne.s32.totalorder %s56, %s58
      %p65 = scmp.eq.s32.totalorder %s27, 1
      %p66 = por %p64, %p65
      %p67 = scmp.ne.s32.totalorder %s58, %s59
      %p68 = scmp.eq.s32.totalorder %s27, 0
      %p69 = por %p67, %p68
      %p70 = scmp.ne.s32.totalorder %s58, %s59
      %p71 = scmp.eq.s32.totalorder %s28, 1
      %p72 = por %p70, %p71
      %p74 = scmp.ne.s32.totalorder %s59, %s73
      %p75 = scmp.eq.s32.totalorder %s28, 0
      %p76 = por %p74, %p75
      %s78 = sadd.s32 %s77, 1
      %p81 = scmp.eq.s32.totalorder %s22, 1
      %p82 = scmp.ne.s32.totalorder %s77, %s79
      %p83 = scmp.eq.s32.totalorder %s22, 0
      %p84 = por %p82, %p83
      %p85 = scmp.ne.s32.totalorder %s77, %s79
      %p86 = scmp.eq.s32.totalorder %s27, 1
      %p87 = por %p85, %p86
      %p88 = scmp.ne.s32.totalorder %s79, %s80
      %p89 = scmp.eq.s32.totalorder %s27, 0
      %p90 = por %p88, %p89
      %p91 = scmp.ne.s32.totalorder %s79, %s80
      %p92 = scmp.eq.s32.totalorder %s28, 1
      %p93 = por %p91, %p92
      %p95 = scmp.ne.s32.totalorder %s80, %s94
      %p96 = scmp.eq.s32.totalorder %s28, 0
      %p97 = por %p95, %p96
      %s99 = sadd.s32 %s98, 1
      %p102 = scmp.eq.s32.totalorder %s22, 1
      %p103 = scmp.ne.s32.totalorder %s98, %s100
      %p104 = scmp.eq.s32.totalorder %s22, 0
      %p105 = por %p103, %p104
      %p106 = scmp.ne.s32.totalorder %s98, %s100
      %p107 = scmp.eq.s32.totalorder %s27, 1
      %p108 = por %p106, %p107
      %p109 = scmp.ne.s32.totalorder %s100, %s101
      %p110 = scmp.eq.s32.totalorder %s27, 0
      %p111 = por %p109, %p110
      %p112 = scmp.ne.s32.totalorder %s100, %s101
      %p113 = scmp.eq.s32.totalorder %s28, 1
      %p114 = por %p112, %p113
      %p116 = scmp.ne.s32.totalorder %s101, %s115
      %p117 = scmp.eq.s32.totalorder %s28, 0
      %p118 = por %p116, %p117
      %s120 = sadd.s32 %s119, 1
      %p123 = scmp.eq.s32.totalorder %s22, 1
      %p124 = scmp.ne.s32.totalorder %s119, %s121
      %p125 = scmp.eq.s32.totalorder %s22, 0
      %p126 = por %p124, %p125
      %p127 = scmp.ne.s32.totalorder %s119, %s121
      %p128 = scmp.eq.s32.totalorder %s27, 1
      %p129 = por %p127, %p128
      %p130 = scmp.ne.s32.totalorder %s121, %s122
      %p131 = scmp.eq.s32.totalorder %s27, 0
      %p132 = por %p130, %p131
      %p133 = scmp.ne.s32.totalorder %s121, %s122
      %p134 = scmp.eq.s32.totalorder %s28, 1
      %p135 = por %p133, %p134
      %p137 = scmp.ne.s32.totalorder %s122, %s136
      %p138 = scmp.eq.s32.totalorder %s28, 0
      %p139 = por %p137, %p138
      %s141 = sadd.s32 %s140, 1
      %p144 = scmp.eq.s32.totalorder %s22, 1
      %p145 = scmp.ne.s32.totalorder %s140, %s142
      %p146 = scmp.eq.s32.totalorder %s22, 0
      %p147 = por %p145, %p146
      %p148 = scmp.ne.s32.totalorder %s140, %s142
      %p149 = scmp.eq.s32.totalorder %s27, 1
      %p150 = por %p148, %p149
      %p151 = scmp.ne.s32.totalorder %s142, %s143
      %p152 = scmp.eq.s32.totalorder %s27, 0
      %p153 = por %p151, %p152
      %p154 = scmp.ne.s32.totalorder %s142, %s143
      %p155 = scmp.eq.s32.totalorder %s28, 1
      %p156 = por %p154, %p155
      %p158 = scmp.ne.s32.totalorder %s143, %s157
      %p159 = scmp.eq.s32.totalorder %s28, 0
      %p160 = por %p158, %p159
      %s162 = sadd.s32 %s161, 1
      %p165 = scmp.eq.s32.totalorder %s22, 1
      %p166 = scmp.ne.s32.totalorder %s161, %s163
      %p167 = scmp.eq.s32.totalorder %s22, 0
      %p168 = por %p166, %p167
      %p169 = scmp.ne.s32.totalorder %s161, %s163
      %p170 = scmp.eq.s32.totalorder %s27, 1
      %p171 = por %p169, %p170
      %p172 = scmp.ne.s32.totalorder %s163, %s164
      %p173 = scmp.eq.s32.totalorder %s27, 0
      %p174 = por %p172, %p173
      %p175 = scmp.ne.s32.totalorder %s163, %s164
      %p176 = scmp.eq.s32.totalorder %s28, 1
      %p177 = por %p175, %p176
      %p179 = scmp.ne.s32.totalorder %s164, %s178
      %p180 = scmp.eq.s32.totalorder %s28, 0
      %p181 = por %p179, %p180
      %s182 = ssub.s32 %s22, %s29
      %p183 = scmp.eq.s32.totalorder %s182, 0
      %s185 = sadd.s32 %s184, 1
      %s186 = scalar_select %p183, %s184, %s185
      %p189 = pneg %p183
      %p190 = scmp.eq.s32.totalorder %s22, 1
      %p191 = por %p189, %p190
      %p192 = scmp.ne.s32.totalorder %s184, %s187
      %p193 = scmp.eq.s32.totalorder %s22, 0
      %p194 = por %p192, %p193
      %p195 = scmp.ne.s32.totalorder %s184, %s187
      %p196 = scmp.eq.s32.totalorder %s27, 1
      %p197 = por %p195, %p196
      %p198 = scmp.ne.s32.totalorder %s187, %s188
      %p199 = scmp.eq.s32.totalorder %s27, 0
      %p200 = por %p198, %p199
      %p201 = scmp.ne.s32.totalorder %s187, %s188
      %p202 = scmp.eq.s32.totalorder %s28, 1
      %p203 = por %p201, %p202
      %p205 = scmp.ne.s32.totalorder %s188, %s204
      %p206 = scmp.eq.s32.totalorder %s28, 0
      %p207 = por %p205, %p206
      %p208 = scmp.le.s32.totalorder 1, %s22
      %p209 = scmp.lt.s32.totalorder %s22, 3
      %p210 = pnand %p208, %p209
      %p211 = pneg %p210
      // Predicated region
      $region9: #{composite_feature_extractor.1} parent=5 // pred_check
        _
      $region10: #{composite_feature_extractor.1} parent=5 // pred_check_branch
        %213 = sbr.rel (%p210) target = $region12
      $region11: #{composite_feature_extractor.1} parent=5 // pred_region
        %s214 = ssub.s32 %s22, 1
        // Predicated region
        $region13: #{composite_feature_extractor.1} parent=11 // pred_check
          %p215 = pneg %p69
        $region14: #{composite_feature_extractor.1} parent=11 // pred_check_branch
          %217 = sbr.rel (%p215) target = $region16
        $region15: #{composite_feature_extractor.1} parent=11 // pred_region
          %s219 = ssub.s32 256, 256
          %220 = vsyncadd [#allocation7], %s219
          %s221 = sshll.u32 [#allocation6], 4
          %s222 = int_to_ptr.vmem [resolvable:$true] %s221
          %227 = dma.hbm_to_vmem [thread:$0]  %s1, 256, %s222, [#allocation7], 128, 128, 8
        $region16: #{composite_feature_extractor.1} parent=11 // pred_fallthru
          _
        // Predicated region
        $region17: #{composite_feature_extractor.1} parent=11 // pred_check
          %p228 = pneg %p90
        $region18: #{composite_feature_extractor.1} parent=11 // pred_check_branch
          %230 = sbr.rel (%p228) target = $region20
        $region19: #{composite_feature_extractor.1} parent=11 // pred_region
          %s232 = ssub.s32 256, 256
          %233 = vsyncadd [#allocation7], %s232
          %s234 = sshll.u32 [#allocation8], 4
          %s235 = int_to_ptr.vmem [resolvable:$true] %s234
          %240 = dma.hbm_to_vmem [thread:$0]  %s2, 256, %s235, [#allocation7], 128, 128, 8
        $region20: #{composite_feature_extractor.1} parent=11 // pred_fallthru
          _
        // Predicated region
        $region21: #{composite_feature_extractor.1} parent=11 // pred_check
          %p241 = pneg %p111
        $region22: #{composite_feature_extractor.1} parent=11 // pred_check_branch
          %243 = sbr.rel (%p241) target = $region24
        $region23: #{composite_feature_extractor.1} parent=11 // pred_region
          %s245 = ssub.s32 256, 256
          %246 = vsyncadd [#allocation10], %s245
          %s247 = sshll.u32 [#allocation9], 4
          %s248 = int_to_ptr.vmem [resolvable:$true] %s247
          %253 = dma.hbm_to_vmem [thread:$0]  %s3, 256, %s248, [#allocation10], 128, 128, 8
        $region24: #{composite_feature_extractor.1} parent=11 // pred_fallthru
          _
        // Predicated region
        $region25: #{composite_feature_extractor.1} parent=11 // pred_check
          %p254 = pneg %p132
        $region26: #{composite_feature_extractor.1} parent=11 // pred_check_branch
          %256 = sbr.rel (%p254) target = $region28
        $region27: #{composite_feature_extractor.1} parent=11 // pred_region
          %s258 = ssub.s32 256, 256
          %259 = vsyncadd [#allocation10], %s258
          %s260 = sshll.u32 [#allocation11], 4
          %s261 = int_to_ptr.vmem [resolvable:$true] %s260
          %266 = dma.hbm_to_vmem [thread:$0]  %s4, 256, %s261, [#allocation10], 128, 128, 8
        $region28: #{composite_feature_extractor.1} parent=11 // pred_fallthru
          _
        // Predicated region
        $region29: #{composite_feature_extractor.1} parent=11 // pred_check
          %p267 = pneg %p153
        $region30: #{composite_feature_extractor.1} parent=11 // pred_check_branch
          %269 = sbr.rel (%p267) target = $region32
        $region31: #{composite_feature_extractor.1} parent=11 // pred_region
          %s271 = ssub.s32 256, 256
          %272 = vsyncadd [#allocation13], %s271
          %s273 = sshll.u32 [#allocation12], 4
          %s274 = int_to_ptr.vmem [resolvable:$true] %s273
          %279 = dma.hbm_to_vmem [thread:$0]  %s5, 256, %s274, [#allocation13], 128, 128, 8
        $region32: #{composite_feature_extractor.1} parent=11 // pred_fallthru
          _
        // Predicated region
        $region33: #{composite_feature_extractor.1} parent=11 // pred_check
          %p280 = pneg %p174
        $region34: #{composite_feature_extractor.1} parent=11 // pred_check_branch
          %282 = sbr.rel (%p280) target = $region36
        $region35: #{composite_feature_extractor.1} parent=11 // pred_region
          %s284 = ssub.s32 256, 256
          %285 = vsyncadd [#allocation13], %s284
          %s286 = sshll.u32 [#allocation14], 4
          %s287 = int_to_ptr.vmem [resolvable:$true] %s286
          %292 = dma.hbm_to_vmem [thread:$0]  %s6, 256, %s287, [#allocation13], 128, 128, 8
        $region36: #{composite_feature_extractor.1} parent=11 // pred_fallthru
          _
      $region12: #{composite_feature_extractor.1} parent=5 // pred_fallthru
        _
      %p293 = scmp.lt.s32.totalorder %s22, 2
      // Predicated region
      $region37: #{composite_feature_extractor.1} parent=5 // pred_check
        %p294 = pneg %p293
      $region38: #{composite_feature_extractor.1} parent=5 // pred_check_branch
        %296 = sbr.rel (%p294) target = $region40
      $region39: #{composite_feature_extractor.1} parent=5 // pred_region
        // Predicated region
        $region41: #{composite_feature_extractor.1} parent=39 // pred_check
          %p297 = pneg %p42
        $region42: #{composite_feature_extractor.1} parent=39 // pred_check_branch
          %299 = sbr.rel (%p297) target = $region44
        $region43: #{composite_feature_extractor.1} parent=39 // pred_region
          %s300 = sand.u32 %s32, 1
          %s301 = scalar_lea.sflag [#allocation4], %s300
          %s302 = sand.u32 %s32, 1
          %s303 = smul.addr %s302, 64
          %s304 = scalar_lea.vmem [#allocation3], %s303
          %s305 = smul.u32 4, %s22
          %s307 = ssub.s32 1024, 1024
          %308 = vsyncadd %s301, %s307
          %s309 = smul.addr %s305, 2
          %s310 = smul.addr %s309, 128
          %s311 = scalar_lea.hbm %s0, %s310
          %s312 = sshll.u32 %s304, 4
          %s313 = int_to_ptr.vmem [resolvable:$true] %s312
          %318 = dma.hbm_to_vmem [thread:$0]  %s311, 1024, %s313, %s301, 128, 128, 8
        $region44: #{composite_feature_extractor.1} parent=39 // pred_fallthru
          _
      $region40: #{composite_feature_extractor.1} parent=5 // pred_fallthru
        _
      %p319 = scmp.le.s32.totalorder 1, %s22
      %p320 = scmp.lt.s32.totalorder %s22, 3
      %p321 = pnand %p319, %p320
      %p322 = pneg %p321
      // Predicated region
      $region45: #{composite_feature_extractor.1} parent=5 // pred_check
        _
      $region46: #{composite_feature_extractor.1} parent=5 // pred_check_branch
        %324 = sbr.rel (%p321) target = $region48
      $region47: #{composite_feature_extractor.1} parent=5 // pred_region
        %s325 = ssub.s32 %s22, 1
        %s326 = sand.u32 %s35, 1
        %s327 = scalar_lea.sflag [#allocation4], %s326
        %s328 = sand.u32 %s35, 1
        %s329 = smul.addr %s328, 64
        %s330 = scalar_lea.vmem [#allocation3], %s329
        // Predicated region
        $region49: #{composite_feature_extractor.1} parent=47 // pred_check
          %p331 = pneg %p48
        $region50: #{composite_feature_extractor.1} parent=47 // pred_check_branch
          %333 = sbr.rel (%p331) target = $region52
        $region51: #{composite_feature_extractor.1} parent=47 // pred_region
          %334 = dma.done %s327, 1024
        $region52: #{composite_feature_extractor.1} parent=47 // pred_fallthru
          _
        // Predicated region
        $region53: #{composite_feature_extractor.1} parent=47 // pred_check
          %p335 = pneg %p69
        $region54: #{composite_feature_extractor.1} parent=47 // pred_check_branch
          %337 = sbr.rel (%p335) target = $region56
        $region55: #{composite_feature_extractor.1} parent=47 // pred_region
          %338 = dma.done [#allocation7], 256
        $region56: #{composite_feature_extractor.1} parent=47 // pred_fallthru
          _
        // Predicated region
        $region57: #{composite_feature_extractor.1} parent=47 // pred_check
          %p339 = pneg %p90
        $region58: #{composite_feature_extractor.1} parent=47 // pred_check_branch
          %341 = sbr.rel (%p339) target = $region60
        $region59: #{composite_feature_extractor.1} parent=47 // pred_region
          %342 = dma.done [#allocation7], 256
        $region60: #{composite_feature_extractor.1} parent=47 // pred_fallthru
          _
        // Predicated region
        $region61: #{composite_feature_extractor.1} parent=47 // pred_check
          %p343 = pneg %p111
        $region62: #{composite_feature_extractor.1} parent=47 // pred_check_branch
          %345 = sbr.rel (%p343) target = $region64
        $region63: #{composite_feature_extractor.1} parent=47 // pred_region
          %346 = dma.done [#allocation10], 256
        $region64: #{composite_feature_extractor.1} parent=47 // pred_fallthru
          _
        // Predicated region
        $region65: #{composite_feature_extractor.1} parent=47 // pred_check
          %p347 = pneg %p132
        $region66: #{composite_feature_extractor.1} parent=47 // pred_check_branch
          %349 = sbr.rel (%p347) target = $region68
        $region67: #{composite_feature_extractor.1} parent=47 // pred_region
          %350 = dma.done [#allocation10], 256
        $region68: #{composite_feature_extractor.1} parent=47 // pred_fallthru
          _
        // Predicated region
        $region69: #{composite_feature_extractor.1} parent=47 // pred_check
          %p351 = pneg %p153
        $region70: #{composite_feature_extractor.1} parent=47 // pred_check_branch
          %353 = sbr.rel (%p351) target = $region72
        $region71: #{composite_feature_extractor.1} parent=47 // pred_region
          %354 = dma.done [#allocation13], 256
        $region72: #{composite_feature_extractor.1} parent=47 // pred_fallthru
          _
        // Predicated region
        $region73: #{composite_feature_extractor.1} parent=47 // pred_check
          %p355 = pneg %p174
        $region74: #{composite_feature_extractor.1} parent=47 // pred_check_branch
          %357 = sbr.rel (%p355) target = $region76
        $region75: #{composite_feature_extractor.1} parent=47 // pred_region
          %358 = dma.done [#allocation13], 256
        $region76: #{composite_feature_extractor.1} parent=47 // pred_fallthru
          _
        %s359 = sand.u32 %s35, 1
        %s360 = scalar_lea.sflag [#allocation4], %s359
        %s361 = sand.u32 %s35, 1
        %s362 = smul.addr %s361, 64
        %s363 = scalar_lea.vmem [#allocation3], %s362
        %p364 = pneg %p48
        %p365 = pneg %p45
        %p366 = pneg %p69
        %p367 = pneg %p66
        %p368 = pneg %p90
        %p369 = pneg %p87
        %p370 = pneg %p111
        %p371 = pneg %p108
        %p372 = pneg %p132
        %p373 = pneg %p129
        %p374 = pneg %p153
        %p375 = pneg %p150
        %p376 = pneg %p174
        %p377 = pneg %p171
        %p378 = pneg %p200
        %p379 = pneg %p197
        %s380 = sand.u32 %s187, 1
        %s381 = scalar_lea.sflag [#allocation5], %s380
        %s382 = sand.u32 %s187, 1
        %s383 = smul.addr %s382, 64
        %s384 = scalar_lea.vmem [#allocation15], %s383
        %s385 = smul.u32 4, %s27
        %s386 = smul.u32 4, %s27
        %vm387 = vcmask 156672
        %388 = vst.msk [vmem:[#allocation2] sm:$0x3] %vm387, 0.0
        %389 = vst.msk [vmem:[#allocation2 + $0x18] sm:$0x3] %vm387, 0.0
        %390 = vst.msk [vmem:[#allocation2 + $0x30] sm:$0x3] %vm387, 0.0
        %391 = vst.msk [vmem:[#allocation2 + $0x48] sm:$0x3] %vm387, 0.0
        %392 = vst.msk [vmem:[#allocation2 + $0x12] sm:$0x3] %vm387, 0.0
        %393 = vst.msk [vmem:[#allocation2 + $0x2a] sm:$0x3] %vm387, 0.0
        %394 = vst.msk [vmem:[#allocation2 + $0x42] sm:$0x3] %vm387, 0.0
        %395 = vst.msk [vmem:[#allocation2 + $0x5a] sm:$0x3] %vm387, 0.0
        %vm396 = vcmask 15360
        %397 = vst.msk [vmem:[#allocation2] sm:$0xff] %vm396, 0.0
        %398 = vst.msk [vmem:[#allocation2 + $0x8] sm:$0xff] %vm396, 0.0
        %vm399 = vcmask 11264
        %400 = vst.msk [vmem:[#allocation2 + $0x10] sm:$0xf] %vm399, 0.0
        %401 = vst.msk [vmem:[#allocation2 + $0x18] sm:$0xff] %vm396, 0.0
        %402 = vst.msk [vmem:[#allocation2 + $0x20] sm:$0xff] %vm396, 0.0
        %403 = vst.msk [vmem:[#allocation2 + $0x28] sm:$0xf] %vm399, 0.0
        %404 = vst.msk [vmem:[#allocation2 + $0x30] sm:$0xff] %vm396, 0.0
        %405 = vst.msk [vmem:[#allocation2 + $0x38] sm:$0xff] %vm396, 0.0
        %406 = vst.msk [vmem:[#allocation2 + $0x40] sm:$0xf] %vm399, 0.0
        %407 = vst.msk [vmem:[#allocation2 + $0x48] sm:$0xff] %vm396, 0.0
        %408 = vst.msk [vmem:[#allocation2 + $0x50] sm:$0xff] %vm396, 0.0
        %409 = vst.msk [vmem:[#allocation2 + $0x58] sm:$0xf] %vm399, 0.0
        %vm410 = vcmask 162960
        %411 = vst.msk [vmem:[#allocation2] sm:$0xff] %vm410, 0.0
        %412 = vst.msk [vmem:[#allocation2 + $0x8] sm:$0xff] %vm410, 0.0
        %vm413 = vcmask 158864
        %414 = vst.msk [vmem:[#allocation2 + $0x10] sm:$0xf] %vm413, 0.0
        %415 = vst.msk [vmem:[#allocation2 + $0x18] sm:$0xff] %vm410, 0.0
        %416 = vst.msk [vmem:[#allocation2 + $0x20] sm:$0xff] %vm410, 0.0
        %417 = vst.msk [vmem:[#allocation2 + $0x28] sm:$0xf] %vm413, 0.0
        %418 = vst.msk [vmem:[#allocation2 + $0x30] sm:$0xff] %vm410, 0.0
        %419 = vst.msk [vmem:[#allocation2 + $0x38] sm:$0xff] %vm410, 0.0
        %420 = vst.msk [vmem:[#allocation2 + $0x40] sm:$0xf] %vm413, 0.0
        %421 = vst.msk [vmem:[#allocation2 + $0x48] sm:$0xff] %vm410, 0.0
        %422 = vst.msk [vmem:[#allocation2 + $0x50] sm:$0xff] %vm410, 0.0
        %423 = vst.msk [vmem:[#allocation2 + $0x58] sm:$0xf] %vm413, 0.0
        %v424 = vld [vmem:[%s330] sm:$0xff]
        %v425 = vld [vmem:[%s330 + $0x8] sm:$0xff]
        %v426 = vld [vmem:[%s330 + $0x10] sm:$0xff]
        %v427 = vld [vmem:[%s330 + $0x18] sm:$0xff]
        %v428 = vld [vmem:[%s330 + $0x20] sm:$0xff]
        %v429 = vld [vmem:[%s330 + $0x28] sm:$0xff]
        %v430 = vld [vmem:[%s330 + $0x30] sm:$0xff]
        %v431 = vld [vmem:[%s330 + $0x38] sm:$0xff]
        %440 = vrot.lane.b32.xlu0 %v424, 2
        %v441 = vpop.permute.xlu0 %440
        %442 = vrot.lane.b32.xlu0 %v425, 2
        %v443 = vpop.permute.xlu0 %442
        %444 = vrot.lane.b32.xlu0 %v426, 2
        %v445 = vpop.permute.xlu0 %444
        %446 = vrot.lane.b32.xlu0 %v427, 2
        %v447 = vpop.permute.xlu0 %446
        %448 = vrot.lane.b32.xlu0 %v428, 2
        %v449 = vpop.permute.xlu0 %448
        %450 = vrot.lane.b32.xlu0 %v429, 2
        %v451 = vpop.permute.xlu0 %450
        %452 = vrot.lane.b32.xlu0 %v430, 2
        %v453 = vpop.permute.xlu0 %452
        %454 = vrot.lane.b32.xlu0 %v431, 2
        %v455 = vpop.permute.xlu0 %454
        %vm464 = vcmask 146448
        %465 = vst.msk [vmem:[#allocation2 + $0x2] sm:$0xff] %vm464, %v441
        %466 = vst.msk [vmem:[#allocation2 + $0xa] sm:$0xff] %vm464, %v443
        %467 = vst.msk [vmem:[#allocation2 + $0x1a] sm:$0xff] %vm464, %v445
        %468 = vst.msk [vmem:[#allocation2 + $0x22] sm:$0xff] %vm464, %v447
        %469 = vst.msk [vmem:[#allocation2 + $0x32] sm:$0xff] %vm464, %v449
        %470 = vst.msk [vmem:[#allocation2 + $0x3a] sm:$0xff] %vm464, %v451
        %471 = vst.msk [vmem:[#allocation2 + $0x4a] sm:$0xff] %vm464, %v453
        %472 = vst.msk [vmem:[#allocation2 + $0x52] sm:$0xff] %vm464, %v455
        %v473 = vld [vmem:[#allocation2 + $0x1] sm:$0xff]
        %v474 = vld [vmem:[#allocation2 + $0x9] sm:$0xff]
        %v475 = vld [vmem:[#allocation2 + $0x19] sm:$0xff]
        %v476 = vld [vmem:[#allocation2 + $0x21] sm:$0xff]
        %v477 = vld [vmem:[#allocation2 + $0x31] sm:$0xff]
        %v478 = vld [vmem:[#allocation2 + $0x39] sm:$0xff]
        %v479 = vld [vmem:[#allocation2 + $0x49] sm:$0xff]
        %v480 = vld [vmem:[#allocation2 + $0x51] sm:$0xff]
        %v481 = vmul.f32 %v473, -1.0
        %v482 = vmul.f32 %v474, -1.0
        %v483 = vmul.f32 %v475, -1.0
        %v484 = vmul.f32 %v476, -1.0
        %v485 = vmul.f32 %v477, -1.0
        %v486 = vmul.f32 %v478, -1.0
        %v487 = vmul.f32 %v479, -1.0
        %v488 = vmul.f32 %v480, -1.0
        %v489 = vmul.f32 %v473, 2.0
        %v490 = vmul.f32 %v474, 2.0
        %v491 = vmul.f32 %v475, 2.0
        %v492 = vmul.f32 %v476, 2.0
        %v493 = vmul.f32 %v477, 2.0
        %v494 = vmul.f32 %v478, 2.0
        %v495 = vmul.f32 %v479, 2.0
        %v496 = vmul.f32 %v480, 2.0
        %505 = vrot.lane.b32.xlu0 %v489, 127
        %v506 = vpop.permute.xlu0 %505
        %507 = vrot.lane.b32.xlu0 %v490, 127
        %v508 = vpop.permute.xlu0 %507
        %509 = vrot.lane.b32.xlu0 %v491, 127
        %v510 = vpop.permute.xlu0 %509
        %511 = vrot.lane.b32.xlu0 %v492, 127
        %v512 = vpop.permute.xlu0 %511
        %513 = vrot.lane.b32.xlu0 %v493, 127
        %v514 = vpop.permute.xlu0 %513
        %515 = vrot.lane.b32.xlu0 %v494, 127
        %v516 = vpop.permute.xlu0 %515
        %517 = vrot.lane.b32.xlu0 %v495, 127
        %v518 = vpop.permute.xlu0 %517
        %519 = vrot.lane.b32.xlu0 %v496, 127
        %v520 = vpop.permute.xlu0 %519
        %v529 = vadd.f32 %v481, %v506
        %v530 = vadd.f32 %v482, %v508
        %v531 = vadd.f32 %v483, %v510
        %v532 = vadd.f32 %v484, %v512
        %v533 = vadd.f32 %v485, %v514
        %v534 = vadd.f32 %v486, %v516
        %v535 = vadd.f32 %v487, %v518
        %v536 = vadd.f32 %v488, %v520
        %545 = vrot.lane.b32.xlu0 %v481, 126
        %v546 = vpop.permute.xlu0 %545
        %547 = vrot.lane.b32.xlu0 %v482, 126
        %v548 = vpop.permute.xlu0 %547
        %549 = vrot.lane.b32.xlu0 %v483, 126
        %v550 = vpop.permute.xlu0 %549
        %551 = vrot.lane.b32.xlu0 %v484, 126
        %v552 = vpop.permute.xlu0 %551
        %553 = vrot.lane.b32.xlu0 %v485, 126
        %v554 = vpop.permute.xlu0 %553
        %555 = vrot.lane.b32.xlu0 %v486, 126
        %v556 = vpop.permute.xlu0 %555
        %557 = vrot.lane.b32.xlu0 %v487, 126
        %v558 = vpop.permute.xlu0 %557
        %559 = vrot.lane.b32.xlu0 %v488, 126
        %v560 = vpop.permute.xlu0 %559
        %v569 = vadd.f32 %v529, %v546
        %v570 = vadd.f32 %v530, %v548
        %v571 = vadd.f32 %v531, %v550
        %v572 = vadd.f32 %v532, %v552
        %v573 = vadd.f32 %v533, %v554
        %v574 = vadd.f32 %v534, %v556
        %v575 = vadd.f32 %v535, %v558
        %v576 = vadd.f32 %v536, %v560
        %v577 = vld [vmem:[#allocation2 + $0x2] sm:$0xff]
        %v578 = vld [vmem:[#allocation2 + $0xa] sm:$0xff]
        %v579 = vld [vmem:[#allocation2 + $0x1a] sm:$0xff]
        %v580 = vld [vmem:[#allocation2 + $0x22] sm:$0xff]
        %v581 = vld [vmem:[#allocation2 + $0x32] sm:$0xff]
        %v582 = vld [vmem:[#allocation2 + $0x3a] sm:$0xff]
        %v583 = vld [vmem:[#allocation2 + $0x4a] sm:$0xff]
        %v584 = vld [vmem:[#allocation2 + $0x52] sm:$0xff]
        %v585 = vmul.f32 %v577, 2.0
        %v586 = vmul.f32 %v578, 2.0
        %v587 = vmul.f32 %v579, 2.0
        %v588 = vmul.f32 %v580, 2.0
        %v589 = vmul.f32 %v581, 2.0
        %v590 = vmul.f32 %v582, 2.0
        %v591 = vmul.f32 %v583, 2.0
        %v592 = vmul.f32 %v584, 2.0
        %v593 = vadd.f32 %v569, %v585
        %v594 = vadd.f32 %v570, %v586
        %v595 = vadd.f32 %v571, %v587
        %v596 = vadd.f32 %v572, %v588
        %v597 = vadd.f32 %v573, %v589
        %v598 = vadd.f32 %v574, %v590
        %v599 = vadd.f32 %v575, %v591
        %v600 = vadd.f32 %v576, %v592
        %v601 = vmul.f32 %v577, 4.0
        %v602 = vmul.f32 %v578, 4.0
        %v603 = vmul.f32 %v579, 4.0
        %v604 = vmul.f32 %v580, 4.0
        %v605 = vmul.f32 %v581, 4.0
        %v606 = vmul.f32 %v582, 4.0
        %v607 = vmul.f32 %v583, 4.0
        %v608 = vmul.f32 %v584, 4.0
        %617 = vrot.lane.b32.xlu0 %v601, 127
        %v618 = vpop.permute.xlu0 %617
        %619 = vrot.lane.b32.xlu0 %v602, 127
        %v620 = vpop.permute.xlu0 %619
        %621 = vrot.lane.b32.xlu0 %v603, 127
        %v622 = vpop.permute.xlu0 %621
        %623 = vrot.lane.b32.xlu0 %v604, 127
        %v624 = vpop.permute.xlu0 %623
        %625 = vrot.lane.b32.xlu0 %v605, 127
        %v626 = vpop.permute.xlu0 %625
        %627 = vrot.lane.b32.xlu0 %v606, 127
        %v628 = vpop.permute.xlu0 %627
        %629 = vrot.lane.b32.xlu0 %v607, 127
        %v630 = vpop.permute.xlu0 %629
        %631 = vrot.lane.b32.xlu0 %v608, 127
        %v632 = vpop.permute.xlu0 %631
        %v641 = vadd.f32 %v593, %v618
        %v642 = vadd.f32 %v594, %v620
        %v643 = vadd.f32 %v595, %v622
        %v644 = vadd.f32 %v596, %v624
        %v645 = vadd.f32 %v597, %v626
        %v646 = vadd.f32 %v598, %v628
        %v647 = vadd.f32 %v599, %v630
        %v648 = vadd.f32 %v600, %v632
        %657 = vrot.lane.b32.xlu0 %v585, 126
        %v658 = vpop.permute.xlu0 %657
        %659 = vrot.lane.b32.xlu0 %v586, 126
        %v660 = vpop.permute.xlu0 %659
        %661 = vrot.lane.b32.xlu0 %v587, 126
        %v662 = vpop.permute.xlu0 %661
        %663 = vrot.lane.b32.xlu0 %v588, 126
        %v664 = vpop.permute.xlu0 %663
        %665 = vrot.lane.b32.xlu0 %v589, 126
        %v666 = vpop.permute.xlu0 %665
        %667 = vrot.lane.b32.xlu0 %v590, 126
        %v668 = vpop.permute.xlu0 %667
        %669 = vrot.lane.b32.xlu0 %v591, 126
        %v670 = vpop.permute.xlu0 %669
        %671 = vrot.lane.b32.xlu0 %v592, 126
        %v672 = vpop.permute.xlu0 %671
        %v681 = vadd.f32 %v641, %v658
        %v682 = vadd.f32 %v642, %v660
        %v683 = vadd.f32 %v643, %v662
        %v684 = vadd.f32 %v644, %v664
        %v685 = vadd.f32 %v645, %v666
        %v686 = vadd.f32 %v646, %v668
        %v687 = vadd.f32 %v647, %v670
        %v688 = vadd.f32 %v648, %v672
        %v689 = vld [vmem:[#allocation2 + $0x3] sm:$0xff]
        %v690 = vld [vmem:[#allocation2 + $0xb] sm:$0xff]
        %v691 = vld [vmem:[#allocation2 + $0x1b] sm:$0xff]
        %v692 = vld [vmem:[#allocation2 + $0x23] sm:$0xff]
        %v693 = vld [vmem:[#allocation2 + $0x33] sm:$0xff]
        %v694 = vld [vmem:[#allocation2 + $0x3b] sm:$0xff]
        %v695 = vld [vmem:[#allocation2 + $0x4b] sm:$0xff]
        %v696 = vld [vmem:[#allocation2 + $0x53] sm:$0xff]
        %v697 = vmul.f32 %v689, -1.0
        %v698 = vmul.f32 %v690, -1.0
        %v699 = vmul.f32 %v691, -1.0
        %v700 = vmul.f32 %v692, -1.0
        %v701 = vmul.f32 %v693, -1.0
        %v702 = vmul.f32 %v694, -1.0
        %v703 = vmul.f32 %v695, -1.0
        %v704 = vmul.f32 %v696, -1.0
        %v705 = vadd.f32 %v681, %v697
        %v706 = vadd.f32 %v682, %v698
        %v707 = vadd.f32 %v683, %v699
        %v708 = vadd.f32 %v684, %v700
        %v709 = vadd.f32 %v685, %v701
        %v710 = vadd.f32 %v686, %v702
        %v711 = vadd.f32 %v687, %v703
        %v712 = vadd.f32 %v688, %v704
        %v713 = vmul.f32 %v689, 2.0
        %v714 = vmul.f32 %v690, 2.0
        %v715 = vmul.f32 %v691, 2.0
        %v716 = vmul.f32 %v692, 2.0
        %v717 = vmul.f32 %v693, 2.0
        %v718 = vmul.f32 %v694, 2.0
        %v719 = vmul.f32 %v695, 2.0
        %v720 = vmul.f32 %v696, 2.0
        %729 = vrot.lane.b32.xlu0 %v713, 127
        %v730 = vpop.permute.xlu0 %729
        %731 = vrot.lane.b32.xlu0 %v714, 127
        %v732 = vpop.permute.xlu0 %731
        %733 = vrot.lane.b32.xlu0 %v715, 127
        %v734 = vpop.permute.xlu0 %733
        %735 = vrot.lane.b32.xlu0 %v716, 127
        %v736 = vpop.permute.xlu0 %735
        %737 = vrot.lane.b32.xlu0 %v717, 127
        %v738 = vpop.permute.xlu0 %737
        %739 = vrot.lane.b32.xlu0 %v718, 127
        %v740 = vpop.permute.xlu0 %739
        %741 = vrot.lane.b32.xlu0 %v719, 127
        %v742 = vpop.permute.xlu0 %741
        %743 = vrot.lane.b32.xlu0 %v720, 127
        %v744 = vpop.permute.xlu0 %743
        %v753 = vadd.f32 %v705, %v730
        %v754 = vadd.f32 %v706, %v732
        %v755 = vadd.f32 %v707, %v734
        %v756 = vadd.f32 %v708, %v736
        %v757 = vadd.f32 %v709, %v738
        %v758 = vadd.f32 %v710, %v740
        %v759 = vadd.f32 %v711, %v742
        %v760 = vadd.f32 %v712, %v744
        %769 = vrot.lane.b32.xlu0 %v697, 126
        %v770 = vpop.permute.xlu0 %769
        %771 = vrot.lane.b32.xlu0 %v698, 126
        %v772 = vpop.permute.xlu0 %771
        %773 = vrot.lane.b32.xlu0 %v699, 126
        %v774 = vpop.permute.xlu0 %773
        %775 = vrot.lane.b32.xlu0 %v700, 126
        %v776 = vpop.permute.xlu0 %775
        %777 = vrot.lane.b32.xlu0 %v701, 126
        %v778 = vpop.permute.xlu0 %777
        %779 = vrot.lane.b32.xlu0 %v702, 126
        %v780 = vpop.permute.xlu0 %779
        %781 = vrot.lane.b32.xlu0 %v703, 126
        %v782 = vpop.permute.xlu0 %781
        %783 = vrot.lane.b32.xlu0 %v704, 126
        %v784 = vpop.permute.xlu0 %783
        %v793 = vadd.f32 %v753, %v770
        %v794 = vadd.f32 %v754, %v772
        %v795 = vadd.f32 %v755, %v774
        %v796 = vadd.f32 %v756, %v776
        %v797 = vadd.f32 %v757, %v778
        %v798 = vadd.f32 %v758, %v780
        %v799 = vadd.f32 %v759, %v782
        %v800 = vadd.f32 %v760, %v784
        %809 = vrot.lane.b32.xlu0 %v793, 1
        %v810 = vpop.permute.xlu0 %809
        %811 = vrot.lane.b32.xlu0 %v794, 1
        %v812 = vpop.permute.xlu0 %811
        %813 = vrot.lane.b32.xlu0 %v795, 1
        %v814 = vpop.permute.xlu0 %813
        %815 = vrot.lane.b32.xlu0 %v796, 1
        %v816 = vpop.permute.xlu0 %815
        %817 = vrot.lane.b32.xlu0 %v797, 1
        %v818 = vpop.permute.xlu0 %817
        %819 = vrot.lane.b32.xlu0 %v798, 1
        %v820 = vpop.permute.xlu0 %819
        %821 = vrot.lane.b32.xlu0 %v799, 1
        %v822 = vpop.permute.xlu0 %821
        %823 = vrot.lane.b32.xlu0 %v800, 1
        %v824 = vpop.permute.xlu0 %823
        %833 = vst.msk [vmem:[#allocation2 + $0x2] sm:$0xff] %vm464, %v810
        %834 = vst.msk [vmem:[#allocation2 + $0xa] sm:$0xff] %vm464, %v812
        %835 = vst.msk [vmem:[#allocation2 + $0x1a] sm:$0xff] %vm464, %v814
        %836 = vst.msk [vmem:[#allocation2 + $0x22] sm:$0xff] %vm464, %v816
        %837 = vst.msk [vmem:[#allocation2 + $0x32] sm:$0xff] %vm464, %v818
        %838 = vst.msk [vmem:[#allocation2 + $0x3a] sm:$0xff] %vm464, %v820
        %839 = vst.msk [vmem:[#allocation2 + $0x4a] sm:$0xff] %vm464, %v822
        %840 = vst.msk [vmem:[#allocation2 + $0x52] sm:$0xff] %vm464, %v824
        %v841 = vld [vmem:[#allocation2] sm:$0xff]
        %v842 = vld [vmem:[#allocation2 + $0x8] sm:$0xff]
        %v843 = vld [vmem:[#allocation2 + $0x18] sm:$0xff]
        %v844 = vld [vmem:[#allocation2 + $0x20] sm:$0xff]
        %v845 = vld [vmem:[#allocation2 + $0x30] sm:$0xff]
        %v846 = vld [vmem:[#allocation2 + $0x38] sm:$0xff]
        %v847 = vld [vmem:[#allocation2 + $0x48] sm:$0xff]
        %v848 = vld [vmem:[#allocation2 + $0x50] sm:$0xff]
        %v849 = vmul.f32 %v841, -1.0
        %v850 = vmul.f32 %v842, -1.0
        %v851 = vmul.f32 %v843, -1.0
        %v852 = vmul.f32 %v844, -1.0
        %v853 = vmul.f32 %v845, -1.0
        %v854 = vmul.f32 %v846, -1.0
        %v855 = vmul.f32 %v847, -1.0
        %v856 = vmul.f32 %v848, -1.0
        %v857 = vmul.f32 %v841, 2.0
        %v858 = vmul.f32 %v842, 2.0
        %v859 = vmul.f32 %v843, 2.0
        %v860 = vmul.f32 %v844, 2.0
        %v861 = vmul.f32 %v845, 2.0
        %v862 = vmul.f32 %v846, 2.0
        %v863 = vmul.f32 %v847, 2.0
        %v864 = vmul.f32 %v848, 2.0
        %873 = vrot.lane.b32.xlu0 %v857, 127
        %v874 = vpop.permute.xlu0 %873
        %875 = vrot.lane.b32.xlu0 %v858, 127
        %v876 = vpop.permute.xlu0 %875
        %877 = vrot.lane.b32.xlu0 %v859, 127
        %v878 = vpop.permute.xlu0 %877
        %879 = vrot.lane.b32.xlu0 %v860, 127
        %v880 = vpop.permute.xlu0 %879
        %881 = vrot.lane.b32.xlu0 %v861, 127
        %v882 = vpop.permute.xlu0 %881
        %883 = vrot.lane.b32.xlu0 %v862, 127
        %v884 = vpop.permute.xlu0 %883
        %885 = vrot.lane.b32.xlu0 %v863, 127
        %v886 = vpop.permute.xlu0 %885
        %887 = vrot.lane.b32.xlu0 %v864, 127
        %v888 = vpop.permute.xlu0 %887
        %v897 = vadd.f32 %v849, %v874
        %v898 = vadd.f32 %v850, %v876
        %v899 = vadd.f32 %v851, %v878
        %v900 = vadd.f32 %v852, %v880
        %v901 = vadd.f32 %v853, %v882
        %v902 = vadd.f32 %v854, %v884
        %v903 = vadd.f32 %v855, %v886
        %v904 = vadd.f32 %v856, %v888
        %v905 = vmul.f32 %v841, -2.0
        %v906 = vmul.f32 %v842, -2.0
        %v907 = vmul.f32 %v843, -2.0
        %v908 = vmul.f32 %v844, -2.0
        %v909 = vmul.f32 %v845, -2.0
        %v910 = vmul.f32 %v846, -2.0
        %v911 = vmul.f32 %v847, -2.0
        %v912 = vmul.f32 %v848, -2.0
        %921 = vrot.lane.b32.xlu0 %v905, 126
        %v922 = vpop.permute.xlu0 %921
        %923 = vrot.lane.b32.xlu0 %v906, 126
        %v924 = vpop.permute.xlu0 %923
        %925 = vrot.lane.b32.xlu0 %v907, 126
        %v926 = vpop.permute.xlu0 %925
        %927 = vrot.lane.b32.xlu0 %v908, 126
        %v928 = vpop.permute.xlu0 %927
        %929 = vrot.lane.b32.xlu0 %v909, 126
        %v930 = vpop.permute.xlu0 %929
        %931 = vrot.lane.b32.xlu0 %v910, 126
        %v932 = vpop.permute.xlu0 %931
        %933 = vrot.lane.b32.xlu0 %v911, 126
        %v934 = vpop.permute.xlu0 %933
        %935 = vrot.lane.b32.xlu0 %v912, 126
        %v936 = vpop.permute.xlu0 %935
        %v945 = vadd.f32 %v897, %v922
        %v946 = vadd.f32 %v898, %v924
        %v947 = vadd.f32 %v899, %v926
        %v948 = vadd.f32 %v900, %v928
        %v949 = vadd.f32 %v901, %v930
        %v950 = vadd.f32 %v902, %v932
        %v951 = vadd.f32 %v903, %v934
        %v952 = vadd.f32 %v904, %v936
        %953 = vrot.lane.b32.xlu0 %v857, 125
        %v954 = vpop.permute.xlu0 %953
        %955 = vrot.lane.b32.xlu0 %v858, 125
        %v956 = vpop.permute.xlu0 %955
        %957 = vrot.lane.b32.xlu0 %v859, 125
        %v958 = vpop.permute.xlu0 %957
        %959 = vrot.lane.b32.xlu0 %v860, 125
        %v960 = vpop.permute.xlu0 %959
        %961 = vrot.lane.b32.xlu0 %v861, 125
        %v962 = vpop.permute.xlu0 %961
        %963 = vrot.lane.b32.xlu0 %v862, 125
        %v964 = vpop.permute.xlu0 %963
        %965 = vrot.lane.b32.xlu0 %v863, 125
        %v966 = vpop.permute.xlu0 %965
        %967 = vrot.lane.b32.xlu0 %v864, 125
        %v968 = vpop.permute.xlu0 %967
        %v977 = vadd.f32 %v945, %v954
        %v978 = vadd.f32 %v946, %v956
        %v979 = vadd.f32 %v947, %v958
        %v980 = vadd.f32 %v948, %v960
        %v981 = vadd.f32 %v949, %v962
        %v982 = vadd.f32 %v950, %v964
        %v983 = vadd.f32 %v951, %v966
        %v984 = vadd.f32 %v952, %v968
        %993 = vrot.lane.b32.xlu0 %v849, 124
        %v994 = vpop.permute.xlu0 %993
        %995 = vrot.lane.b32.xlu0 %v850, 124
        %v996 = vpop.permute.xlu0 %995
        %997 = vrot.lane.b32.xlu0 %v851, 124
        %v998 = vpop.permute.xlu0 %997
        %999 = vrot.lane.b32.xlu0 %v852, 124
        %v1000 = vpop.permute.xlu0 %999
        %1001 = vrot.lane.b32.xlu0 %v853, 124
        %v1002 = vpop.permute.xlu0 %1001
        %1003 = vrot.lane.b32.xlu0 %v854, 124
        %v1004 = vpop.permute.xlu0 %1003
        %1005 = vrot.lane.b32.xlu0 %v855, 124
        %v1006 = vpop.permute.xlu0 %1005
        %1007 = vrot.lane.b32.xlu0 %v856, 124
        %v1008 = vpop.permute.xlu0 %1007
        %v1017 = vadd.f32 %v977, %v994
        %v1018 = vadd.f32 %v978, %v996
        %v1019 = vadd.f32 %v979, %v998
        %v1020 = vadd.f32 %v980, %v1000
        %v1021 = vadd.f32 %v981, %v1002
        %v1022 = vadd.f32 %v982, %v1004
        %v1023 = vadd.f32 %v983, %v1006
        %v1024 = vadd.f32 %v984, %v1008
        %v1025 = vld [vmem:[#allocation2 + $0x1] sm:$0xff]
        %v1026 = vld [vmem:[#allocation2 + $0x9] sm:$0xff]
        %v1027 = vld [vmem:[#allocation2 + $0x19] sm:$0xff]
        %v1028 = vld [vmem:[#allocation2 + $0x21] sm:$0xff]
        %v1029 = vld [vmem:[#allocation2 + $0x31] sm:$0xff]
        %v1030 = vld [vmem:[#allocation2 + $0x39] sm:$0xff]
        %v1031 = vld [vmem:[#allocation2 + $0x49] sm:$0xff]
        %v1032 = vld [vmem:[#allocation2 + $0x51] sm:$0xff]
        %v1033 = vmul.f32 %v1025, 2.0
        %v1034 = vmul.f32 %v1026, 2.0
        %v1035 = vmul.f32 %v1027, 2.0
        %v1036 = vmul.f32 %v1028, 2.0
        %v1037 = vmul.f32 %v1029, 2.0
        %v1038 = vmul.f32 %v1030, 2.0
        %v1039 = vmul.f32 %v1031, 2.0
        %v1040 = vmul.f32 %v1032, 2.0
        %v1041 = vadd.f32 %v1017, %v1033
        %v1042 = vadd.f32 %v1018, %v1034
        %v1043 = vadd.f32 %v1019, %v1035
        %v1044 = vadd.f32 %v1020, %v1036
        %v1045 = vadd.f32 %v1021, %v1037
        %v1046 = vadd.f32 %v1022, %v1038
        %v1047 = vadd.f32 %v1023, %v1039
        %v1048 = vadd.f32 %v1024, %v1040
        %v1049 = vmul.f32 %v1025, -6.0
        %v1050 = vmul.f32 %v1026, -6.0
        %v1051 = vmul.f32 %v1027, -6.0
        %v1052 = vmul.f32 %v1028, -6.0
        %v1053 = vmul.f32 %v1029, -6.0
        %v1054 = vmul.f32 %v1030, -6.0
        %v1055 = vmul.f32 %v1031, -6.0
        %v1056 = vmul.f32 %v1032, -6.0
        %1065 = vrot.lane.b32.xlu0 %v1049, 127
        %v1066 = vpop.permute.xlu0 %1065
        %1067 = vrot.lane.b32.xlu0 %v1050, 127
        %v1068 = vpop.permute.xlu0 %1067
        %1069 = vrot.lane.b32.xlu0 %v1051, 127
        %v1070 = vpop.permute.xlu0 %1069
        %1071 = vrot.lane.b32.xlu0 %v1052, 127
        %v1072 = vpop.permute.xlu0 %1071
        %1073 = vrot.lane.b32.xlu0 %v1053, 127
        %v1074 = vpop.permute.xlu0 %1073
        %1075 = vrot.lane.b32.xlu0 %v1054, 127
        %v1076 = vpop.permute.xlu0 %1075
        %1077 = vrot.lane.b32.xlu0 %v1055, 127
        %v1078 = vpop.permute.xlu0 %1077
        %1079 = vrot.lane.b32.xlu0 %v1056, 127
        %v1080 = vpop.permute.xlu0 %1079
        %v1089 = vadd.f32 %v1041, %v1066
        %v1090 = vadd.f32 %v1042, %v1068
        %v1091 = vadd.f32 %v1043, %v1070
        %v1092 = vadd.f32 %v1044, %v1072
        %v1093 = vadd.f32 %v1045, %v1074
        %v1094 = vadd.f32 %v1046, %v1076
        %v1095 = vadd.f32 %v1047, %v1078
        %v1096 = vadd.f32 %v1048, %v1080
        %v1097 = vmul.f32 %v1025, 8.0
        %v1098 = vmul.f32 %v1026, 8.0
        %v1099 = vmul.f32 %v1027, 8.0
        %v1100 = vmul.f32 %v1028, 8.0
        %v1101 = vmul.f32 %v1029, 8.0
        %v1102 = vmul.f32 %v1030, 8.0
        %v1103 = vmul.f32 %v1031, 8.0
        %v1104 = vmul.f32 %v1032, 8.0
        %1113 = vrot.lane.b32.xlu0 %v1097, 126
        %v1114 = vpop.permute.xlu0 %1113
        %1115 = vrot.lane.b32.xlu0 %v1098, 126
        %v1116 = vpop.permute.xlu0 %1115
        %1117 = vrot.lane.b32.xlu0 %v1099, 126
        %v1118 = vpop.permute.xlu0 %1117
        %1119 = vrot.lane.b32.xlu0 %v1100, 126
        %v1120 = vpop.permute.xlu0 %1119
        %1121 = vrot.lane.b32.xlu0 %v1101, 126
        %v1122 = vpop.permute.xlu0 %1121
        %1123 = vrot.lane.b32.xlu0 %v1102, 126
        %v1124 = vpop.permute.xlu0 %1123
        %1125 = vrot.lane.b32.xlu0 %v1103, 126
        %v1126 = vpop.permute.xlu0 %1125
        %1127 = vrot.lane.b32.xlu0 %v1104, 126
        %v1128 = vpop.permute.xlu0 %1127
        %v1137 = vadd.f32 %v1089, %v1114
        %v1138 = vadd.f32 %v1090, %v1116
        %v1139 = vadd.f32 %v1091, %v1118
        %v1140 = vadd.f32 %v1092, %v1120
        %v1141 = vadd.f32 %v1093, %v1122
        %v1142 = vadd.f32 %v1094, %v1124
        %v1143 = vadd.f32 %v1095, %v1126
        %v1144 = vadd.f32 %v1096, %v1128
        %1145 = vrot.lane.b32.xlu0 %v1049, 125
        %v1146 = vpop.permute.xlu0 %1145
        %1147 = vrot.lane.b32.xlu0 %v1050, 125
        %v1148 = vpop.permute.xlu0 %1147
        %1149 = vrot.lane.b32.xlu0 %v1051, 125
        %v1150 = vpop.permute.xlu0 %1149
        %1151 = vrot.lane.b32.xlu0 %v1052, 125
        %v1152 = vpop.permute.xlu0 %1151
        %1153 = vrot.lane.b32.xlu0 %v1053, 125
        %v1154 = vpop.permute.xlu0 %1153
        %1155 = vrot.lane.b32.xlu0 %v1054, 125
        %v1156 = vpop.permute.xlu0 %1155
        %1157 = vrot.lane.b32.xlu0 %v1055, 125
        %v1158 = vpop.permute.xlu0 %1157
        %1159 = vrot.lane.b32.xlu0 %v1056, 125
        %v1160 = vpop.permute.xlu0 %1159
        %v1169 = vadd.f32 %v1137, %v1146
        %v1170 = vadd.f32 %v1138, %v1148
        %v1171 = vadd.f32 %v1139, %v1150
        %v1172 = vadd.f32 %v1140, %v1152
        %v1173 = vadd.f32 %v1141, %v1154
        %v1174 = vadd.f32 %v1142, %v1156
        %v1175 = vadd.f32 %v1143, %v1158
        %v1176 = vadd.f32 %v1144, %v1160
        %1185 = vrot.lane.b32.xlu0 %v1033, 124
        %v1186 = vpop.permute.xlu0 %1185
        %1187 = vrot.lane.b32.xlu0 %v1034, 124
        %v1188 = vpop.permute.xlu0 %1187
        %1189 = vrot.lane.b32.xlu0 %v1035, 124
        %v1190 = vpop.permute.xlu0 %1189
        %1191 = vrot.lane.b32.xlu0 %v1036, 124
        %v1192 = vpop.permute.xlu0 %1191
        %1193 = vrot.lane.b32.xlu0 %v1037, 124
        %v1194 = vpop.permute.xlu0 %1193
        %1195 = vrot.lane.b32.xlu0 %v1038, 124
        %v1196 = vpop.permute.xlu0 %1195
        %1197 = vrot.lane.b32.xlu0 %v1039, 124
        %v1198 = vpop.permute.xlu0 %1197
        %1199 = vrot.lane.b32.xlu0 %v1040, 124
        %v1200 = vpop.permute.xlu0 %1199
        %v1209 = vadd.f32 %v1169, %v1186
        %v1210 = vadd.f32 %v1170, %v1188
        %v1211 = vadd.f32 %v1171, %v1190
        %v1212 = vadd.f32 %v1172, %v1192
        %v1213 = vadd.f32 %v1173, %v1194
        %v1214 = vadd.f32 %v1174, %v1196
        %v1215 = vadd.f32 %v1175, %v1198
        %v1216 = vadd.f32 %v1176, %v1200
        %v1217 = vld [vmem:[#allocation2 + $0x2] sm:$0xff]
        %v1218 = vld [vmem:[#allocation2 + $0xa] sm:$0xff]
        %v1219 = vld [vmem:[#allocation2 + $0x1a] sm:$0xff]
        %v1220 = vld [vmem:[#allocation2 + $0x22] sm:$0xff]
        %v1221 = vld [vmem:[#allocation2 + $0x32] sm:$0xff]
        %v1222 = vld [vmem:[#allocation2 + $0x3a] sm:$0xff]
        %v1223 = vld [vmem:[#allocation2 + $0x4a] sm:$0xff]
        %v1224 = vld [vmem:[#allocation2 + $0x52] sm:$0xff]
        %v1225 = vmul.f32 %v1217, -2.0
        %v1226 = vmul.f32 %v1218, -2.0
        %v1227 = vmul.f32 %v1219, -2.0
        %v1228 = vmul.f32 %v1220, -2.0
        %v1229 = vmul.f32 %v1221, -2.0
        %v1230 = vmul.f32 %v1222, -2.0
        %v1231 = vmul.f32 %v1223, -2.0
        %v1232 = vmul.f32 %v1224, -2.0
        %v1233 = vadd.f32 %v1209, %v1225
        %v1234 = vadd.f32 %v1210, %v1226
        %v1235 = vadd.f32 %v1211, %v1227
        %v1236 = vadd.f32 %v1212, %v1228
        %v1237 = vadd.f32 %v1213, %v1229
        %v1238 = vadd.f32 %v1214, %v1230
        %v1239 = vadd.f32 %v1215, %v1231
        %v1240 = vadd.f32 %v1216, %v1232
        %v1241 = vmul.f32 %v1217, 8.0
        %v1242 = vmul.f32 %v1218, 8.0
        %v1243 = vmul.f32 %v1219, 8.0
        %v1244 = vmul.f32 %v1220, 8.0
        %v1245 = vmul.f32 %v1221, 8.0
        %v1246 = vmul.f32 %v1222, 8.0
        %v1247 = vmul.f32 %v1223, 8.0
        %v1248 = vmul.f32 %v1224, 8.0
        %1257 = vrot.lane.b32.xlu0 %v1241, 127
        %v1258 = vpop.permute.xlu0 %1257
        %1259 = vrot.lane.b32.xlu0 %v1242, 127
        %v1260 = vpop.permute.xlu0 %1259
        %1261 = vrot.lane.b32.xlu0 %v1243, 127
        %v1262 = vpop.permute.xlu0 %1261
        %1263 = vrot.lane.b32.xlu0 %v1244, 127
        %v1264 = vpop.permute.xlu0 %1263
        %1265 = vrot.lane.b32.xlu0 %v1245, 127
        %v1266 = vpop.permute.xlu0 %1265
        %1267 = vrot.lane.b32.xlu0 %v1246, 127
        %v1268 = vpop.permute.xlu0 %1267
        %1269 = vrot.lane.b32.xlu0 %v1247, 127
        %v1270 = vpop.permute.xlu0 %1269
        %1271 = vrot.lane.b32.xlu0 %v1248, 127
        %v1272 = vpop.permute.xlu0 %1271
        %v1281 = vadd.f32 %v1233, %v1258
        %v1282 = vadd.f32 %v1234, %v1260
        %v1283 = vadd.f32 %v1235, %v1262
        %v1284 = vadd.f32 %v1236, %v1264
        %v1285 = vadd.f32 %v1237, %v1266
        %v1286 = vadd.f32 %v1238, %v1268
        %v1287 = vadd.f32 %v1239, %v1270
        %v1288 = vadd.f32 %v1240, %v1272
        %v1289 = vmul.f32 %v1217, -12.0
        %v1290 = vmul.f32 %v1218, -12.0
        %v1291 = vmul.f32 %v1219, -12.0
        %v1292 = vmul.f32 %v1220, -12.0
        %v1293 = vmul.f32 %v1221, -12.0
        %v1294 = vmul.f32 %v1222, -12.0
        %v1295 = vmul.f32 %v1223, -12.0
        %v1296 = vmul.f32 %v1224, -12.0
        %1305 = vrot.lane.b32.xlu0 %v1289, 126
        %v1306 = vpop.permute.xlu0 %1305
        %1307 = vrot.lane.b32.xlu0 %v1290, 126
        %v1308 = vpop.permute.xlu0 %1307
        %1309 = vrot.lane.b32.xlu0 %v1291, 126
        %v1310 = vpop.permute.xlu0 %1309
        %1311 = vrot.lane.b32.xlu0 %v1292, 126
        %v1312 = vpop.permute.xlu0 %1311
        %1313 = vrot.lane.b32.xlu0 %v1293, 126
        %v1314 = vpop.permute.xlu0 %1313
        %1315 = vrot.lane.b32.xlu0 %v1294, 126
        %v1316 = vpop.permute.xlu0 %1315
        %1317 = vrot.lane.b32.xlu0 %v1295, 126
        %v1318 = vpop.permute.xlu0 %1317
        %1319 = vrot.lane.b32.xlu0 %v1296, 126
        %v1320 = vpop.permute.xlu0 %1319
        %v1329 = vadd.f32 %v1281, %v1306
        %v1330 = vadd.f32 %v1282, %v1308
        %v1331 = vadd.f32 %v1283, %v1310
        %v1332 = vadd.f32 %v1284, %v1312
        %v1333 = vadd.f32 %v1285, %v1314
        %v1334 = vadd.f32 %v1286, %v1316
        %v1335 = vadd.f32 %v1287, %v1318
        %v1336 = vadd.f32 %v1288, %v1320
        %1337 = vrot.lane.b32.xlu0 %v1241, 125
        %v1338 = vpop.permute.xlu0 %1337
        %1339 = vrot.lane.b32.xlu0 %v1242, 125
        %v1340 = vpop.permute.xlu0 %1339
        %1341 = vrot.lane.b32.xlu0 %v1243, 125
        %v1342 = vpop.permute.xlu0 %1341
        %1343 = vrot.lane.b32.xlu0 %v1244, 125
        %v1344 = vpop.permute.xlu0 %1343
        %1345 = vrot.lane.b32.xlu0 %v1245, 125
        %v1346 = vpop.permute.xlu0 %1345
        %1347 = vrot.lane.b32.xlu0 %v1246, 125
        %v1348 = vpop.permute.xlu0 %1347
        %1349 = vrot.lane.b32.xlu0 %v1247, 125
        %v1350 = vpop.permute.xlu0 %1349
        %1351 = vrot.lane.b32.xlu0 %v1248, 125
        %v1352 = vpop.permute.xlu0 %1351
        %v1361 = vadd.f32 %v1329, %v1338
        %v1362 = vadd.f32 %v1330, %v1340
        %v1363 = vadd.f32 %v1331, %v1342
        %v1364 = vadd.f32 %v1332, %v1344
        %v1365 = vadd.f32 %v1333, %v1346
        %v1366 = vadd.f32 %v1334, %v1348
        %v1367 = vadd.f32 %v1335, %v1350
        %v1368 = vadd.f32 %v1336, %v1352
        %1377 = vrot.lane.b32.xlu0 %v1225, 124
        %v1378 = vpop.permute.xlu0 %1377
        %1379 = vrot.lane.b32.xlu0 %v1226, 124
        %v1380 = vpop.permute.xlu0 %1379
        %1381 = vrot.lane.b32.xlu0 %v1227, 124
        %v1382 = vpop.permute.xlu0 %1381
        %1383 = vrot.lane.b32.xlu0 %v1228, 124
        %v1384 = vpop.permute.xlu0 %1383
        %1385 = vrot.lane.b32.xlu0 %v1229, 124
        %v1386 = vpop.permute.xlu0 %1385
        %1387 = vrot.lane.b32.xlu0 %v1230, 124
        %v1388 = vpop.permute.xlu0 %1387
        %1389 = vrot.lane.b32.xlu0 %v1231, 124
        %v1390 = vpop.permute.xlu0 %1389
        %1391 = vrot.lane.b32.xlu0 %v1232, 124
        %v1392 = vpop.permute.xlu0 %1391
        %v1401 = vadd.f32 %v1361, %v1378
        %v1402 = vadd.f32 %v1362, %v1380
        %v1403 = vadd.f32 %v1363, %v1382
        %v1404 = vadd.f32 %v1364, %v1384
        %v1405 = vadd.f32 %v1365, %v1386
        %v1406 = vadd.f32 %v1366, %v1388
        %v1407 = vadd.f32 %v1367, %v1390
        %v1408 = vadd.f32 %v1368, %v1392
        %v1409 = vld [vmem:[#allocation2 + $0x3] sm:$0xff]
        %v1410 = vld [vmem:[#allocation2 + $0xb] sm:$0xff]
        %v1411 = vld [vmem:[#allocation2 + $0x1b] sm:$0xff]
        %v1412 = vld [vmem:[#allocation2 + $0x23] sm:$0xff]
        %v1413 = vld [vmem:[#allocation2 + $0x33] sm:$0xff]
        %v1414 = vld [vmem:[#allocation2 + $0x3b] sm:$0xff]
        %v1415 = vld [vmem:[#allocation2 + $0x4b] sm:$0xff]
        %v1416 = vld [vmem:[#allocation2 + $0x53] sm:$0xff]
        %v1417 = vmul.f32 %v1409, 2.0
        %v1418 = vmul.f32 %v1410, 2.0
        %v1419 = vmul.f32 %v1411, 2.0
        %v1420 = vmul.f32 %v1412, 2.0
        %v1421 = vmul.f32 %v1413, 2.0
        %v1422 = vmul.f32 %v1414, 2.0
        %v1423 = vmul.f32 %v1415, 2.0
        %v1424 = vmul.f32 %v1416, 2.0
        %v1425 = vadd.f32 %v1401, %v1417
        %v1426 = vadd.f32 %v1402, %v1418
        %v1427 = vadd.f32 %v1403, %v1419
        %v1428 = vadd.f32 %v1404, %v1420
        %v1429 = vadd.f32 %v1405, %v1421
        %v1430 = vadd.f32 %v1406, %v1422
        %v1431 = vadd.f32 %v1407, %v1423
        %v1432 = vadd.f32 %v1408, %v1424
        %v1433 = vmul.f32 %v1409, -6.0
        %v1434 = vmul.f32 %v1410, -6.0
        %v1435 = vmul.f32 %v1411, -6.0
        %v1436 = vmul.f32 %v1412, -6.0
        %v1437 = vmul.f32 %v1413, -6.0
        %v1438 = vmul.f32 %v1414, -6.0
        %v1439 = vmul.f32 %v1415, -6.0
        %v1440 = vmul.f32 %v1416, -6.0
        %1449 = vrot.lane.b32.xlu0 %v1433, 127
        %v1450 = vpop.permute.xlu0 %1449
        %1451 = vrot.lane.b32.xlu0 %v1434, 127
        %v1452 = vpop.permute.xlu0 %1451
        %1453 = vrot.lane.b32.xlu0 %v1435, 127
        %v1454 = vpop.permute.xlu0 %1453
        %1455 = vrot.lane.b32.xlu0 %v1436, 127
        %v1456 = vpop.permute.xlu0 %1455
        %1457 = vrot.lane.b32.xlu0 %v1437, 127
        %v1458 = vpop.permute.xlu0 %1457
        %1459 = vrot.lane.b32.xlu0 %v1438, 127
        %v1460 = vpop.permute.xlu0 %1459
        %1461 = vrot.lane.b32.xlu0 %v1439, 127
        %v1462 = vpop.permute.xlu0 %1461
        %1463 = vrot.lane.b32.xlu0 %v1440, 127
        %v1464 = vpop.permute.xlu0 %1463
        %v1473 = vadd.f32 %v1425, %v1450
        %v1474 = vadd.f32 %v1426, %v1452
        %v1475 = vadd.f32 %v1427, %v1454
        %v1476 = vadd.f32 %v1428, %v1456
        %v1477 = vadd.f32 %v1429, %v1458
        %v1478 = vadd.f32 %v1430, %v1460
        %v1479 = vadd.f32 %v1431, %v1462
        %v1480 = vadd.f32 %v1432, %v1464
        %v1481 = vmul.f32 %v1409, 8.0
        %v1482 = vmul.f32 %v1410, 8.0
        %v1483 = vmul.f32 %v1411, 8.0
        %v1484 = vmul.f32 %v1412, 8.0
        %v1485 = vmul.f32 %v1413, 8.0
        %v1486 = vmul.f32 %v1414, 8.0
        %v1487 = vmul.f32 %v1415, 8.0
        %v1488 = vmul.f32 %v1416, 8.0
        %1497 = vrot.lane.b32.xlu0 %v1481, 126
        %v1498 = vpop.permute.xlu0 %1497
        %1499 = vrot.lane.b32.xlu0 %v1482, 126
        %v1500 = vpop.permute.xlu0 %1499
        %1501 = vrot.lane.b32.xlu0 %v1483, 126
        %v1502 = vpop.permute.xlu0 %1501
        %1503 = vrot.lane.b32.xlu0 %v1484, 126
        %v1504 = vpop.permute.xlu0 %1503
        %1505 = vrot.lane.b32.xlu0 %v1485, 126
        %v1506 = vpop.permute.xlu0 %1505
        %1507 = vrot.lane.b32.xlu0 %v1486, 126
        %v1508 = vpop.permute.xlu0 %1507
        %1509 = vrot.lane.b32.xlu0 %v1487, 126
        %v1510 = vpop.permute.xlu0 %1509
        %1511 = vrot.lane.b32.xlu0 %v1488, 126
        %v1512 = vpop.permute.xlu0 %1511
        %v1521 = vadd.f32 %v1473, %v1498
        %v1522 = vadd.f32 %v1474, %v1500
        %v1523 = vadd.f32 %v1475, %v1502
        %v1524 = vadd.f32 %v1476, %v1504
        %v1525 = vadd.f32 %v1477, %v1506
        %v1526 = vadd.f32 %v1478, %v1508
        %v1527 = vadd.f32 %v1479, %v1510
        %v1528 = vadd.f32 %v1480, %v1512
        %1529 = vrot.lane.b32.xlu0 %v1433, 125
        %v1530 = vpop.permute.xlu0 %1529
        %1531 = vrot.lane.b32.xlu0 %v1434, 125
        %v1532 = vpop.permute.xlu0 %1531
        %1533 = vrot.lane.b32.xlu0 %v1435, 125
        %v1534 = vpop.permute.xlu0 %1533
        %1535 = vrot.lane.b32.xlu0 %v1436, 125
        %v1536 = vpop.permute.xlu0 %1535
        %1537 = vrot.lane.b32.xlu0 %v1437, 125
        %v1538 = vpop.permute.xlu0 %1537
        %1539 = vrot.lane.b32.xlu0 %v1438, 125
        %v1540 = vpop.permute.xlu0 %1539
        %1541 = vrot.lane.b32.xlu0 %v1439, 125
        %v1542 = vpop.permute.xlu0 %1541
        %1543 = vrot.lane.b32.xlu0 %v1440, 125
        %v1544 = vpop.permute.xlu0 %1543
        %v1553 = vadd.f32 %v1521, %v1530
        %v1554 = vadd.f32 %v1522, %v1532
        %v1555 = vadd.f32 %v1523, %v1534
        %v1556 = vadd.f32 %v1524, %v1536
        %v1557 = vadd.f32 %v1525, %v1538
        %v1558 = vadd.f32 %v1526, %v1540
        %v1559 = vadd.f32 %v1527, %v1542
        %v1560 = vadd.f32 %v1528, %v1544
        %1569 = vrot.lane.b32.xlu0 %v1417, 124
        %v1570 = vpop.permute.xlu0 %1569
        %1571 = vrot.lane.b32.xlu0 %v1418, 124
        %v1572 = vpop.permute.xlu0 %1571
        %1573 = vrot.lane.b32.xlu0 %v1419, 124
        %v1574 = vpop.permute.xlu0 %1573
        %1575 = vrot.lane.b32.xlu0 %v1420, 124
        %v1576 = vpop.permute.xlu0 %1575
        %1577 = vrot.lane.b32.xlu0 %v1421, 124
        %v1578 = vpop.permute.xlu0 %1577
        %1579 = vrot.lane.b32.xlu0 %v1422, 124
        %v1580 = vpop.permute.xlu0 %1579
        %1581 = vrot.lane.b32.xlu0 %v1423, 124
        %v1582 = vpop.permute.xlu0 %1581
        %1583 = vrot.lane.b32.xlu0 %v1424, 124
        %v1584 = vpop.permute.xlu0 %1583
        %v1593 = vadd.f32 %v1553, %v1570
        %v1594 = vadd.f32 %v1554, %v1572
        %v1595 = vadd.f32 %v1555, %v1574
        %v1596 = vadd.f32 %v1556, %v1576
        %v1597 = vadd.f32 %v1557, %v1578
        %v1598 = vadd.f32 %v1558, %v1580
        %v1599 = vadd.f32 %v1559, %v1582
        %v1600 = vadd.f32 %v1560, %v1584
        %v1601 = vld [vmem:[#allocation2 + $0x4] sm:$0xff]
        %v1602 = vld [vmem:[#allocation2 + $0xc] sm:$0xff]
        %v1603 = vld [vmem:[#allocation2 + $0x1c] sm:$0xff]
        %v1604 = vld [vmem:[#allocation2 + $0x24] sm:$0xff]
        %v1605 = vld [vmem:[#allocation2 + $0x34] sm:$0xff]
        %v1606 = vld [vmem:[#allocation2 + $0x3c] sm:$0xff]
        %v1607 = vld [vmem:[#allocation2 + $0x4c] sm:$0xff]
        %v1608 = vld [vmem:[#allocation2 + $0x54] sm:$0xff]
        %v1609 = vmul.f32 %v1601, -1.0
        %v1610 = vmul.f32 %v1602, -1.0
        %v1611 = vmul.f32 %v1603, -1.0
        %v1612 = vmul.f32 %v1604, -1.0
        %v1613 = vmul.f32 %v1605, -1.0
        %v1614 = vmul.f32 %v1606, -1.0
        %v1615 = vmul.f32 %v1607, -1.0
        %v1616 = vmul.f32 %v1608, -1.0
        %v1617 = vadd.f32 %v1593, %v1609
        %v1618 = vadd.f32 %v1594, %v1610
        %v1619 = vadd.f32 %v1595, %v1611
        %v1620 = vadd.f32 %v1596, %v1612
        %v1621 = vadd.f32 %v1597, %v1613
        %v1622 = vadd.f32 %v1598, %v1614
        %v1623 = vadd.f32 %v1599, %v1615
        %v1624 = vadd.f32 %v1600, %v1616
        %v1625 = vmul.f32 %v1601, 2.0
        %v1626 = vmul.f32 %v1602, 2.0
        %v1627 = vmul.f32 %v1603, 2.0
        %v1628 = vmul.f32 %v1604, 2.0
        %v1629 = vmul.f32 %v1605, 2.0
        %v1630 = vmul.f32 %v1606, 2.0
        %v1631 = vmul.f32 %v1607, 2.0
        %v1632 = vmul.f32 %v1608, 2.0
        %1641 = vrot.lane.b32.xlu0 %v1625, 127
        %v1642 = vpop.permute.xlu0 %1641
        %1643 = vrot.lane.b32.xlu0 %v1626, 127
        %v1644 = vpop.permute.xlu0 %1643
        %1645 = vrot.lane.b32.xlu0 %v1627, 127
        %v1646 = vpop.permute.xlu0 %1645
        %1647 = vrot.lane.b32.xlu0 %v1628, 127
        %v1648 = vpop.permute.xlu0 %1647
        %1649 = vrot.lane.b32.xlu0 %v1629, 127
        %v1650 = vpop.permute.xlu0 %1649
        %1651 = vrot.lane.b32.xlu0 %v1630, 127
        %v1652 = vpop.permute.xlu0 %1651
        %1653 = vrot.lane.b32.xlu0 %v1631, 127
        %v1654 = vpop.permute.xlu0 %1653
        %1655 = vrot.lane.b32.xlu0 %v1632, 127
        %v1656 = vpop.permute.xlu0 %1655
        %v1665 = vadd.f32 %v1617, %v1642
        %v1666 = vadd.f32 %v1618, %v1644
        %v1667 = vadd.f32 %v1619, %v1646
        %v1668 = vadd.f32 %v1620, %v1648
        %v1669 = vadd.f32 %v1621, %v1650
        %v1670 = vadd.f32 %v1622, %v1652
        %v1671 = vadd.f32 %v1623, %v1654
        %v1672 = vadd.f32 %v1624, %v1656
        %v1673 = vmul.f32 %v1601, -2.0
        %v1674 = vmul.f32 %v1602, -2.0
        %v1675 = vmul.f32 %v1603, -2.0
        %v1676 = vmul.f32 %v1604, -2.0
        %v1677 = vmul.f32 %v1605, -2.0
        %v1678 = vmul.f32 %v1606, -2.0
        %v1679 = vmul.f32 %v1607, -2.0
        %v1680 = vmul.f32 %v1608, -2.0
        %1689 = vrot.lane.b32.xlu0 %v1673, 126
        %v1690 = vpop.permute.xlu0 %1689
        %1691 = vrot.lane.b32.xlu0 %v1674, 126
        %v1692 = vpop.permute.xlu0 %1691
        %1693 = vrot.lane.b32.xlu0 %v1675, 126
        %v1694 = vpop.permute.xlu0 %1693
        %1695 = vrot.lane.b32.xlu0 %v1676, 126
        %v1696 = vpop.permute.xlu0 %1695
        %1697 = vrot.lane.b32.xlu0 %v1677, 126
        %v1698 = vpop.permute.xlu0 %1697
        %1699 = vrot.lane.b32.xlu0 %v1678, 126
        %v1700 = vpop.permute.xlu0 %1699
        %1701 = vrot.lane.b32.xlu0 %v1679, 126
        %v1702 = vpop.permute.xlu0 %1701
        %1703 = vrot.lane.b32.xlu0 %v1680, 126
        %v1704 = vpop.permute.xlu0 %1703
        %v1713 = vadd.f32 %v1665, %v1690
        %v1714 = vadd.f32 %v1666, %v1692
        %v1715 = vadd.f32 %v1667, %v1694
        %v1716 = vadd.f32 %v1668, %v1696
        %v1717 = vadd.f32 %v1669, %v1698
        %v1718 = vadd.f32 %v1670, %v1700
        %v1719 = vadd.f32 %v1671, %v1702
        %v1720 = vadd.f32 %v1672, %v1704
        %1721 = vrot.lane.b32.xlu0 %v1625, 125
        %v1722 = vpop.permute.xlu0 %1721
        %1723 = vrot.lane.b32.xlu0 %v1626, 125
        %v1724 = vpop.permute.xlu0 %1723
        %1725 = vrot.lane.b32.xlu0 %v1627, 125
        %v1726 = vpop.permute.xlu0 %1725
        %1727 = vrot.lane.b32.xlu0 %v1628, 125
        %v1728 = vpop.permute.xlu0 %1727
        %1729 = vrot.lane.b32.xlu0 %v1629, 125
        %v1730 = vpop.permute.xlu0 %1729
        %1731 = vrot.lane.b32.xlu0 %v1630, 125
        %v1732 = vpop.permute.xlu0 %1731
        %1733 = vrot.lane.b32.xlu0 %v1631, 125
        %v1734 = vpop.permute.xlu0 %1733
        %1735 = vrot.lane.b32.xlu0 %v1632, 125
        %v1736 = vpop.permute.xlu0 %1735
        %v1745 = vadd.f32 %v1713, %v1722
        %v1746 = vadd.f32 %v1714, %v1724
        %v1747 = vadd.f32 %v1715, %v1726
        %v1748 = vadd.f32 %v1716, %v1728
        %v1749 = vadd.f32 %v1717, %v1730
        %v1750 = vadd.f32 %v1718, %v1732
        %v1751 = vadd.f32 %v1719, %v1734
        %v1752 = vadd.f32 %v1720, %v1736
        %1761 = vrot.lane.b32.xlu0 %v1609, 124
        %v1762 = vpop.permute.xlu0 %1761
        %1763 = vrot.lane.b32.xlu0 %v1610, 124
        %v1764 = vpop.permute.xlu0 %1763
        %1765 = vrot.lane.b32.xlu0 %v1611, 124
        %v1766 = vpop.permute.xlu0 %1765
        %1767 = vrot.lane.b32.xlu0 %v1612, 124
        %v1768 = vpop.permute.xlu0 %1767
        %1769 = vrot.lane.b32.xlu0 %v1613, 124
        %v1770 = vpop.permute.xlu0 %1769
        %1771 = vrot.lane.b32.xlu0 %v1614, 124
        %v1772 = vpop.permute.xlu0 %1771
        %1773 = vrot.lane.b32.xlu0 %v1615, 124
        %v1774 = vpop.permute.xlu0 %1773
        %1775 = vrot.lane.b32.xlu0 %v1616, 124
        %v1776 = vpop.permute.xlu0 %1775
        %v1785 = vadd.f32 %v1745, %v1762
        %v1786 = vadd.f32 %v1746, %v1764
        %v1787 = vadd.f32 %v1747, %v1766
        %v1788 = vadd.f32 %v1748, %v1768
        %v1789 = vadd.f32 %v1749, %v1770
        %v1790 = vadd.f32 %v1750, %v1772
        %v1791 = vadd.f32 %v1751, %v1774
        %v1792 = vadd.f32 %v1752, %v1776
        %1801 = vrot.lane.b32.xlu0 %v1785, 2
        %v1802 = vpop.permute.xlu0 %1801
        %1803 = vrot.lane.b32.xlu0 %v1786, 2
        %v1804 = vpop.permute.xlu0 %1803
        %1805 = vrot.lane.b32.xlu0 %v1787, 2
        %v1806 = vpop.permute.xlu0 %1805
        %1807 = vrot.lane.b32.xlu0 %v1788, 2
        %v1808 = vpop.permute.xlu0 %1807
        %1809 = vrot.lane.b32.xlu0 %v1789, 2
        %v1810 = vpop.permute.xlu0 %1809
        %1811 = vrot.lane.b32.xlu0 %v1790, 2
        %v1812 = vpop.permute.xlu0 %1811
        %1813 = vrot.lane.b32.xlu0 %v1791, 2
        %v1814 = vpop.permute.xlu0 %1813
        %1815 = vrot.lane.b32.xlu0 %v1792, 2
        %v1816 = vpop.permute.xlu0 %1815
        %1825 = vst.msk [vmem:[#allocation2 + $0x2] sm:$0xff] %vm464, %v1802
        %1826 = vst.msk [vmem:[#allocation2 + $0xa] sm:$0xff] %vm464, %v1804
        %1827 = vst.msk [vmem:[#allocation2 + $0x1a] sm:$0xff] %vm464, %v1806
        %1828 = vst.msk [vmem:[#allocation2 + $0x22] sm:$0xff] %vm464, %v1808
        %1829 = vst.msk [vmem:[#allocation2 + $0x32] sm:$0xff] %vm464, %v1810
        %1830 = vst.msk [vmem:[#allocation2 + $0x3a] sm:$0xff] %vm464, %v1812
        %1831 = vst.msk [vmem:[#allocation2 + $0x4a] sm:$0xff] %vm464, %v1814
        %1832 = vst.msk [vmem:[#allocation2 + $0x52] sm:$0xff] %vm464, %v1816
        %v1833 = vld [vmem:[#allocation2 + $0x2] sm:$0xff]
        %v1834 = vld [vmem:[#allocation2 + $0xa] sm:$0xff]
        %v1835 = vld [vmem:[#allocation2 + $0x1a] sm:$0xff]
        %v1836 = vld [vmem:[#allocation2 + $0x22] sm:$0xff]
        %v1837 = vld [vmem:[#allocation2 + $0x32] sm:$0xff]
        %v1838 = vld [vmem:[#allocation2 + $0x3a] sm:$0xff]
        %v1839 = vld [vmem:[#allocation2 + $0x4a] sm:$0xff]
        %v1840 = vld [vmem:[#allocation2 + $0x52] sm:$0xff]
        %v1841 = vmul.f32 %v1833, -2.0
        %v1842 = vmul.f32 %v1834, -2.0
        %v1843 = vmul.f32 %v1835, -2.0
        %v1844 = vmul.f32 %v1836, -2.0
        %v1845 = vmul.f32 %v1837, -2.0
        %v1846 = vmul.f32 %v1838, -2.0
        %v1847 = vmul.f32 %v1839, -2.0
        %v1848 = vmul.f32 %v1840, -2.0
        %1857 = vrot.lane.b32.xlu0 %v1841, 127
        %v1858 = vpop.permute.xlu0 %1857
        %1859 = vrot.lane.b32.xlu0 %v1842, 127
        %v1860 = vpop.permute.xlu0 %1859
        %1861 = vrot.lane.b32.xlu0 %v1843, 127
        %v1862 = vpop.permute.xlu0 %1861
        %1863 = vrot.lane.b32.xlu0 %v1844, 127
        %v1864 = vpop.permute.xlu0 %1863
        %1865 = vrot.lane.b32.xlu0 %v1845, 127
        %v1866 = vpop.permute.xlu0 %1865
        %1867 = vrot.lane.b32.xlu0 %v1846, 127
        %v1868 = vpop.permute.xlu0 %1867
        %1869 = vrot.lane.b32.xlu0 %v1847, 127
        %v1870 = vpop.permute.xlu0 %1869
        %1871 = vrot.lane.b32.xlu0 %v1848, 127
        %v1872 = vpop.permute.xlu0 %1871
        %v1881 = vadd.f32 %v1833, %v1858
        %v1882 = vadd.f32 %v1834, %v1860
        %v1883 = vadd.f32 %v1835, %v1862
        %v1884 = vadd.f32 %v1836, %v1864
        %v1885 = vadd.f32 %v1837, %v1866
        %v1886 = vadd.f32 %v1838, %v1868
        %v1887 = vadd.f32 %v1839, %v1870
        %v1888 = vadd.f32 %v1840, %v1872
        %1897 = vrot.lane.b32.xlu0 %v1833, 126
        %v1898 = vpop.permute.xlu0 %1897
        %1899 = vrot.lane.b32.xlu0 %v1834, 126
        %v1900 = vpop.permute.xlu0 %1899
        %1901 = vrot.lane.b32.xlu0 %v1835, 126
        %v1902 = vpop.permute.xlu0 %1901
        %1903 = vrot.lane.b32.xlu0 %v1836, 126
        %v1904 = vpop.permute.xlu0 %1903
        %1905 = vrot.lane.b32.xlu0 %v1837, 126
        %v1906 = vpop.permute.xlu0 %1905
        %1907 = vrot.lane.b32.xlu0 %v1838, 126
        %v1908 = vpop.permute.xlu0 %1907
        %1909 = vrot.lane.b32.xlu0 %v1839, 126
        %v1910 = vpop.permute.xlu0 %1909
        %1911 = vrot.lane.b32.xlu0 %v1840, 126
        %v1912 = vpop.permute.xlu0 %1911
        %v1921 = vadd.f32 %v1881, %v1898
        %v1922 = vadd.f32 %v1882, %v1900
        %v1923 = vadd.f32 %v1883, %v1902
        %v1924 = vadd.f32 %v1884, %v1904
        %v1925 = vadd.f32 %v1885, %v1906
        %v1926 = vadd.f32 %v1886, %v1908
        %v1927 = vadd.f32 %v1887, %v1910
        %v1928 = vadd.f32 %v1888, %v1912
        %v1929 = vld [vmem:[#allocation6] sm:$0xff]
        %v1930 = vld [vmem:[#allocation6 + $0x8] sm:$0xff]
        %vm1931 = vcmask 130048
        %v1932 = vsel %vm1931, %v424, 0
        %v1934 = vsel %vm1931, %v425, 0
        %v1936 = vsel %vm1931, %v426, 0
        %v1938 = vsel %vm1931, %v427, 0
        %v1940 = vsel %vm1931, %v428, 0
        %v1942 = vsel %vm1931, %v429, 0
        %v1944 = vsel %vm1931, %v430, 0
        %v1946 = vsel %vm1931, %v431, 0
        %1948 = vmatprep.subr.mxu0 0.0
        %1949 = vmatpush1.msra.mxu0 %v1929
        %1950 = vmatprep.subr.mxu0 0.0
        %1951 = vmatpush1.msra.mxu0 %v1930
        %1952 = vmatprep.subr.mxu0 0.0
        %1953 = vmatpush1.msra.mxu0 0.0
        %1954 = vmatprep.subr.mxu0 0.0
        %1955 = vmatpush1.msra.mxu0 0.0
        %1956 = vmatprep.subr.mxu0 0.0
        %1957 = vmatpush1.msra.mxu0 0.0
        %1958 = vmatprep.subr.mxu0 0.0
        %1959 = vmatpush1.msra.mxu0 0.0
        %1960 = vmatprep.subr.mxu0 0.0
        %1961 = vmatpush1.msra.mxu0 0.0
        %1962 = vmatprep.subr.mxu0 0.0
        %1963 = vmatpush1.msra.mxu0 0.0
        %1964 = vmatprep.subr.mxu0 0.0
        %1965 = vmatpush1.msra.mxu0 0.0
        %1966 = vmatprep.subr.mxu0 0.0
        %1967 = vmatpush1.msra.mxu0 0.0
        %1968 = vmatprep.subr.mxu0 0.0
        %1969 = vmatpush1.msra.mxu0 0.0
        %1970 = vmatprep.subr.mxu0 0.0
        %1971 = vmatpush1.msra.mxu0 0.0
        %1972 = vmatprep.subr.mxu0 0.0
        %1973 = vmatpush1.msra.mxu0 0.0
        %1974 = vmatprep.subr.mxu0 0.0
        %1975 = vmatpush1.msra.mxu0 0.0
        %1976 = vmatprep.subr.mxu0 0.0
        %1977 = vmatpush1.msra.mxu0 0.0
        %1978 = vmatprep.subr.mxu0 0.0
        %1979 = vmatpush1.msra.mxu0 0.0
        %1980 = vmatprep.subr.mxu0 0.0
        %1981 = vmatpush1.msra.mxu0 0.0
        %1982 = vmatprep.subr.mxu0 0.0
        %1983 = vmatpush1.msra.mxu0 0.0
        %1984 = vmatprep.subr.mxu0 0.0
        %1985 = vmatpush1.msra.mxu0 0.0
        %1986 = vmatprep.subr.mxu0 0.0
        %1987 = vmatpush1.msra.mxu0 0.0
        %1988 = vmatprep.subr.mxu0 0.0
        %1989 = vmatpush1.msra.mxu0 0.0
        %1990 = vmatprep.subr.mxu0 0.0
        %1991 = vmatpush1.msra.mxu0 0.0
        %1992 = vmatprep.subr.mxu0 0.0
        %1993 = vmatpush1.msra.mxu0 0.0
        %1994 = vmatprep.subr.mxu0 0.0
        %1995 = vmatpush1.msra.mxu0 0.0
        %1996 = vmatprep.subr.mxu0 0.0
        %1997 = vmatpush1.msra.mxu0 0.0
        %1998 = vmatprep.subr.mxu0 0.0
        %1999 = vmatpush1.msra.mxu0 0.0
        %2000 = vmatprep.subr.mxu0 0.0
        %2001 = vmatpush1.msra.mxu0 0.0
        %2002 = vmatprep.subr.mxu0 0.0
        %2003 = vmatpush1.msra.mxu0 0.0
        %2004 = vmatprep.subr.mxu0 0.0
        %2005 = vmatpush1.msra.mxu0 0.0
        %2006 = vmatprep.subr.mxu0 0.0
        %2007 = vmatpush1.msra.mxu0 0.0
        %2008 = vmatprep.subr.mxu0 0.0
        %2009 = vmatpush1.msra.mxu0 0.0
        %2010 = vmatprep.subr.mxu0 0.0
        %2011 = vmatpush1.msra.mxu0 0.0
        %2012 = vmatprep.mubr.f32.mxu0 0.0
        %2013 = vmatmul.mubr.f32.gmra.mrb[0].mxu0 %v1932
        %v2014 = vpop.f32.mrb[0].mxu0
        %v2015 = vadd.f32 0.0, %v2014
        %v2016 = vpop.f32.mrb[0].mxu0
        %2017 = vmatprep.mubr.f32.mxu0 0.0
        %2018 = vmatmul.mubr.f32.gmra.mrb[0].mxu0 %v1934
        %v2019 = vpop.f32.mrb[0].mxu0
        %v2020 = vadd.f32 0.0, %v2019
        %v2021 = vpop.f32.mrb[0].mxu0
        %2022 = vmatprep.mubr.f32.mxu0 0.0
        %2023 = vmatmul.mubr.f32.gmra.mrb[0].mxu0 %v1936
        %v2024 = vpop.f32.mrb[0].mxu0
        %v2025 = vadd.f32 0.0, %v2024
        %v2026 = vpop.f32.mrb[0].mxu0
        %2027 = vmatprep.mubr.f32.mxu0 0.0
        %2028 = vmatmul.mubr.f32.gmra.mrb[0].mxu0 %v1938
        %v2029 = vpop.f32.mrb[0].mxu0
        %v2030 = vadd.f32 0.0, %v2029
        %v2031 = vpop.f32.mrb[0].mxu0
        %2032 = vmatprep.mubr.f32.mxu0 0.0
        %2033 = vmatmul.mubr.f32.gmra.mrb[0].mxu0 %v1940
        %v2034 = vpop.f32.mrb[0].mxu0
        %v2035 = vadd.f32 0.0, %v2034
        %v2036 = vpop.f32.mrb[0].mxu0
        %2037 = vmatprep.mubr.f32.mxu0 0.0
        %2038 = vmatmul.mubr.f32.gmra.mrb[0].mxu0 %v1942
        %v2039 = vpop.f32.mrb[0].mxu0
        %v2040 = vadd.f32 0.0, %v2039
        %v2041 = vpop.f32.mrb[0].mxu0
        %2042 = vmatprep.mubr.f32.mxu0 0.0
        %2043 = vmatmul.mubr.f32.gmra.mrb[0].mxu0 %v1944
        %v2044 = vpop.f32.mrb[0].mxu0
        %v2045 = vadd.f32 0.0, %v2044
        %v2046 = vpop.f32.mrb[0].mxu0
        %2047 = vmatprep.mubr.f32.mxu0 0.0
        %2048 = vmatmul.mubr.f32.gmra.mrb[0].mxu0 %v1946
        %v2049 = vpop.f32.mrb[0].mxu0
        %v2050 = vadd.f32 0.0, %v2049
        %v2051 = vpop.f32.mrb[0].mxu0
        %2052 = vdwg.mxu0
        %v2053 = vld [vmem:[#allocation8] sm:$0xff]
        %v2054 = vld [vmem:[#allocation8 + $0x8] sm:$0xff]
        %2055 = vmatprep.subr.mxu0 0.0
        %2056 = vmatpush1.msra.mxu0 %v2053
        %2057 = vmatprep.subr.mxu0 0.0
        %2058 = vmatpush1.msra.mxu0 %v2054
        %2059 = vmatprep.subr.mxu0 0.0
        %2060 = vmatpush1.msra.mxu0 0.0
        %2061 = vmatprep.subr.mxu0 0.0
        %2062 = vmatpush1.msra.mxu0 0.0
        %2063 = vmatprep.subr.mxu0 0.0
        %2064 = vmatpush1.msra.mxu0 0.0
        %2065 = vmatprep.subr.mxu0 0.0
        %2066 = vmatpush1.msra.mxu0 0.0
        %2067 = vmatprep.subr.mxu0 0.0
        %2068 = vmatpush1.msra.mxu0 0.0
        %2069 = vmatprep.subr.mxu0 0.0
        %2070 = vmatpush1.msra.mxu0 0.0
        %2071 = vmatprep.subr.mxu0 0.0
        %2072 = vmatpush1.msra.mxu0 0.0
        %2073 = vmatprep.subr.mxu0 0.0
        %2074 = vmatpush1.msra.mxu0 0.0
        %2075 = vmatprep.subr.mxu0 0.0
        %2076 = vmatpush1.msra.mxu0 0.0
        %2077 = vmatprep.subr.mxu0 0.0
        %2078 = vmatpush1.msra.mxu0 0.0
        %2079 = vmatprep.subr.mxu0 0.0
        %2080 = vmatpush1.msra.mxu0 0.0
        %2081 = vmatprep.subr.mxu0 0.0
        %2082 = vmatpush1.msra.mxu0 0.0
        %2083 = vmatprep.subr.mxu0 0.0
        %2084 = vmatpush1.msra.mxu0 0.0
        %2085 = vmatprep.subr.mxu0 0.0
        %2086 = vmatpush1.msra.mxu0 0.0
        %2087 = vmatprep.subr.mxu0 0.0
        %2088 = vmatpush1.msra.mxu0 0.0
        %2089 = vmatprep.subr.mxu0 0.0
        %2090 = vmatpush1.msra.mxu0 0.0
        %2091 = vmatprep.subr.mxu0 0.0
        %2092 = vmatpush1.msra.mxu0 0.0
        %2093 = vmatprep.subr.mxu0 0.0
        %2094 = vmatpush1.msra.mxu0 0.0
        %2095 = vmatprep.subr.mxu0 0.0
        %2096 = vmatpush1.msra.mxu0 0.0
        %2097 = vmatprep.subr.mxu0 0.0
        %2098 = vmatpush1.msra.mxu0 0.0
        %2099 = vmatprep.subr.mxu0 0.0
        %2100 = vmatpush1.msra.mxu0 0.0
        %2101 = vmatprep.subr.mxu0 0.0
        %2102 = vmatpush1.msra.mxu0 0.0
        %2103 = vmatprep.subr.mxu0 0.0
        %2104 = vmatpush1.msra.mxu0 0.0
        %2105 = vmatprep.subr.mxu0 0.0
        %2106 = vmatpush1.msra.mxu0 0.0
        %2107 = vmatprep.subr.mxu0 0.0
        %2108 = vmatpush1.msra.mxu0 0.0
        %2109 = vmatprep.subr.mxu0 0.0
        %2110 = vmatpush1.msra.mxu0 0.0
        %2111 = vmatprep.subr.mxu0 0.0
        %2112 = vmatpush1.msra.mxu0 0.0
        %2113 = vmatprep.subr.mxu0 0.0
        %2114 = vmatpush1.msra.mxu0 0.0
        %2115 = vmatprep.subr.mxu0 0.0
        %2116 = vmatpush1.msra.mxu0 0.0
        %2117 = vmatprep.subr.mxu0 0.0
        %2118 = vmatpush1.msra.mxu0 0.0
        %2119 = vmatprep.mubr.f32.mxu0 0.0
        %2120 = vmatmul.mubr.f32.gmra.mrb[0].mxu0 %v1932
        %v2121 = vpop.f32.mrb[0].mxu0
        %v2122 = vadd.f32 0.0, %v2121
        %v2123 = vpop.f32.mrb[0].mxu0
        %2124 = vmatprep.mubr.f32.mxu0 0.0
        %2125 = vmatmul.mubr.f32.gmra.mrb[0].mxu0 %v1934
        %v2126 = vpop.f32.mrb[0].mxu0
        %v2127 = vadd.f32 0.0, %v2126
        %v2128 = vpop.f32.mrb[0].mxu0
        %2129 = vmatprep.mubr.f32.mxu0 0.0
        %2130 = vmatmul.mubr.f32.gmra.mrb[0].mxu0 %v1936
        %v2131 = vpop.f32.mrb[0].mxu0
        %v2132 = vadd.f32 0.0, %v2131
        %v2133 = vpop.f32.mrb[0].mxu0
        %2134 = vmatprep.mubr.f32.mxu0 0.0
        %2135 = vmatmul.mubr.f32.gmra.mrb[0].mxu0 %v1938
        %v2136 = vpop.f32.mrb[0].mxu0
        %v2137 = vadd.f32 0.0, %v2136
        %v2138 = vpop.f32.mrb[0].mxu0
        %2139 = vmatprep.mubr.f32.mxu0 0.0
        %2140 = vmatmul.mubr.f32.gmra.mrb[0].mxu0 %v1940
        %v2141 = vpop.f32.mrb[0].mxu0
        %v2142 = vadd.f32 0.0, %v2141
        %v2143 = vpop.f32.mrb[0].mxu0
        %2144 = vmatprep.mubr.f32.mxu0 0.0
        %2145 = vmatmul.mubr.f32.gmra.mrb[0].mxu0 %v1942
        %v2146 = vpop.f32.mrb[0].mxu0
        %v2147 = vadd.f32 0.0, %v2146
        %v2148 = vpop.f32.mrb[0].mxu0
        %2149 = vmatprep.mubr.f32.mxu0 0.0
        %2150 = vmatmul.mubr.f32.gmra.mrb[0].mxu0 %v1944
        %v2151 = vpop.f32.mrb[0].mxu0
        %v2152 = vadd.f32 0.0, %v2151
        %v2153 = vpop.f32.mrb[0].mxu0
        %2154 = vmatprep.mubr.f32.mxu0 0.0
        %2155 = vmatmul.mubr.f32.gmra.mrb[0].mxu0 %v1946
        %v2156 = vpop.f32.mrb[0].mxu0
        %v2157 = vadd.f32 0.0, %v2156
        %v2158 = vpop.f32.mrb[0].mxu0
        %2159 = vdwg.mxu0
        %2160 = vxpose.xlu0.b32.start [1/16] %v2015, 128
        %2161 = vxpose.xlu0.b32.cont [2/16] %v2020, 128
        %2162 = vxpose.xlu0.b32.cont [3/16] 0.0, 128
        %2163 = vxpose.xlu0.b32.cont [4/16] 0.0, 128
        %2164 = vxpose.xlu0.b32.cont [5/16] 0.0, 128
        %2165 = vxpose.xlu0.b32.cont [6/16] 0.0, 128
        %2166 = vxpose.xlu0.b32.cont [7/16] 0.0, 128
        %2167 = vxpose.xlu0.b32.cont [8/16] 0.0, 128
        %2168 = vxpose.xlu0.b32.cont [9/16] 0.0, 128
        %2169 = vxpose.xlu0.b32.cont [10/16] 0.0, 128
        %2170 = vxpose.xlu0.b32.cont [11/16] 0.0, 128
        %2171 = vxpose.xlu0.b32.cont [12/16] 0.0, 128
        %2172 = vxpose.xlu0.b32.cont [13/16] 0.0, 128
        %2173 = vxpose.xlu0.b32.cont [14/16] 0.0, 128
        %2174 = vxpose.xlu0.b32.cont [15/16] 0.0, 128
        %2175 = vxpose.xlu0.b32.end [16/16] 0.0, 128
        %v2176 = vpop.trf.xlu0
        %v2177 = vpop.trf.xlu0
        %v2178 = vpop.trf.xlu0
        %v2179 = vpop.trf.xlu0
        %v2180 = vpop.trf.xlu0
        %v2181 = vpop.trf.xlu0
        %v2182 = vpop.trf.xlu0
        %v2183 = vpop.trf.xlu0
        %v2184 = vpop.trf.xlu0
        %v2185 = vpop.trf.xlu0
        %v2186 = vpop.trf.xlu0
        %v2187 = vpop.trf.xlu0
        %v2188 = vpop.trf.xlu0
        %v2189 = vpop.trf.xlu0
        %v2190 = vpop.trf.xlu0
        %v2191 = vpop.trf.xlu0
        %2192 = vxpose.xlu0.b32.start [1/16] %v2025, 128
        %2193 = vxpose.xlu0.b32.cont [2/16] %v2030, 128
        %2194 = vxpose.xlu0.b32.cont [3/16] 0.0, 128
        %2195 = vxpose.xlu0.b32.cont [4/16] 0.0, 128
        %2196 = vxpose.xlu0.b32.cont [5/16] 0.0, 128
        %2197 = vxpose.xlu0.b32.cont [6/16] 0.0, 128
        %2198 = vxpose.xlu0.b32.cont [7/16] 0.0, 128
        %2199 = vxpose.xlu0.b32.cont [8/16] 0.0, 128
        %2200 = vxpose.xlu0.b32.cont [9/16] 0.0, 128
        %2201 = vxpose.xlu0.b32.cont [10/16] 0.0, 128
        %2202 = vxpose.xlu0.b32.cont [11/16] 0.0, 128
        %2203 = vxpose.xlu0.b32.cont [12/16] 0.0, 128
        %2204 = vxpose.xlu0.b32.cont [13/16] 0.0, 128
        %2205 = vxpose.xlu0.b32.cont [14/16] 0.0, 128
        %2206 = vxpose.xlu0.b32.cont [15/16] 0.0, 128
        %2207 = vxpose.xlu0.b32.end [16/16] 0.0, 128
        %v2208 = vpop.trf.xlu0
        %v2209 = vpop.trf.xlu0
        %v2210 = vpop.trf.xlu0
        %v2211 = vpop.trf.xlu0
        %v2212 = vpop.trf.xlu0
        %v2213 = vpop.trf.xlu0
        %v2214 = vpop.trf.xlu0
        %v2215 = vpop.trf.xlu0
        %v2216 = vpop.trf.xlu0
        %v2217 = vpop.trf.xlu0
        %v2218 = vpop.trf.xlu0
        %v2219 = vpop.trf.xlu0
        %v2220 = vpop.trf.xlu0
        %v2221 = vpop.trf.xlu0
        %v2222 = vpop.trf.xlu0
        %v2223 = vpop.trf.xlu0
        %2224 = vxpose.xlu0.b32.start [1/16] %v2035, 128
        %2225 = vxpose.xlu0.b32.cont [2/16] %v2040, 128
        %2226 = vxpose.xlu0.b32.cont [3/16] 0.0, 128
        %2227 = vxpose.xlu0.b32.cont [4/16] 0.0, 128
        %2228 = vxpose.xlu0.b32.cont [5/16] 0.0, 128
        %2229 = vxpose.xlu0.b32.cont [6/16] 0.0, 128
        %2230 = vxpose.xlu0.b32.cont [7/16] 0.0, 128
        %2231 = vxpose.xlu0.b32.cont [8/16] 0.0, 128
        %2232 = vxpose.xlu0.b32.cont [9/16] 0.0, 128
        %2233 = vxpose.xlu0.b32.cont [10/16] 0.0, 128
        %2234 = vxpose.xlu0.b32.cont [11/16] 0.0, 128
        %2235 = vxpose.xlu0.b32.cont [12/16] 0.0, 128
        %2236 = vxpose.xlu0.b32.cont [13/16] 0.0, 128
        %2237 = vxpose.xlu0.b32.cont [14/16] 0.0, 128
        %2238 = vxpose.xlu0.b32.cont [15/16] 0.0, 128
        %2239 = vxpose.xlu0.b32.end [16/16] 0.0, 128
        %v2240 = vpop.trf.xlu0
        %v2241 = vpop.trf.xlu0
        %v2242 = vpop.trf.xlu0
        %v2243 = vpop.trf.xlu0
        %v2244 = vpop.trf.xlu0
        %v2245 = vpop.trf.xlu0
        %v2246 = vpop.trf.xlu0
        %v2247 = vpop.trf.xlu0
        %v2248 = vpop.trf.xlu0
        %v2249 = vpop.trf.xlu0
        %v2250 = vpop.trf.xlu0
        %v2251 = vpop.trf.xlu0
        %v2252 = vpop.trf.xlu0
        %v2253 = vpop.trf.xlu0
        %v2254 = vpop.trf.xlu0
        %v2255 = vpop.trf.xlu0
        %2256 = vxpose.xlu0.b32.start [1/16] %v2045, 128
        %2257 = vxpose.xlu0.b32.cont [2/16] %v2050, 128
        %2258 = vxpose.xlu0.b32.cont [3/16] 0.0, 128
        %2259 = vxpose.xlu0.b32.cont [4/16] 0.0, 128
        %2260 = vxpose.xlu0.b32.cont [5/16] 0.0, 128
        %2261 = vxpose.xlu0.b32.cont [6/16] 0.0, 128
        %2262 = vxpose.xlu0.b32.cont [7/16] 0.0, 128
        %2263 = vxpose.xlu0.b32.cont [8/16] 0.0, 128
        %2264 = vxpose.xlu0.b32.cont [9/16] 0.0, 128
        %2265 = vxpose.xlu0.b32.cont [10/16] 0.0, 128
        %2266 = vxpose.xlu0.b32.cont [11/16] 0.0, 128
        %2267 = vxpose.xlu0.b32.cont [12/16] 0.0, 128
        %2268 = vxpose.xlu0.b32.cont [13/16] 0.0, 128
        %2269 = vxpose.xlu0.b32.cont [14/16] 0.0, 128
        %2270 = vxpose.xlu0.b32.cont [15/16] 0.0, 128
        %2271 = vxpose.xlu0.b32.end [16/16] 0.0, 128
        %v2272 = vpop.trf.xlu0
        %v2273 = vpop.trf.xlu0
        %v2274 = vpop.trf.xlu0
        %v2275 = vpop.trf.xlu0
        %v2276 = vpop.trf.xlu0
        %v2277 = vpop.trf.xlu0
        %v2278 = vpop.trf.xlu0
        %v2279 = vpop.trf.xlu0
        %v2280 = vpop.trf.xlu0
        %v2281 = vpop.trf.xlu0
        %v2282 = vpop.trf.xlu0
        %v2283 = vpop.trf.xlu0
        %v2284 = vpop.trf.xlu0
        %v2285 = vpop.trf.xlu0
        %v2286 = vpop.trf.xlu0
        %v2287 = vpop.trf.xlu0
        %2288 = vxpose.xlu0.b32.start [1/16] %v2122, 128
        %2289 = vxpose.xlu0.b32.cont [2/16] %v2127, 128
        %2290 = vxpose.xlu0.b32.cont [3/16] 0.0, 128
        %2291 = vxpose.xlu0.b32.cont [4/16] 0.0, 128
        %2292 = vxpose.xlu0.b32.cont [5/16] 0.0, 128
        %2293 = vxpose.xlu0.b32.cont [6/16] 0.0, 128
        %2294 = vxpose.xlu0.b32.cont [7/16] 0.0, 128
        %2295 = vxpose.xlu0.b32.cont [8/16] 0.0, 128
        %2296 = vxpose.xlu0.b32.cont [9/16] 0.0, 128
        %2297 = vxpose.xlu0.b32.cont [10/16] 0.0, 128
        %2298 = vxpose.xlu0.b32.cont [11/16] 0.0, 128
        %2299 = vxpose.xlu0.b32.cont [12/16] 0.0, 128
        %2300 = vxpose.xlu0.b32.cont [13/16] 0.0, 128
        %2301 = vxpose.xlu0.b32.cont [14/16] 0.0, 128
        %2302 = vxpose.xlu0.b32.cont [15/16] 0.0, 128
        %2303 = vxpose.xlu0.b32.end [16/16] 0.0, 128
        %v2304 = vpop.trf.xlu0
        %v2305 = vpop.trf.xlu0
        %v2306 = vpop.trf.xlu0
        %v2307 = vpop.trf.xlu0
        %v2308 = vpop.trf.xlu0
        %v2309 = vpop.trf.xlu0
        %v2310 = vpop.trf.xlu0
        %v2311 = vpop.trf.xlu0
        %v2312 = vpop.trf.xlu0
        %v2313 = vpop.trf.xlu0
        %v2314 = vpop.trf.xlu0
        %v2315 = vpop.trf.xlu0
        %v2316 = vpop.trf.xlu0
        %v2317 = vpop.trf.xlu0
        %v2318 = vpop.trf.xlu0
        %v2319 = vpop.trf.xlu0
        %2320 = vxpose.xlu0.b32.start [1/16] %v2132, 128
        %2321 = vxpose.xlu0.b32.cont [2/16] %v2137, 128
        %2322 = vxpose.xlu0.b32.cont [3/16] 0.0, 128
        %2323 = vxpose.xlu0.b32.cont [4/16] 0.0, 128
        %2324 = vxpose.xlu0.b32.cont [5/16] 0.0, 128
        %2325 = vxpose.xlu0.b32.cont [6/16] 0.0, 128
        %2326 = vxpose.xlu0.b32.cont [7/16] 0.0, 128
        %2327 = vxpose.xlu0.b32.cont [8/16] 0.0, 128
        %2328 = vxpose.xlu0.b32.cont [9/16] 0.0, 128
        %2329 = vxpose.xlu0.b32.cont [10/16] 0.0, 128
        %2330 = vxpose.xlu0.b32.cont [11/16] 0.0, 128
        %2331 = vxpose.xlu0.b32.cont [12/16] 0.0, 128
        %2332 = vxpose.xlu0.b32.cont [13/16] 0.0, 128
        %2333 = vxpose.xlu0.b32.cont [14/16] 0.0, 128
        %2334 = vxpose.xlu0.b32.cont [15/16] 0.0, 128
        %2335 = vxpose.xlu0.b32.end [16/16] 0.0, 128
        %v2336 = vpop.trf.xlu0
        %v2337 = vpop.trf.xlu0
        %v2338 = vpop.trf.xlu0
        %v2339 = vpop.trf.xlu0
        %v2340 = vpop.trf.xlu0
        %v2341 = vpop.trf.xlu0
        %v2342 = vpop.trf.xlu0
        %v2343 = vpop.trf.xlu0
        %v2344 = vpop.trf.xlu0
        %v2345 = vpop.trf.xlu0
        %v2346 = vpop.trf.xlu0
        %v2347 = vpop.trf.xlu0
        %v2348 = vpop.trf.xlu0
        %v2349 = vpop.trf.xlu0
        %v2350 = vpop.trf.xlu0
        %v2351 = vpop.trf.xlu0
        %2352 = vxpose.xlu0.b32.start [1/16] %v2142, 128
        %2353 = vxpose.xlu0.b32.cont [2/16] %v2147, 128
        %2354 = vxpose.xlu0.b32.cont [3/16] 0.0, 128
        %2355 = vxpose.xlu0.b32.cont [4/16] 0.0, 128
        %2356 = vxpose.xlu0.b32.cont [5/16] 0.0, 128
        %2357 = vxpose.xlu0.b32.cont [6/16] 0.0, 128
        %2358 = vxpose.xlu0.b32.cont [7/16] 0.0, 128
        %2359 = vxpose.xlu0.b32.cont [8/16] 0.0, 128
        %2360 = vxpose.xlu0.b32.cont [9/16] 0.0, 128
        %2361 = vxpose.xlu0.b32.cont [10/16] 0.0, 128
        %2362 = vxpose.xlu0.b32.cont [11/16] 0.0, 128
        %2363 = vxpose.xlu0.b32.cont [12/16] 0.0, 128
        %2364 = vxpose.xlu0.b32.cont [13/16] 0.0, 128
        %2365 = vxpose.xlu0.b32.cont [14/16] 0.0, 128
        %2366 = vxpose.xlu0.b32.cont [15/16] 0.0, 128
        %2367 = vxpose.xlu0.b32.end [16/16] 0.0, 128
        %v2368 = vpop.trf.xlu0
        %v2369 = vpop.trf.xlu0
        %v2370 = vpop.trf.xlu0
        %v2371 = vpop.trf.xlu0
        %v2372 = vpop.trf.xlu0
        %v2373 = vpop.trf.xlu0
        %v2374 = vpop.trf.xlu0
        %v2375 = vpop.trf.xlu0
        %v2376 = vpop.trf.xlu0
        %v2377 = vpop.trf.xlu0
        %v2378 = vpop.trf.xlu0
        %v2379 = vpop.trf.xlu0
        %v2380 = vpop.trf.xlu0
        %v2381 = vpop.trf.xlu0
        %v2382 = vpop.trf.xlu0
        %v2383 = vpop.trf.xlu0
        %2384 = vxpose.xlu0.b32.start [1/16] %v2152, 128
        %2385 = vxpose.xlu0.b32.cont [2/16] %v2157, 128
        %2386 = vxpose.xlu0.b32.cont [3/16] 0.0, 128
        %2387 = vxpose.xlu0.b32.cont [4/16] 0.0, 128
        %2388 = vxpose.xlu0.b32.cont [5/16] 0.0, 128
        %2389 = vxpose.xlu0.b32.cont [6/16] 0.0, 128
        %2390 = vxpose.xlu0.b32.cont [7/16] 0.0, 128
        %2391 = vxpose.xlu0.b32.cont [8/16] 0.0, 128
        %2392 = vxpose.xlu0.b32.cont [9/16] 0.0, 128
        %2393 = vxpose.xlu0.b32.cont [10/16] 0.0, 128
        %2394 = vxpose.xlu0.b32.cont [11/16] 0.0, 128
        %2395 = vxpose.xlu0.b32.cont [12/16] 0.0, 128
        %2396 = vxpose.xlu0.b32.cont [13/16] 0.0, 128
        %2397 = vxpose.xlu0.b32.cont [14/16] 0.0, 128
        %2398 = vxpose.xlu0.b32.cont [15/16] 0.0, 128
        %2399 = vxpose.xlu0.b32.end [16/16] 0.0, 128
        %v2400 = vpop.trf.xlu0
        %v2401 = vpop.trf.xlu0
        %v2402 = vpop.trf.xlu0
        %v2403 = vpop.trf.xlu0
        %v2404 = vpop.trf.xlu0
        %v2405 = vpop.trf.xlu0
        %v2406 = vpop.trf.xlu0
        %v2407 = vpop.trf.xlu0
        %v2408 = vpop.trf.xlu0
        %v2409 = vpop.trf.xlu0
        %v2410 = vpop.trf.xlu0
        %v2411 = vpop.trf.xlu0
        %v2412 = vpop.trf.xlu0
        %v2413 = vpop.trf.xlu0
        %v2414 = vpop.trf.xlu0
        %v2415 = vpop.trf.xlu0
        %v2416 = vld [vmem:[#allocation11] sm:$0xff]
        %v2417 = vld [vmem:[#allocation11 + $0x8] sm:$0xff]
        %v2426 = vcombine.high %v2176, %v2176
        %v2428 = vunpack.c.l.s4 1966171168
        %v2429 = vunpack.c.0.s8 %v2428
        %v2430 = vlaneseq
        %v2431 = vshrl.u32 %v2430, 7
        %v2432 = vsub.s32 %v2429, %v2431
        %v2433 = vrot.slane %v2176, %v2432
        %v2435 = vunpack.c.l.s4 1966171168
        %v2436 = vunpack.c.0.s8 %v2435
        %v2437 = vlaneseq
        %v2438 = vshrl.u32 %v2437, 7
        %v2439 = vsub.s32 %v2436, %v2438
        %v2440 = vrot.slane %v2426, %v2439
        %v2441 = vcombine.high %v2433, %v2433
        %v2442 = vcombine.high %v2440, %v2440
        %v2444 = vunpack.c.l.s4 1966171168
        %v2445 = vunpack.c.0.s8 %v2444
        %v2446 = vlaneseq
        %v2447 = vshrl.u32 %v2446, 7
        %v2448 = vsub.s32 %v2445, %v2447
        %v2449 = vrot.slane %v2433, %v2448
        %v2451 = vunpack.c.l.s4 1966171168
        %v2452 = vunpack.c.0.s8 %v2451
        %v2453 = vlaneseq
        %v2454 = vshrl.u32 %v2453, 7
        %v2455 = vsub.s32 %v2452, %v2454
        %v2456 = vrot.slane %v2440, %v2455
        %v2458 = vunpack.c.l.s4 1966171168
        %v2459 = vunpack.c.0.s8 %v2458
        %v2460 = vlaneseq
        %v2461 = vshrl.u32 %v2460, 7
        %v2462 = vsub.s32 %v2459, %v2461
        %v2463 = vrot.slane %v2441, %v2462
        %v2465 = vunpack.c.l.s4 1966171168
        %v2466 = vunpack.c.0.s8 %v2465
        %v2467 = vlaneseq
        %v2468 = vshrl.u32 %v2467, 7
        %v2469 = vsub.s32 %v2466, %v2468
        %v2470 = vrot.slane %v2442, %v2469
        %v2471 = vcombine.high %v2449, %v2449
        %v2472 = vcombine.high %v2456, %v2456
        %v2473 = vcombine.high %v2463, %v2463
        %v2474 = vcombine.high %v2470, %v2470
        %v2476 = vunpack.c.l.s4 1966171168
        %v2477 = vunpack.c.0.s8 %v2476
        %v2478 = vlaneseq
        %v2479 = vshrl.u32 %v2478, 7
        %v2480 = vsub.s32 %v2477, %v2479
        %v2481 = vrot.slane %v2177, %v2480
        %v2482 = vcombine.high %v2481, %v2481
        %v2484 = vunpack.c.l.s4 1966171168
        %v2485 = vunpack.c.0.s8 %v2484
        %v2486 = vlaneseq
        %v2487 = vshrl.u32 %v2486, 7
        %v2488 = vsub.s32 %v2485, %v2487
        %v2489 = vrot.slane %v2481, %v2488
        %v2491 = vunpack.c.l.s4 1966171168
        %v2492 = vunpack.c.0.s8 %v2491
        %v2493 = vlaneseq
        %v2494 = vshrl.u32 %v2493, 7
        %v2495 = vsub.s32 %v2492, %v2494
        %v2496 = vrot.slane %v2482, %v2495
        %v2497 = vcombine.high %v2489, %v2489
        %v2498 = vcombine.high %v2208, %v2208
        %v2500 = vunpack.c.l.s4 1966171168
        %v2501 = vunpack.c.0.s8 %v2500
        %v2502 = vlaneseq
        %v2503 = vshrl.u32 %v2502, 7
        %v2504 = vsub.s32 %v2501, %v2503
        %v2505 = vrot.slane %v2208, %v2504
        %v2507 = vunpack.c.l.s4 1966171168
        %v2508 = vunpack.c.0.s8 %v2507
        %v2509 = vlaneseq
        %v2510 = vshrl.u32 %v2509, 7
        %v2511 = vsub.s32 %v2508, %v2510
        %v2512 = vrot.slane %v2498, %v2511
        %v2513 = vcombine.high %v2505, %v2505
        %v2514 = vcombine.high %v2512, %v2512
        %v2516 = vunpack.c.l.s4 1966171168
        %v2517 = vunpack.c.0.s8 %v2516
        %v2518 = vlaneseq
        %v2519 = vshrl.u32 %v2518, 7
        %v2520 = vsub.s32 %v2517, %v2519
        %v2521 = vrot.slane %v2505, %v2520
        %v2523 = vunpack.c.l.s4 1966171168
        %v2524 = vunpack.c.0.s8 %v2523
        %v2525 = vlaneseq
        %v2526 = vshrl.u32 %v2525, 7
        %v2527 = vsub.s32 %v2524, %v2526
        %v2528 = vrot.slane %v2512, %v2527
        %v2530 = vunpack.c.l.s4 1966171168
        %v2531 = vunpack.c.0.s8 %v2530
        %v2532 = vlaneseq
        %v2533 = vshrl.u32 %v2532, 7
        %v2534 = vsub.s32 %v2531, %v2533
        %v2535 = vrot.slane %v2513, %v2534
        %v2537 = vunpack.c.l.s4 1966171168
        %v2538 = vunpack.c.0.s8 %v2537
        %v2539 = vlaneseq
        %v2540 = vshrl.u32 %v2539, 7
        %v2541 = vsub.s32 %v2538, %v2540
        %v2542 = vrot.slane %v2514, %v2541
        %v2543 = vcombine.high %v2521, %v2521
        %v2544 = vcombine.high %v2528, %v2528
        %v2545 = vcombine.high %v2535, %v2535
        %v2546 = vcombine.high %v2542, %v2542
        %v2548 = vunpack.c.l.s4 1966171168
        %v2549 = vunpack.c.0.s8 %v2548
        %v2550 = vlaneseq
        %v2551 = vshrl.u32 %v2550, 7
        %v2552 = vsub.s32 %v2549, %v2551
        %v2553 = vrot.slane %v2209, %v2552
        %v2554 = vcombine.high %v2553, %v2553
        %v2556 = vunpack.c.l.s4 1966171168
        %v2557 = vunpack.c.0.s8 %v2556
        %v2558 = vlaneseq
        %v2559 = vshrl.u32 %v2558, 7
        %v2560 = vsub.s32 %v2557, %v2559
        %v2561 = vrot.slane %v2553, %v2560
        %v2563 = vunpack.c.l.s4 1966171168
        %v2564 = vunpack.c.0.s8 %v2563
        %v2565 = vlaneseq
        %v2566 = vshrl.u32 %v2565, 7
        %v2567 = vsub.s32 %v2564, %v2566
        %v2568 = vrot.slane %v2554, %v2567
        %v2569 = vcombine.high %v2561, %v2561
        %v2570 = vcombine.high %v2240, %v2240
        %v2572 = vunpack.c.l.s4 1966171168
        %v2573 = vunpack.c.0.s8 %v2572
        %v2574 = vlaneseq
        %v2575 = vshrl.u32 %v2574, 7
        %v2576 = vsub.s32 %v2573, %v2575
        %v2577 = vrot.slane %v2240, %v2576
        %v2579 = vunpack.c.l.s4 1966171168
        %v2580 = vunpack.c.0.s8 %v2579
        %v2581 = vlaneseq
        %v2582 = vshrl.u32 %v2581, 7
        %v2583 = vsub.s32 %v2580, %v2582
        %v2584 = vrot.slane %v2570, %v2583
        %v2585 = vcombine.high %v2577, %v2577
        %v2586 = vcombine.high %v2584, %v2584
        %v2588 = vunpack.c.l.s4 1966171168
        %v2589 = vunpack.c.0.s8 %v2588
        %v2590 = vlaneseq
        %v2591 = vshrl.u32 %v2590, 7
        %v2592 = vsub.s32 %v2589, %v2591
        %v2593 = vrot.slane %v2577, %v2592
        %v2595 = vunpack.c.l.s4 1966171168
        %v2596 = vunpack.c.0.s8 %v2595
        %v2597 = vlaneseq
        %v2598 = vshrl.u32 %v2597, 7
        %v2599 = vsub.s32 %v2596, %v2598
        %v2600 = vrot.slane %v2584, %v2599
        %v2602 = vunpack.c.l.s4 1966171168
        %v2603 = vunpack.c.0.s8 %v2602
        %v2604 = vlaneseq
        %v2605 = vshrl.u32 %v2604, 7
        %v2606 = vsub.s32 %v2603, %v2605
        %v2607 = vrot.slane %v2585, %v2606
        %v2609 = vunpack.c.l.s4 1966171168
        %v2610 = vunpack.c.0.s8 %v2609
        %v2611 = vlaneseq
        %v2612 = vshrl.u32 %v2611, 7
        %v2613 = vsub.s32 %v2610, %v2612
        %v2614 = vrot.slane %v2586, %v2613
        %v2615 = vcombine.high %v2593, %v2593
        %v2616 = vcombine.high %v2600, %v2600
        %v2617 = vcombine.high %v2607, %v2607
        %v2618 = vcombine.high %v2614, %v2614
        %v2620 = vunpack.c.l.s4 1966171168
        %v2621 = vunpack.c.0.s8 %v2620
        %v2622 = vlaneseq
        %v2623 = vshrl.u32 %v2622, 7
        %v2624 = vsub.s32 %v2621, %v2623
        %v2625 = vrot.slane %v2241, %v2624
        %v2626 = vcombine.high %v2625, %v2625
        %v2628 = vunpack.c.l.s4 1966171168
        %v2629 = vunpack.c.0.s8 %v2628
        %v2630 = vlaneseq
        %v2631 = vshrl.u32 %v2630, 7
        %v2632 = vsub.s32 %v2629, %v2631
        %v2633 = vrot.slane %v2625, %v2632
        %v2635 = vunpack.c.l.s4 1966171168
        %v2636 = vunpack.c.0.s8 %v2635
        %v2637 = vlaneseq
        %v2638 = vshrl.u32 %v2637, 7
        %v2639 = vsub.s32 %v2636, %v2638
        %v2640 = vrot.slane %v2626, %v2639
        %v2641 = vcombine.high %v2633, %v2633
        %v2642 = vcombine.high %v2272, %v2272
        %v2644 = vunpack.c.l.s4 1966171168
        %v2645 = vunpack.c.0.s8 %v2644
        %v2646 = vlaneseq
        %v2647 = vshrl.u32 %v2646, 7
        %v2648 = vsub.s32 %v2645, %v2647
        %v2649 = vrot.slane %v2272, %v2648
        %v2651 = vunpack.c.l.s4 1966171168
        %v2652 = vunpack.c.0.s8 %v2651
        %v2653 = vlaneseq
        %v2654 = vshrl.u32 %v2653, 7
        %v2655 = vsub.s32 %v2652, %v2654
        %v2656 = vrot.slane %v2642, %v2655
        %v2657 = vcombine.high %v2649, %v2649
        %v2658 = vcombine.high %v2656, %v2656
        %v2660 = vunpack.c.l.s4 1966171168
        %v2661 = vunpack.c.0.s8 %v2660
        %v2662 = vlaneseq
        %v2663 = vshrl.u32 %v2662, 7
        %v2664 = vsub.s32 %v2661, %v2663
        %v2665 = vrot.slane %v2649, %v2664
        %v2667 = vunpack.c.l.s4 1966171168
        %v2668 = vunpack.c.0.s8 %v2667
        %v2669 = vlaneseq
        %v2670 = vshrl.u32 %v2669, 7
        %v2671 = vsub.s32 %v2668, %v2670
        %v2672 = vrot.slane %v2656, %v2671
        %v2674 = vunpack.c.l.s4 1966171168
        %v2675 = vunpack.c.0.s8 %v2674
        %v2676 = vlaneseq
        %v2677 = vshrl.u32 %v2676, 7
        %v2678 = vsub.s32 %v2675, %v2677
        %v2679 = vrot.slane %v2657, %v2678
        %v2681 = vunpack.c.l.s4 1966171168
        %v2682 = vunpack.c.0.s8 %v2681
        %v2683 = vlaneseq
        %v2684 = vshrl.u32 %v2683, 7
        %v2685 = vsub.s32 %v2682, %v2684
        %v2686 = vrot.slane %v2658, %v2685
        %v2687 = vcombine.high %v2665, %v2665
        %v2688 = vcombine.high %v2672, %v2672
        %v2689 = vcombine.high %v2679, %v2679
        %v2690 = vcombine.high %v2686, %v2686
        %v2692 = vunpack.c.l.s4 1966171168
        %v2693 = vunpack.c.0.s8 %v2692
        %v2694 = vlaneseq
        %v2695 = vshrl.u32 %v2694, 7
        %v2696 = vsub.s32 %v2693, %v2695
        %v2697 = vrot.slane %v2273, %v2696
        %v2698 = vcombine.high %v2697, %v2697
        %v2700 = vunpack.c.l.s4 1966171168
        %v2701 = vunpack.c.0.s8 %v2700
        %v2702 = vlaneseq
        %v2703 = vshrl.u32 %v2702, 7
        %v2704 = vsub.s32 %v2701, %v2703
        %v2705 = vrot.slane %v2697, %v2704
        %v2707 = vunpack.c.l.s4 1966171168
        %v2708 = vunpack.c.0.s8 %v2707
        %v2709 = vlaneseq
        %v2710 = vshrl.u32 %v2709, 7
        %v2711 = vsub.s32 %v2708, %v2710
        %v2712 = vrot.slane %v2698, %v2711
        %v2713 = vcombine.high %v2705, %v2705
        %v2714 = vcombine.low %v2449, %v2463
        %v2715 = vcombine.low %v2471, %v2473
        %v2716 = vcombine.low %v2456, %v2470
        %v2717 = vcombine.low %v2472, %v2474
        %v2719 = vunpack.c.l.s4 1966171168
        %v2720 = vunpack.c.0.s8 %v2719
        %v2721 = vlaneseq
        %v2722 = vshrl.u32 %v2721, 7
        %v2723 = vsub.s32 %v2720, %v2722
        %v2724 = vrot.slane %v2714, %v2723
        %v2726 = vunpack.c.l.s4 1966171168
        %v2727 = vunpack.c.0.s8 %v2726
        %v2728 = vlaneseq
        %v2729 = vshrl.u32 %v2728, 7
        %v2730 = vsub.s32 %v2727, %v2729
        %v2731 = vrot.slane %v2715, %v2730
        %v2733 = vunpack.c.l.s4 1966171168
        %v2734 = vunpack.c.0.s8 %v2733
        %v2735 = vlaneseq
        %v2736 = vshrl.u32 %v2735, 7
        %v2737 = vsub.s32 %v2734, %v2736
        %v2738 = vrot.slane %v2716, %v2737
        %v2740 = vunpack.c.l.s4 1966171168
        %v2741 = vunpack.c.0.s8 %v2740
        %v2742 = vlaneseq
        %v2743 = vshrl.u32 %v2742, 7
        %v2744 = vsub.s32 %v2741, %v2743
        %v2745 = vrot.slane %v2717, %v2744
        %v2746 = vcombine.low %v2724, %v2731
        %v2747 = vcombine.low %v2738, %v2745
        %v2749 = vunpack.c.l.s4 1966171168
        %v2750 = vunpack.c.0.s8 %v2749
        %v2751 = vlaneseq
        %v2752 = vshrl.u32 %v2751, 7
        %v2753 = vsub.s32 %v2750, %v2752
        %v2754 = vrot.slane %v2746, %v2753
        %v2756 = vunpack.c.l.s4 1966171168
        %v2757 = vunpack.c.0.s8 %v2756
        %v2758 = vlaneseq
        %v2759 = vshrl.u32 %v2758, 7
        %v2760 = vsub.s32 %v2757, %v2759
        %v2761 = vrot.slane %v2747, %v2760
        %v2762 = vcombine.low %v2754, %v2761
        %v2763 = vcombine.low %v2489, %v2496
        %v2764 = vcombine.low %v2497, %v2521
        %v2765 = vcombine.low %v2535, %v2543
        %v2766 = vcombine.low %v2545, %v2528
        %v2768 = vunpack.c.l.s4 1966171168
        %v2769 = vunpack.c.0.s8 %v2768
        %v2770 = vlaneseq
        %v2771 = vshrl.u32 %v2770, 7
        %v2772 = vsub.s32 %v2769, %v2771
        %v2773 = vrot.slane %v2763, %v2772
        %v2775 = vunpack.c.l.s4 1966171168
        %v2776 = vunpack.c.0.s8 %v2775
        %v2777 = vlaneseq
        %v2778 = vshrl.u32 %v2777, 7
        %v2779 = vsub.s32 %v2776, %v2778
        %v2780 = vrot.slane %v2764, %v2779
        %v2782 = vunpack.c.l.s4 1966171168
        %v2783 = vunpack.c.0.s8 %v2782
        %v2784 = vlaneseq
        %v2785 = vshrl.u32 %v2784, 7
        %v2786 = vsub.s32 %v2783, %v2785
        %v2787 = vrot.slane %v2765, %v2786
        %v2789 = vunpack.c.l.s4 1966171168
        %v2790 = vunpack.c.0.s8 %v2789
        %v2791 = vlaneseq
        %v2792 = vshrl.u32 %v2791, 7
        %v2793 = vsub.s32 %v2790, %v2792
        %v2794 = vrot.slane %v2766, %v2793
        %v2795 = vcombine.low %v2773, %v2780
        %v2796 = vcombine.low %v2787, %v2794
        %v2798 = vunpack.c.l.s4 1966171168
        %v2799 = vunpack.c.0.s8 %v2798
        %v2800 = vlaneseq
        %v2801 = vshrl.u32 %v2800, 7
        %v2802 = vsub.s32 %v2799, %v2801
        %v2803 = vrot.slane %v2795, %v2802
        %v2805 = vunpack.c.l.s4 1966171168
        %v2806 = vunpack.c.0.s8 %v2805
        %v2807 = vlaneseq
        %v2808 = vshrl.u32 %v2807, 7
        %v2809 = vsub.s32 %v2806, %v2808
        %v2810 = vrot.slane %v2796, %v2809
        %v2811 = vcombine.low %v2803, %v2810
        %v2812 = vcombine.low %v2542, %v2544
        %v2813 = vcombine.low %v2546, %v2561
        %v2814 = vcombine.low %v2568, %v2569
        %v2815 = vcombine.low %v2593, %v2607
        %v2817 = vunpack.c.l.s4 1966171168
        %v2818 = vunpack.c.0.s8 %v2817
        %v2819 = vlaneseq
        %v2820 = vshrl.u32 %v2819, 7
        %v2821 = vsub.s32 %v2818, %v2820
        %v2822 = vrot.slane %v2812, %v2821
        %v2824 = vunpack.c.l.s4 1966171168
        %v2825 = vunpack.c.0.s8 %v2824
        %v2826 = vlaneseq
        %v2827 = vshrl.u32 %v2826, 7
        %v2828 = vsub.s32 %v2825, %v2827
        %v2829 = vrot.slane %v2813, %v2828
        %v2831 = vunpack.c.l.s4 1966171168
        %v2832 = vunpack.c.0.s8 %v2831
        %v2833 = vlaneseq
        %v2834 = vshrl.u32 %v2833, 7
        %v2835 = vsub.s32 %v2832, %v2834
        %v2836 = vrot.slane %v2814, %v2835
        %v2838 = vunpack.c.l.s4 1966171168
        %v2839 = vunpack.c.0.s8 %v2838
        %v2840 = vlaneseq
        %v2841 = vshrl.u32 %v2840, 7
        %v2842 = vsub.s32 %v2839, %v2841
        %v2843 = vrot.slane %v2815, %v2842
        %v2844 = vcombine.low %v2822, %v2829
        %v2845 = vcombine.low %v2836, %v2843
        %v2847 = vunpack.c.l.s4 1966171168
        %v2848 = vunpack.c.0.s8 %v2847
        %v2849 = vlaneseq
        %v2850 = vshrl.u32 %v2849, 7
        %v2851 = vsub.s32 %v2848, %v2850
        %v2852 = vrot.slane %v2844, %v2851
        %v2854 = vunpack.c.l.s4 1966171168
        %v2855 = vunpack.c.0.s8 %v2854
        %v2856 = vlaneseq
        %v2857 = vshrl.u32 %v2856, 7
        %v2858 = vsub.s32 %v2855, %v2857
        %v2859 = vrot.slane %v2845, %v2858
        %v2860 = vcombine.low %v2852, %v2859
        %v2861 = vcombine.low %v2615, %v2617
        %v2862 = vcombine.low %v2600, %v2614
        %v2863 = vcombine.low %v2616, %v2618
        %v2864 = vcombine.low %v2633, %v2640
        %v2866 = vunpack.c.l.s4 1966171168
        %v2867 = vunpack.c.0.s8 %v2866
        %v2868 = vlaneseq
        %v2869 = vshrl.u32 %v2868, 7
        %v2870 = vsub.s32 %v2867, %v2869
        %v2871 = vrot.slane %v2861, %v2870
        %v2873 = vunpack.c.l.s4 1966171168
        %v2874 = vunpack.c.0.s8 %v2873
        %v2875 = vlaneseq
        %v2876 = vshrl.u32 %v2875, 7
        %v2877 = vsub.s32 %v2874, %v2876
        %v2878 = vrot.slane %v2862, %v2877
        %v2880 = vunpack.c.l.s4 1966171168
        %v2881 = vunpack.c.0.s8 %v2880
        %v2882 = vlaneseq
        %v2883 = vshrl.u32 %v2882, 7
        %v2884 = vsub.s32 %v2881, %v2883
        %v2885 = vrot.slane %v2863, %v2884
        %v2887 = vunpack.c.l.s4 1966171168
        %v2888 = vunpack.c.0.s8 %v2887
        %v2889 = vlaneseq
        %v2890 = vshrl.u32 %v2889, 7
        %v2891 = vsub.s32 %v2888, %v2890
        %v2892 = vrot.slane %v2864, %v2891
        %v2893 = vcombine.low %v2871, %v2878
        %v2894 = vcombine.low %v2885, %v2892
        %v2896 = vunpack.c.l.s4 1966171168
        %v2897 = vunpack.c.0.s8 %v2896
        %v2898 = vlaneseq
        %v2899 = vshrl.u32 %v2898, 7
        %v2900 = vsub.s32 %v2897, %v2899
        %v2901 = vrot.slane %v2893, %v2900
        %v2903 = vunpack.c.l.s4 1966171168
        %v2904 = vunpack.c.0.s8 %v2903
        %v2905 = vlaneseq
        %v2906 = vshrl.u32 %v2905, 7
        %v2907 = vsub.s32 %v2904, %v2906
        %v2908 = vrot.slane %v2894, %v2907
        %v2909 = vcombine.low %v2901, %v2908
        %v2910 = vcombine.low %v2641, %v2665
        %v2911 = vcombine.low %v2679, %v2687
        %v2912 = vcombine.low %v2689, %v2672
        %v2913 = vcombine.low %v2686, %v2688
        %v2915 = vunpack.c.l.s4 1966171168
        %v2916 = vunpack.c.0.s8 %v2915
        %v2917 = vlaneseq
        %v2918 = vshrl.u32 %v2917, 7
        %v2919 = vsub.s32 %v2916, %v2918
        %v2920 = vrot.slane %v2910, %v2919
        %v2922 = vunpack.c.l.s4 1966171168
        %v2923 = vunpack.c.0.s8 %v2922
        %v2924 = vlaneseq
        %v2925 = vshrl.u32 %v2924, 7
        %v2926 = vsub.s32 %v2923, %v2925
        %v2927 = vrot.slane %v2911, %v2926
        %v2929 = vunpack.c.l.s4 1966171168
        %v2930 = vunpack.c.0.s8 %v2929
        %v2931 = vlaneseq
        %v2932 = vshrl.u32 %v2931, 7
        %v2933 = vsub.s32 %v2930, %v2932
        %v2934 = vrot.slane %v2912, %v2933
        %v2936 = vunpack.c.l.s4 1966171168
        %v2937 = vunpack.c.0.s8 %v2936
        %v2938 = vlaneseq
        %v2939 = vshrl.u32 %v2938, 7
        %v2940 = vsub.s32 %v2937, %v2939
        %v2941 = vrot.slane %v2913, %v2940
        %v2942 = vcombine.low %v2920, %v2927
        %v2943 = vcombine.low %v2934, %v2941
        %v2945 = vunpack.c.l.s4 1966171168
        %v2946 = vunpack.c.0.s8 %v2945
        %v2947 = vlaneseq
        %v2948 = vshrl.u32 %v2947, 7
        %v2949 = vsub.s32 %v2946, %v2948
        %v2950 = vrot.slane %v2942, %v2949
        %v2952 = vunpack.c.l.s4 1966171168
        %v2953 = vunpack.c.0.s8 %v2952
        %v2954 = vlaneseq
        %v2955 = vshrl.u32 %v2954, 7
        %v2956 = vsub.s32 %v2953, %v2955
        %v2957 = vrot.slane %v2943, %v2956
        %v2958 = vcombine.low %v2950, %v2957
        %v2959 = vcombine.low %v2690, %v2705
        %v2960 = vcombine.low %v2712, %v2713
        %v2962 = vunpack.c.l.s4 1966171168
        %v2963 = vunpack.c.0.s8 %v2962
        %v2964 = vlaneseq
        %v2965 = vshrl.u32 %v2964, 7
        %v2966 = vsub.s32 %v2963, %v2965
        %v2967 = vrot.slane %v2959, %v2966
        %v2969 = vunpack.c.l.s4 1966171168
        %v2970 = vunpack.c.0.s8 %v2969
        %v2971 = vlaneseq
        %v2972 = vshrl.u32 %v2971, 7
        %v2973 = vsub.s32 %v2970, %v2972
        %v2974 = vrot.slane %v2960, %v2973
        %v2975 = vcombine.low %v2967, %v2974
        %v2977 = vunpack.c.l.s4 1966171168
        %v2978 = vunpack.c.0.s8 %v2977
        %v2979 = vlaneseq
        %v2980 = vshrl.u32 %v2979, 7
        %v2981 = vsub.s32 %v2978, %v2980
        %v2982 = vrot.slane %v2975, %v2981
        %v2983 = vsel %vm1931, %v2762, 0
        %v2985 = vsel %vm1931, %v2811, 0
        %v2987 = vsel %vm1931, %v2860, 0
        %v2989 = vsel %vm1931, %v2909, 0
        %v2991 = vsel %vm1931, %v2958, 0
        %v2993 = vsel %vm1931, %v2982, 0
        %2995 = vmatprep.subr.mxu0 0.0
        %2996 = vmatpush1.msra.mxu0 %v2416
        %2997 = vmatprep.subr.mxu0 0.0
        %2998 = vmatpush1.msra.mxu0 %v2417
        %2999 = vmatprep.subr.mxu0 0.0
        %3000 = vmatpush1.msra.mxu0 0.0
        %3001 = vmatprep.subr.mxu0 0.0
        %3002 = vmatpush1.msra.mxu0 0.0
        %3003 = vmatprep.subr.mxu0 0.0
        %3004 = vmatpush1.msra.mxu0 0.0
        %3005 = vmatprep.subr.mxu0 0.0
        %3006 = vmatpush1.msra.mxu0 0.0
        %3007 = vmatprep.subr.mxu0 0.0
        %3008 = vmatpush1.msra.mxu0 0.0
        %3009 = vmatprep.subr.mxu0 0.0
        %3010 = vmatpush1.msra.mxu0 0.0
        %3011 = vmatprep.subr.mxu0 0.0
        %3012 = vmatpush1.msra.mxu0 0.0
        %3013 = vmatprep.subr.mxu0 0.0
        %3014 = vmatpush1.msra.mxu0 0.0
        %3015 = vmatprep.subr.mxu0 0.0
        %3016 = vmatpush1.msra.mxu0 0.0
        %3017 = vmatprep.subr.mxu0 0.0
        %3018 = vmatpush1.msra.mxu0 0.0
        %3019 = vmatprep.subr.mxu0 0.0
        %3020 = vmatpush1.msra.mxu0 0.0
        %3021 = vmatprep.subr.mxu0 0.0
        %3022 = vmatpush1.msra.mxu0 0.0
        %3023 = vmatprep.subr.mxu0 0.0
        %3024 = vmatpush1.msra.mxu0 0.0
        %3025 = vmatprep.subr.mxu0 0.0
        %3026 = vmatpush1.msra.mxu0 0.0
        %3027 = vmatprep.subr.mxu0 0.0
        %3028 = vmatpush1.msra.mxu0 0.0
        %3029 = vmatprep.subr.mxu0 0.0
        %3030 = vmatpush1.msra.mxu0 0.0
        %3031 = vmatprep.subr.mxu0 0.0
        %3032 = vmatpush1.msra.mxu0 0.0
        %3033 = vmatprep.subr.mxu0 0.0
        %3034 = vmatpush1.msra.mxu0 0.0
        %3035 = vmatprep.subr.mxu0 0.0
        %3036 = vmatpush1.msra.mxu0 0.0
        %3037 = vmatprep.subr.mxu0 0.0
        %3038 = vmatpush1.msra.mxu0 0.0
        %3039 = vmatprep.subr.mxu0 0.0
        %3040 = vmatpush1.msra.mxu0 0.0
        %3041 = vmatprep.subr.mxu0 0.0
        %3042 = vmatpush1.msra.mxu0 0.0
        %3043 = vmatprep.subr.mxu0 0.0
        %3044 = vmatpush1.msra.mxu0 0.0
        %3045 = vmatprep.subr.mxu0 0.0
        %3046 = vmatpush1.msra.mxu0 0.0
        %3047 = vmatprep.subr.mxu0 0.0
        %3048 = vmatpush1.msra.mxu0 0.0
        %3049 = vmatprep.subr.mxu0 0.0
        %3050 = vmatpush1.msra.mxu0 0.0
        %3051 = vmatprep.subr.mxu0 0.0
        %3052 = vmatpush1.msra.mxu0 0.0
        %3053 = vmatprep.subr.mxu0 0.0
        %3054 = vmatpush1.msra.mxu0 0.0
        %3055 = vmatprep.subr.mxu0 0.0
        %3056 = vmatpush1.msra.mxu0 0.0
        %3057 = vmatprep.subr.mxu0 0.0
        %3058 = vmatpush1.msra.mxu0 0.0
        %3059 = vmatprep.mubr.f32.mxu0 0.0
        %3060 = vmatmul.mubr.f32.gmra.mrb[0].mxu0 %v2983
        %v3061 = vpop.f32.mrb[0].mxu0
        %v3062 = vadd.f32 0.0, %v3061
        %v3063 = vpop.f32.mrb[0].mxu0
        %3064 = vmatprep.mubr.f32.mxu0 0.0
        %3065 = vmatmul.mubr.f32.gmra.mrb[0].mxu0 %v2985
        %v3066 = vpop.f32.mrb[0].mxu0
        %v3067 = vadd.f32 0.0, %v3066
        %v3068 = vpop.f32.mrb[0].mxu0
        %3069 = vmatprep.mubr.f32.mxu0 0.0
        %3070 = vmatmul.mubr.f32.gmra.mrb[0].mxu0 %v2987
        %v3071 = vpop.f32.mrb[0].mxu0
        %v3072 = vadd.f32 0.0, %v3071
        %v3073 = vpop.f32.mrb[0].mxu0
        %3074 = vmatprep.mubr.f32.mxu0 0.0
        %3075 = vmatmul.mubr.f32.gmra.mrb[0].mxu0 %v2989
        %v3076 = vpop.f32.mrb[0].mxu0
        %v3077 = vadd.f32 0.0, %v3076
        %v3078 = vpop.f32.mrb[0].mxu0
        %3079 = vmatprep.mubr.f32.mxu0 0.0
        %3080 = vmatmul.mubr.f32.gmra.mrb[0].mxu0 %v2991
        %v3081 = vpop.f32.mrb[0].mxu0
        %v3082 = vadd.f32 0.0, %v3081
        %v3083 = vpop.f32.mrb[0].mxu0
        %3084 = vmatprep.mubr.f32.mxu0 0.0
        %3085 = vmatmul.mubr.f32.gmra.mrb[0].mxu0 %v2993
        %v3086 = vpop.f32.mrb[0].mxu0
        %v3087 = vadd.f32 0.0, %v3086
        %v3088 = vpop.f32.mrb[0].mxu0
        %3089 = vdwg.mxu0
        %v3096 = vcombine.high %v3062, %v3062
        %v3098 = vunpack.c.l.s4 1966171168
        %v3099 = vunpack.c.0.s8 %v3098
        %v3100 = vlaneseq
        %v3101 = vshrl.u32 %v3100, 7
        %v3102 = vsub.s32 %v3099, %v3101
        %v3103 = vrot.slane %v3062, %v3102
        %v3105 = vunpack.c.l.s4 1966171168
        %v3106 = vunpack.c.0.s8 %v3105
        %v3107 = vlaneseq
        %v3108 = vshrl.u32 %v3107, 7
        %v3109 = vsub.s32 %v3106, %v3108
        %v3110 = vrot.slane %v3096, %v3109
        %v3111 = vcombine.high %v3103, %v3103
        %v3112 = vcombine.high %v3110, %v3110
        %v3114 = vunpack.c.l.s4 1966171168
        %v3115 = vunpack.c.0.s8 %v3114
        %v3116 = vlaneseq
        %v3117 = vshrl.u32 %v3116, 7
        %v3118 = vsub.s32 %v3115, %v3117
        %v3119 = vrot.slane %v3103, %v3118
        %v3121 = vunpack.c.l.s4 1966171168
        %v3122 = vunpack.c.0.s8 %v3121
        %v3123 = vlaneseq
        %v3124 = vshrl.u32 %v3123, 7
        %v3125 = vsub.s32 %v3122, %v3124
        %v3126 = vrot.slane %v3110, %v3125
        %v3128 = vunpack.c.l.s4 1966171168
        %v3129 = vunpack.c.0.s8 %v3128
        %v3130 = vlaneseq
        %v3131 = vshrl.u32 %v3130, 7
        %v3132 = vsub.s32 %v3129, %v3131
        %v3133 = vrot.slane %v3111, %v3132
        %v3135 = vunpack.c.l.s4 1966171168
        %v3136 = vunpack.c.0.s8 %v3135
        %v3137 = vlaneseq
        %v3138 = vshrl.u32 %v3137, 7
        %v3139 = vsub.s32 %v3136, %v3138
        %v3140 = vrot.slane %v3112, %v3139
        %v3141 = vcombine.high %v3119, %v3119
        %v3142 = vcombine.high %v3126, %v3126
        %v3143 = vcombine.high %v3133, %v3133
        %v3144 = vcombine.high %v3140, %v3140
        %v3145 = vcombine.high %v3067, %v3067
        %v3147 = vunpack.c.l.s4 1966171168
        %v3148 = vunpack.c.0.s8 %v3147
        %v3149 = vlaneseq
        %v3150 = vshrl.u32 %v3149, 7
        %v3151 = vsub.s32 %v3148, %v3150
        %v3152 = vrot.slane %v3067, %v3151
        %v3154 = vunpack.c.l.s4 1966171168
        %v3155 = vunpack.c.0.s8 %v3154
        %v3156 = vlaneseq
        %v3157 = vshrl.u32 %v3156, 7
        %v3158 = vsub.s32 %v3155, %v3157
        %v3159 = vrot.slane %v3145, %v3158
        %v3160 = vcombine.high %v3152, %v3152
        %v3161 = vcombine.high %v3159, %v3159
        %v3163 = vunpack.c.l.s4 1966171168
        %v3164 = vunpack.c.0.s8 %v3163
        %v3165 = vlaneseq
        %v3166 = vshrl.u32 %v3165, 7
        %v3167 = vsub.s32 %v3164, %v3166
        %v3168 = vrot.slane %v3152, %v3167
        %v3170 = vunpack.c.l.s4 1966171168
        %v3171 = vunpack.c.0.s8 %v3170
        %v3172 = vlaneseq
        %v3173 = vshrl.u32 %v3172, 7
        %v3174 = vsub.s32 %v3171, %v3173
        %v3175 = vrot.slane %v3159, %v3174
        %v3177 = vunpack.c.l.s4 1966171168
        %v3178 = vunpack.c.0.s8 %v3177
        %v3179 = vlaneseq
        %v3180 = vshrl.u32 %v3179, 7
        %v3181 = vsub.s32 %v3178, %v3180
        %v3182 = vrot.slane %v3160, %v3181
        %v3184 = vunpack.c.l.s4 1966171168
        %v3185 = vunpack.c.0.s8 %v3184
        %v3186 = vlaneseq
        %v3187 = vshrl.u32 %v3186, 7
        %v3188 = vsub.s32 %v3185, %v3187
        %v3189 = vrot.slane %v3161, %v3188
        %v3190 = vcombine.high %v3168, %v3168
        %v3191 = vcombine.high %v3175, %v3175
        %v3192 = vcombine.high %v3182, %v3182
        %v3193 = vcombine.high %v3189, %v3189
        %v3194 = vcombine.high %v3072, %v3072
        %v3196 = vunpack.c.l.s4 1966171168
        %v3197 = vunpack.c.0.s8 %v3196
        %v3198 = vlaneseq
        %v3199 = vshrl.u32 %v3198, 7
        %v3200 = vsub.s32 %v3197, %v3199
        %v3201 = vrot.slane %v3072, %v3200
        %v3203 = vunpack.c.l.s4 1966171168
        %v3204 = vunpack.c.0.s8 %v3203
        %v3205 = vlaneseq
        %v3206 = vshrl.u32 %v3205, 7
        %v3207 = vsub.s32 %v3204, %v3206
        %v3208 = vrot.slane %v3194, %v3207
        %v3209 = vcombine.high %v3201, %v3201
        %v3210 = vcombine.high %v3208, %v3208
        %v3212 = vunpack.c.l.s4 1966171168
        %v3213 = vunpack.c.0.s8 %v3212
        %v3214 = vlaneseq
        %v3215 = vshrl.u32 %v3214, 7
        %v3216 = vsub.s32 %v3213, %v3215
        %v3217 = vrot.slane %v3201, %v3216
        %v3219 = vunpack.c.l.s4 1966171168
        %v3220 = vunpack.c.0.s8 %v3219
        %v3221 = vlaneseq
        %v3222 = vshrl.u32 %v3221, 7
        %v3223 = vsub.s32 %v3220, %v3222
        %v3224 = vrot.slane %v3208, %v3223
        %v3226 = vunpack.c.l.s4 1966171168
        %v3227 = vunpack.c.0.s8 %v3226
        %v3228 = vlaneseq
        %v3229 = vshrl.u32 %v3228, 7
        %v3230 = vsub.s32 %v3227, %v3229
        %v3231 = vrot.slane %v3209, %v3230
        %v3233 = vunpack.c.l.s4 1966171168
        %v3234 = vunpack.c.0.s8 %v3233
        %v3235 = vlaneseq
        %v3236 = vshrl.u32 %v3235, 7
        %v3237 = vsub.s32 %v3234, %v3236
        %v3238 = vrot.slane %v3210, %v3237
        %v3239 = vcombine.high %v3217, %v3217
        %v3240 = vcombine.high %v3224, %v3224
        %v3241 = vcombine.high %v3231, %v3231
        %v3242 = vcombine.high %v3238, %v3238
        %v3243 = vcombine.high %v3077, %v3077
        %v3245 = vunpack.c.l.s4 1966171168
        %v3246 = vunpack.c.0.s8 %v3245
        %v3247 = vlaneseq
        %v3248 = vshrl.u32 %v3247, 7
        %v3249 = vsub.s32 %v3246, %v3248
        %v3250 = vrot.slane %v3077, %v3249
        %v3252 = vunpack.c.l.s4 1966171168
        %v3253 = vunpack.c.0.s8 %v3252
        %v3254 = vlaneseq
        %v3255 = vshrl.u32 %v3254, 7
        %v3256 = vsub.s32 %v3253, %v3255
        %v3257 = vrot.slane %v3243, %v3256
        %v3258 = vcombine.high %v3250, %v3250
        %v3259 = vcombine.high %v3257, %v3257
        %v3261 = vunpack.c.l.s4 1966171168
        %v3262 = vunpack.c.0.s8 %v3261
        %v3263 = vlaneseq
        %v3264 = vshrl.u32 %v3263, 7
        %v3265 = vsub.s32 %v3262, %v3264
        %v3266 = vrot.slane %v3250, %v3265
        %v3268 = vunpack.c.l.s4 1966171168
        %v3269 = vunpack.c.0.s8 %v3268
        %v3270 = vlaneseq
        %v3271 = vshrl.u32 %v3270, 7
        %v3272 = vsub.s32 %v3269, %v3271
        %v3273 = vrot.slane %v3257, %v3272
        %v3275 = vunpack.c.l.s4 1966171168
        %v3276 = vunpack.c.0.s8 %v3275
        %v3277 = vlaneseq
        %v3278 = vshrl.u32 %v3277, 7
        %v3279 = vsub.s32 %v3276, %v3278
        %v3280 = vrot.slane %v3258, %v3279
        %v3282 = vunpack.c.l.s4 1966171168
        %v3283 = vunpack.c.0.s8 %v3282
        %v3284 = vlaneseq
        %v3285 = vshrl.u32 %v3284, 7
        %v3286 = vsub.s32 %v3283, %v3285
        %v3287 = vrot.slane %v3259, %v3286
        %v3288 = vcombine.high %v3266, %v3266
        %v3289 = vcombine.high %v3273, %v3273
        %v3290 = vcombine.high %v3280, %v3280
        %v3291 = vcombine.high %v3287, %v3287
        %v3292 = vcombine.high %v3082, %v3082
        %v3294 = vunpack.c.l.s4 1966171168
        %v3295 = vunpack.c.0.s8 %v3294
        %v3296 = vlaneseq
        %v3297 = vshrl.u32 %v3296, 7
        %v3298 = vsub.s32 %v3295, %v3297
        %v3299 = vrot.slane %v3082, %v3298
        %v3301 = vunpack.c.l.s4 1966171168
        %v3302 = vunpack.c.0.s8 %v3301
        %v3303 = vlaneseq
        %v3304 = vshrl.u32 %v3303, 7
        %v3305 = vsub.s32 %v3302, %v3304
        %v3306 = vrot.slane %v3292, %v3305
        %v3307 = vcombine.high %v3299, %v3299
        %v3308 = vcombine.high %v3306, %v3306
        %v3310 = vunpack.c.l.s4 1966171168
        %v3311 = vunpack.c.0.s8 %v3310
        %v3312 = vlaneseq
        %v3313 = vshrl.u32 %v3312, 7
        %v3314 = vsub.s32 %v3311, %v3313
        %v3315 = vrot.slane %v3299, %v3314
        %v3317 = vunpack.c.l.s4 1966171168
        %v3318 = vunpack.c.0.s8 %v3317
        %v3319 = vlaneseq
        %v3320 = vshrl.u32 %v3319, 7
        %v3321 = vsub.s32 %v3318, %v3320
        %v3322 = vrot.slane %v3306, %v3321
        %v3324 = vunpack.c.l.s4 1966171168
        %v3325 = vunpack.c.0.s8 %v3324
        %v3326 = vlaneseq
        %v3327 = vshrl.u32 %v3326, 7
        %v3328 = vsub.s32 %v3325, %v3327
        %v3329 = vrot.slane %v3307, %v3328
        %v3331 = vunpack.c.l.s4 1966171168
        %v3332 = vunpack.c.0.s8 %v3331
        %v3333 = vlaneseq
        %v3334 = vshrl.u32 %v3333, 7
        %v3335 = vsub.s32 %v3332, %v3334
        %v3336 = vrot.slane %v3308, %v3335
        %v3337 = vcombine.high %v3315, %v3315
        %v3338 = vcombine.high %v3322, %v3322
        %v3339 = vcombine.high %v3329, %v3329
        %v3340 = vcombine.high %v3336, %v3336
        %v3342 = vunpack.c.l.s4 1966171168
        %v3343 = vunpack.c.0.s8 %v3342
        %v3344 = vlaneseq
        %v3345 = vshrl.u32 %v3344, 7
        %v3346 = vsub.s32 %v3343, %v3345
        %v3347 = vrot.slane %v3087, %v3346
        %v3348 = vcombine.high %v3347, %v3347
        %v3350 = vunpack.c.l.s4 1966171168
        %v3351 = vunpack.c.0.s8 %v3350
        %v3352 = vlaneseq
        %v3353 = vshrl.u32 %v3352, 7
        %v3354 = vsub.s32 %v3351, %v3353
        %v3355 = vrot.slane %v3347, %v3354
        %v3357 = vunpack.c.l.s4 1966171168
        %v3358 = vunpack.c.0.s8 %v3357
        %v3359 = vlaneseq
        %v3360 = vshrl.u32 %v3359, 7
        %v3361 = vsub.s32 %v3358, %v3360
        %v3362 = vrot.slane %v3348, %v3361
        %v3363 = vcombine.high %v3355, %v3355
        %v3364 = vcombine.high %v3362, %v3362
        %v3409 = vld [vmem:[#allocation9] sm:$0xff]
        %v3410 = vld [vmem:[#allocation9 + $0x8] sm:$0xff]
        %v3419 = vcombine.high %v2304, %v2304
        %v3421 = vunpack.c.l.s4 1966171168
        %v3422 = vunpack.c.0.s8 %v3421
        %v3423 = vlaneseq
        %v3424 = vshrl.u32 %v3423, 7
        %v3425 = vsub.s32 %v3422, %v3424
        %v3426 = vrot.slane %v2304, %v3425
        %v3428 = vunpack.c.l.s4 1966171168
        %v3429 = vunpack.c.0.s8 %v3428
        %v3430 = vlaneseq
        %v3431 = vshrl.u32 %v3430, 7
        %v3432 = vsub.s32 %v3429, %v3431
        %v3433 = vrot.slane %v3419, %v3432
        %v3434 = vcombine.high %v3426, %v3426
        %v3435 = vcombine.high %v3433, %v3433
        %v3437 = vunpack.c.l.s4 1966171168
        %v3438 = vunpack.c.0.s8 %v3437
        %v3439 = vlaneseq
        %v3440 = vshrl.u32 %v3439, 7
        %v3441 = vsub.s32 %v3438, %v3440
        %v3442 = vrot.slane %v3426, %v3441
        %v3444 = vunpack.c.l.s4 1966171168
        %v3445 = vunpack.c.0.s8 %v3444
        %v3446 = vlaneseq
        %v3447 = vshrl.u32 %v3446, 7
        %v3448 = vsub.s32 %v3445, %v3447
        %v3449 = vrot.slane %v3433, %v3448
        %v3451 = vunpack.c.l.s4 1966171168
        %v3452 = vunpack.c.0.s8 %v3451
        %v3453 = vlaneseq
        %v3454 = vshrl.u32 %v3453, 7
        %v3455 = vsub.s32 %v3452, %v3454
        %v3456 = vrot.slane %v3434, %v3455
        %v3458 = vunpack.c.l.s4 1966171168
        %v3459 = vunpack.c.0.s8 %v3458
        %v3460 = vlaneseq
        %v3461 = vshrl.u32 %v3460, 7
        %v3462 = vsub.s32 %v3459, %v3461
        %v3463 = vrot.slane %v3435, %v3462
        %v3464 = vcombine.high %v3442, %v3442
        %v3465 = vcombine.high %v3449, %v3449
        %v3466 = vcombine.high %v3456, %v3456
        %v3467 = vcombine.high %v3463, %v3463
        %v3469 = vunpack.c.l.s4 1966171168
        %v3470 = vunpack.c.0.s8 %v3469
        %v3471 = vlaneseq
        %v3472 = vshrl.u32 %v3471, 7
        %v3473 = vsub.s32 %v3470, %v3472
        %v3474 = vrot.slane %v2305, %v3473
        %v3475 = vcombine.high %v3474, %v3474
        %v3477 = vunpack.c.l.s4 1966171168
        %v3478 = vunpack.c.0.s8 %v3477
        %v3479 = vlaneseq
        %v3480 = vshrl.u32 %v3479, 7
        %v3481 = vsub.s32 %v3478, %v3480
        %v3482 = vrot.slane %v3474, %v3481
        %v3484 = vunpack.c.l.s4 1966171168
        %v3485 = vunpack.c.0.s8 %v3484
        %v3486 = vlaneseq
        %v3487 = vshrl.u32 %v3486, 7
        %v3488 = vsub.s32 %v3485, %v3487
        %v3489 = vrot.slane %v3475, %v3488
        %v3490 = vcombine.high %v3482, %v3482
        %v3491 = vcombine.high %v2336, %v2336
        %v3493 = vunpack.c.l.s4 1966171168
        %v3494 = vunpack.c.0.s8 %v3493
        %v3495 = vlaneseq
        %v3496 = vshrl.u32 %v3495, 7
        %v3497 = vsub.s32 %v3494, %v3496
        %v3498 = vrot.slane %v2336, %v3497
        %v3500 = vunpack.c.l.s4 1966171168
        %v3501 = vunpack.c.0.s8 %v3500
        %v3502 = vlaneseq
        %v3503 = vshrl.u32 %v3502, 7
        %v3504 = vsub.s32 %v3501, %v3503
        %v3505 = vrot.slane %v3491, %v3504
        %v3506 = vcombine.high %v3498, %v3498
        %v3507 = vcombine.high %v3505, %v3505
        %v3509 = vunpack.c.l.s4 1966171168
        %v3510 = vunpack.c.0.s8 %v3509
        %v3511 = vlaneseq
        %v3512 = vshrl.u32 %v3511, 7
        %v3513 = vsub.s32 %v3510, %v3512
        %v3514 = vrot.slane %v3498, %v3513
        %v3516 = vunpack.c.l.s4 1966171168
        %v3517 = vunpack.c.0.s8 %v3516
        %v3518 = vlaneseq
        %v3519 = vshrl.u32 %v3518, 7
        %v3520 = vsub.s32 %v3517, %v3519
        %v3521 = vrot.slane %v3505, %v3520
        %v3523 = vunpack.c.l.s4 1966171168
        %v3524 = vunpack.c.0.s8 %v3523
        %v3525 = vlaneseq
        %v3526 = vshrl.u32 %v3525, 7
        %v3527 = vsub.s32 %v3524, %v3526
        %v3528 = vrot.slane %v3506, %v3527
        %v3530 = vunpack.c.l.s4 1966171168
        %v3531 = vunpack.c.0.s8 %v3530
        %v3532 = vlaneseq
        %v3533 = vshrl.u32 %v3532, 7
        %v3534 = vsub.s32 %v3531, %v3533
        %v3535 = vrot.slane %v3507, %v3534
        %v3536 = vcombine.high %v3514, %v3514
        %v3537 = vcombine.high %v3521, %v3521
        %v3538 = vcombine.high %v3528, %v3528
        %v3539 = vcombine.high %v3535, %v3535
        %v3541 = vunpack.c.l.s4 1966171168
        %v3542 = vunpack.c.0.s8 %v3541
        %v3543 = vlaneseq
        %v3544 = vshrl.u32 %v3543, 7
        %v3545 = vsub.s32 %v3542, %v3544
        %v3546 = vrot.slane %v2337, %v3545
        %v3547 = vcombine.high %v3546, %v3546
        %v3549 = vunpack.c.l.s4 1966171168
        %v3550 = vunpack.c.0.s8 %v3549
        %v3551 = vlaneseq
        %v3552 = vshrl.u32 %v3551, 7
        %v3553 = vsub.s32 %v3550, %v3552
        %v3554 = vrot.slane %v3546, %v3553
        %v3556 = vunpack.c.l.s4 1966171168
        %v3557 = vunpack.c.0.s8 %v3556
        %v3558 = vlaneseq
        %v3559 = vshrl.u32 %v3558, 7
        %v3560 = vsub.s32 %v3557, %v3559
        %v3561 = vrot.slane %v3547, %v3560
        %v3562 = vcombine.high %v3554, %v3554
        %v3563 = vcombine.high %v2368, %v2368
        %v3565 = vunpack.c.l.s4 1966171168
        %v3566 = vunpack.c.0.s8 %v3565
        %v3567 = vlaneseq
        %v3568 = vshrl.u32 %v3567, 7
        %v3569 = vsub.s32 %v3566, %v3568
        %v3570 = vrot.slane %v2368, %v3569
        %v3572 = vunpack.c.l.s4 1966171168
        %v3573 = vunpack.c.0.s8 %v3572
        %v3574 = vlaneseq
        %v3575 = vshrl.u32 %v3574, 7
        %v3576 = vsub.s32 %v3573, %v3575
        %v3577 = vrot.slane %v3563, %v3576
        %v3578 = vcombine.high %v3570, %v3570
        %v3579 = vcombine.high %v3577, %v3577
        %v3581 = vunpack.c.l.s4 1966171168
        %v3582 = vunpack.c.0.s8 %v3581
        %v3583 = vlaneseq
        %v3584 = vshrl.u32 %v3583, 7
        %v3585 = vsub.s32 %v3582, %v3584
        %v3586 = vrot.slane %v3570, %v3585
        %v3588 = vunpack.c.l.s4 1966171168
        %v3589 = vunpack.c.0.s8 %v3588
        %v3590 = vlaneseq
        %v3591 = vshrl.u32 %v3590, 7
        %v3592 = vsub.s32 %v3589, %v3591
        %v3593 = vrot.slane %v3577, %v3592
        %v3595 = vunpack.c.l.s4 1966171168
        %v3596 = vunpack.c.0.s8 %v3595
        %v3597 = vlaneseq
        %v3598 = vshrl.u32 %v3597, 7
        %v3599 = vsub.s32 %v3596, %v3598
        %v3600 = vrot.slane %v3578, %v3599
        %v3602 = vunpack.c.l.s4 1966171168
        %v3603 = vunpack.c.0.s8 %v3602
        %v3604 = vlaneseq
        %v3605 = vshrl.u32 %v3604, 7
        %v3606 = vsub.s32 %v3603, %v3605
        %v3607 = vrot.slane %v3579, %v3606
        %v3608 = vcombine.high %v3586, %v3586
        %v3609 = vcombine.high %v3593, %v3593
        %v3610 = vcombine.high %v3600, %v3600
        %v3611 = vcombine.high %v3607, %v3607
        %v3613 = vunpack.c.l.s4 1966171168
        %v3614 = vunpack.c.0.s8 %v3613
        %v3615 = vlaneseq
        %v3616 = vshrl.u32 %v3615, 7
        %v3617 = vsub.s32 %v3614, %v3616
        %v3618 = vrot.slane %v2369, %v3617
        %v3619 = vcombine.high %v3618, %v3618
        %v3621 = vunpack.c.l.s4 1966171168
        %v3622 = vunpack.c.0.s8 %v3621
        %v3623 = vlaneseq
        %v3624 = vshrl.u32 %v3623, 7
        %v3625 = vsub.s32 %v3622, %v3624
        %v3626 = vrot.slane %v3618, %v3625
        %v3628 = vunpack.c.l.s4 1966171168
        %v3629 = vunpack.c.0.s8 %v3628
        %v3630 = vlaneseq
        %v3631 = vshrl.u32 %v3630, 7
        %v3632 = vsub.s32 %v3629, %v3631
        %v3633 = vrot.slane %v3619, %v3632
        %v3634 = vcombine.high %v3626, %v3626
        %v3635 = vcombine.high %v2400, %v2400
        %v3637 = vunpack.c.l.s4 1966171168
        %v3638 = vunpack.c.0.s8 %v3637
        %v3639 = vlaneseq
        %v3640 = vshrl.u32 %v3639, 7
        %v3641 = vsub.s32 %v3638, %v3640
        %v3642 = vrot.slane %v2400, %v3641
        %v3644 = vunpack.c.l.s4 1966171168
        %v3645 = vunpack.c.0.s8 %v3644
        %v3646 = vlaneseq
        %v3647 = vshrl.u32 %v3646, 7
        %v3648 = vsub.s32 %v3645, %v3647
        %v3649 = vrot.slane %v3635, %v3648
        %v3650 = vcombine.high %v3642, %v3642
        %v3651 = vcombine.high %v3649, %v3649
        %v3653 = vunpack.c.l.s4 1966171168
        %v3654 = vunpack.c.0.s8 %v3653
        %v3655 = vlaneseq
        %v3656 = vshrl.u32 %v3655, 7
        %v3657 = vsub.s32 %v3654, %v3656
        %v3658 = vrot.slane %v3642, %v3657
        %v3660 = vunpack.c.l.s4 1966171168
        %v3661 = vunpack.c.0.s8 %v3660
        %v3662 = vlaneseq
        %v3663 = vshrl.u32 %v3662, 7
        %v3664 = vsub.s32 %v3661, %v3663
        %v3665 = vrot.slane %v3649, %v3664
        %v3667 = vunpack.c.l.s4 1966171168
        %v3668 = vunpack.c.0.s8 %v3667
        %v3669 = vlaneseq
        %v3670 = vshrl.u32 %v3669, 7
        %v3671 = vsub.s32 %v3668, %v3670
        %v3672 = vrot.slane %v3650, %v3671
        %v3674 = vunpack.c.l.s4 1966171168
        %v3675 = vunpack.c.0.s8 %v3674
        %v3676 = vlaneseq
        %v3677 = vshrl.u32 %v3676, 7
        %v3678 = vsub.s32 %v3675, %v3677
        %v3679 = vrot.slane %v3651, %v3678
        %v3680 = vcombine.high %v3658, %v3658
        %v3681 = vcombine.high %v3665, %v3665
        %v3682 = vcombine.high %v3672, %v3672
        %v3683 = vcombine.high %v3679, %v3679
        %v3685 = vunpack.c.l.s4 1966171168
        %v3686 = vunpack.c.0.s8 %v3685
        %v3687 = vlaneseq
        %v3688 = vshrl.u32 %v3687, 7
        %v3689 = vsub.s32 %v3686, %v3688
        %v3690 = vrot.slane %v2401, %v3689
        %v3691 = vcombine.high %v3690, %v3690
        %v3693 = vunpack.c.l.s4 1966171168
        %v3694 = vunpack.c.0.s8 %v3693
        %v3695 = vlaneseq
        %v3696 = vshrl.u32 %v3695, 7
        %v3697 = vsub.s32 %v3694, %v3696
        %v3698 = vrot.slane %v3690, %v3697
        %v3700 = vunpack.c.l.s4 1966171168
        %v3701 = vunpack.c.0.s8 %v3700
        %v3702 = vlaneseq
        %v3703 = vshrl.u32 %v3702, 7
        %v3704 = vsub.s32 %v3701, %v3703
        %v3705 = vrot.slane %v3691, %v3704
        %v3706 = vcombine.high %v3698, %v3698
        %v3707 = vcombine.low %v3442, %v3456
        %v3708 = vcombine.low %v3464, %v3466
        %v3709 = vcombine.low %v3449, %v3463
        %v3710 = vcombine.low %v3465, %v3467
        %v3712 = vunpack.c.l.s4 1966171168
        %v3713 = vunpack.c.0.s8 %v3712
        %v3714 = vlaneseq
        %v3715 = vshrl.u32 %v3714, 7
        %v3716 = vsub.s32 %v3713, %v3715
        %v3717 = vrot.slane %v3707, %v3716
        %v3719 = vunpack.c.l.s4 1966171168
        %v3720 = vunpack.c.0.s8 %v3719
        %v3721 = vlaneseq
        %v3722 = vshrl.u32 %v3721, 7
        %v3723 = vsub.s32 %v3720, %v3722
        %v3724 = vrot.slane %v3708, %v3723
        %v3726 = vunpack.c.l.s4 1966171168
        %v3727 = vunpack.c.0.s8 %v3726
        %v3728 = vlaneseq
        %v3729 = vshrl.u32 %v3728, 7
        %v3730 = vsub.s32 %v3727, %v3729
        %v3731 = vrot.slane %v3709, %v3730
        %v3733 = vunpack.c.l.s4 1966171168
        %v3734 = vunpack.c.0.s8 %v3733
        %v3735 = vlaneseq
        %v3736 = vshrl.u32 %v3735, 7
        %v3737 = vsub.s32 %v3734, %v3736
        %v3738 = vrot.slane %v3710, %v3737
        %v3739 = vcombine.low %v3717, %v3724
        %v3740 = vcombine.low %v3731, %v3738
        %v3742 = vunpack.c.l.s4 1966171168
        %v3743 = vunpack.c.0.s8 %v3742
        %v3744 = vlaneseq
        %v3745 = vshrl.u32 %v3744, 7
        %v3746 = vsub.s32 %v3743, %v3745
        %v3747 = vrot.slane %v3739, %v3746
        %v3749 = vunpack.c.l.s4 1966171168
        %v3750 = vunpack.c.0.s8 %v3749
        %v3751 = vlaneseq
        %v3752 = vshrl.u32 %v3751, 7
        %v3753 = vsub.s32 %v3750, %v3752
        %v3754 = vrot.slane %v3740, %v3753
        %v3755 = vcombine.low %v3747, %v3754
        %v3756 = vcombine.low %v3482, %v3489
        %v3757 = vcombine.low %v3490, %v3514
        %v3758 = vcombine.low %v3528, %v3536
        %v3759 = vcombine.low %v3538, %v3521
        %v3761 = vunpack.c.l.s4 1966171168
        %v3762 = vunpack.c.0.s8 %v3761
        %v3763 = vlaneseq
        %v3764 = vshrl.u32 %v3763, 7
        %v3765 = vsub.s32 %v3762, %v3764
        %v3766 = vrot.slane %v3756, %v3765
        %v3768 = vunpack.c.l.s4 1966171168
        %v3769 = vunpack.c.0.s8 %v3768
        %v3770 = vlaneseq
        %v3771 = vshrl.u32 %v3770, 7
        %v3772 = vsub.s32 %v3769, %v3771
        %v3773 = vrot.slane %v3757, %v3772
        %v3775 = vunpack.c.l.s4 1966171168
        %v3776 = vunpack.c.0.s8 %v3775
        %v3777 = vlaneseq
        %v3778 = vshrl.u32 %v3777, 7
        %v3779 = vsub.s32 %v3776, %v3778
        %v3780 = vrot.slane %v3758, %v3779
        %v3782 = vunpack.c.l.s4 1966171168
        %v3783 = vunpack.c.0.s8 %v3782
        %v3784 = vlaneseq
        %v3785 = vshrl.u32 %v3784, 7
        %v3786 = vsub.s32 %v3783, %v3785
        %v3787 = vrot.slane %v3759, %v3786
        %v3788 = vcombine.low %v3766, %v3773
        %v3789 = vcombine.low %v3780, %v3787
        %v3791 = vunpack.c.l.s4 1966171168
        %v3792 = vunpack.c.0.s8 %v3791
        %v3793 = vlaneseq
        %v3794 = vshrl.u32 %v3793, 7
        %v3795 = vsub.s32 %v3792, %v3794
        %v3796 = vrot.slane %v3788, %v3795
        %v3798 = vunpack.c.l.s4 1966171168
        %v3799 = vunpack.c.0.s8 %v3798
        %v3800 = vlaneseq
        %v3801 = vshrl.u32 %v3800, 7
        %v3802 = vsub.s32 %v3799, %v3801
        %v3803 = vrot.slane %v3789, %v3802
        %v3804 = vcombine.low %v3796, %v3803
        %v3805 = vcombine.low %v3535, %v3537
        %v3806 = vcombine.low %v3539, %v3554
        %v3807 = vcombine.low %v3561, %v3562
        %v3808 = vcombine.low %v3586, %v3600
        %v3810 = vunpack.c.l.s4 1966171168
        %v3811 = vunpack.c.0.s8 %v3810
        %v3812 = vlaneseq
        %v3813 = vshrl.u32 %v3812, 7
        %v3814 = vsub.s32 %v3811, %v3813
        %v3815 = vrot.slane %v3805, %v3814
        %v3817 = vunpack.c.l.s4 1966171168
        %v3818 = vunpack.c.0.s8 %v3817
        %v3819 = vlaneseq
        %v3820 = vshrl.u32 %v3819, 7
        %v3821 = vsub.s32 %v3818, %v3820
        %v3822 = vrot.slane %v3806, %v3821
        %v3824 = vunpack.c.l.s4 1966171168
        %v3825 = vunpack.c.0.s8 %v3824
        %v3826 = vlaneseq
        %v3827 = vshrl.u32 %v3826, 7
        %v3828 = vsub.s32 %v3825, %v3827
        %v3829 = vrot.slane %v3807, %v3828
        %v3831 = vunpack.c.l.s4 1966171168
        %v3832 = vunpack.c.0.s8 %v3831
        %v3833 = vlaneseq
        %v3834 = vshrl.u32 %v3833, 7
        %v3835 = vsub.s32 %v3832, %v3834
        %v3836 = vrot.slane %v3808, %v3835
        %v3837 = vcombine.low %v3815, %v3822
        %v3838 = vcombine.low %v3829, %v3836
        %v3840 = vunpack.c.l.s4 1966171168
        %v3841 = vunpack.c.0.s8 %v3840
        %v3842 = vlaneseq
        %v3843 = vshrl.u32 %v3842, 7
        %v3844 = vsub.s32 %v3841, %v3843
        %v3845 = vrot.slane %v3837, %v3844
        %v3847 = vunpack.c.l.s4 1966171168
        %v3848 = vunpack.c.0.s8 %v3847
        %v3849 = vlaneseq
        %v3850 = vshrl.u32 %v3849, 7
        %v3851 = vsub.s32 %v3848, %v3850
        %v3852 = vrot.slane %v3838, %v3851
        %v3853 = vcombine.low %v3845, %v3852
        %v3854 = vcombine.low %v3608, %v3610
        %v3855 = vcombine.low %v3593, %v3607
        %v3856 = vcombine.low %v3609, %v3611
        %v3857 = vcombine.low %v3626, %v3633
        %v3859 = vunpack.c.l.s4 1966171168
        %v3860 = vunpack.c.0.s8 %v3859
        %v3861 = vlaneseq
        %v3862 = vshrl.u32 %v3861, 7
        %v3863 = vsub.s32 %v3860, %v3862
        %v3864 = vrot.slane %v3854, %v3863
        %v3866 = vunpack.c.l.s4 1966171168
        %v3867 = vunpack.c.0.s8 %v3866
        %v3868 = vlaneseq
        %v3869 = vshrl.u32 %v3868, 7
        %v3870 = vsub.s32 %v3867, %v3869
        %v3871 = vrot.slane %v3855, %v3870
        %v3873 = vunpack.c.l.s4 1966171168
        %v3874 = vunpack.c.0.s8 %v3873
        %v3875 = vlaneseq
        %v3876 = vshrl.u32 %v3875, 7
        %v3877 = vsub.s32 %v3874, %v3876
        %v3878 = vrot.slane %v3856, %v3877
        %v3880 = vunpack.c.l.s4 1966171168
        %v3881 = vunpack.c.0.s8 %v3880
        %v3882 = vlaneseq
        %v3883 = vshrl.u32 %v3882, 7
        %v3884 = vsub.s32 %v3881, %v3883
        %v3885 = vrot.slane %v3857, %v3884
        %v3886 = vcombine.low %v3864, %v3871
        %v3887 = vcombine.low %v3878, %v3885
        %v3889 = vunpack.c.l.s4 1966171168
        %v3890 = vunpack.c.0.s8 %v3889
        %v3891 = vlaneseq
        %v3892 = vshrl.u32 %v3891, 7
        %v3893 = vsub.s32 %v3890, %v3892
        %v3894 = vrot.slane %v3886, %v3893
        %v3896 = vunpack.c.l.s4 1966171168
        %v3897 = vunpack.c.0.s8 %v3896
        %v3898 = vlaneseq
        %v3899 = vshrl.u32 %v3898, 7
        %v3900 = vsub.s32 %v3897, %v3899
        %v3901 = vrot.slane %v3887, %v3900
        %v3902 = vcombine.low %v3894, %v3901
        %v3903 = vcombine.low %v3634, %v3658
        %v3904 = vcombine.low %v3672, %v3680
        %v3905 = vcombine.low %v3682, %v3665
        %v3906 = vcombine.low %v3679, %v3681
        %v3908 = vunpack.c.l.s4 1966171168
        %v3909 = vunpack.c.0.s8 %v3908
        %v3910 = vlaneseq
        %v3911 = vshrl.u32 %v3910, 7
        %v3912 = vsub.s32 %v3909, %v3911
        %v3913 = vrot.slane %v3903, %v3912
        %v3915 = vunpack.c.l.s4 1966171168
        %v3916 = vunpack.c.0.s8 %v3915
        %v3917 = vlaneseq
        %v3918 = vshrl.u32 %v3917, 7
        %v3919 = vsub.s32 %v3916, %v3918
        %v3920 = vrot.slane %v3904, %v3919
        %v3922 = vunpack.c.l.s4 1966171168
        %v3923 = vunpack.c.0.s8 %v3922
        %v3924 = vlaneseq
        %v3925 = vshrl.u32 %v3924, 7
        %v3926 = vsub.s32 %v3923, %v3925
        %v3927 = vrot.slane %v3905, %v3926
        %v3929 = vunpack.c.l.s4 1966171168
        %v3930 = vunpack.c.0.s8 %v3929
        %v3931 = vlaneseq
        %v3932 = vshrl.u32 %v3931, 7
        %v3933 = vsub.s32 %v3930, %v3932
        %v3934 = vrot.slane %v3906, %v3933
        %v3935 = vcombine.low %v3913, %v3920
        %v3936 = vcombine.low %v3927, %v3934
        %v3938 = vunpack.c.l.s4 1966171168
        %v3939 = vunpack.c.0.s8 %v3938
        %v3940 = vlaneseq
        %v3941 = vshrl.u32 %v3940, 7
        %v3942 = vsub.s32 %v3939, %v3941
        %v3943 = vrot.slane %v3935, %v3942
        %v3945 = vunpack.c.l.s4 1966171168
        %v3946 = vunpack.c.0.s8 %v3945
        %v3947 = vlaneseq
        %v3948 = vshrl.u32 %v3947, 7
        %v3949 = vsub.s32 %v3946, %v3948
        %v3950 = vrot.slane %v3936, %v3949
        %v3951 = vcombine.low %v3943, %v3950
        %v3952 = vcombine.low %v3683, %v3698
        %v3953 = vcombine.low %v3705, %v3706
        %v3955 = vunpack.c.l.s4 1966171168
        %v3956 = vunpack.c.0.s8 %v3955
        %v3957 = vlaneseq
        %v3958 = vshrl.u32 %v3957, 7
        %v3959 = vsub.s32 %v3956, %v3958
        %v3960 = vrot.slane %v3952, %v3959
        %v3962 = vunpack.c.l.s4 1966171168
        %v3963 = vunpack.c.0.s8 %v3962
        %v3964 = vlaneseq
        %v3965 = vshrl.u32 %v3964, 7
        %v3966 = vsub.s32 %v3963, %v3965
        %v3967 = vrot.slane %v3953, %v3966
        %v3968 = vcombine.low %v3960, %v3967
        %v3970 = vunpack.c.l.s4 1966171168
        %v3971 = vunpack.c.0.s8 %v3970
        %v3972 = vlaneseq
        %v3973 = vshrl.u32 %v3972, 7
        %v3974 = vsub.s32 %v3971, %v3973
        %v3975 = vrot.slane %v3968, %v3974
        %v3976 = vsel %vm1931, %v3755, 0
        %v3978 = vsel %vm1931, %v3804, 0
        %v3980 = vsel %vm1931, %v3853, 0
        %v3982 = vsel %vm1931, %v3902, 0
        %v3984 = vsel %vm1931, %v3951, 0
        %v3986 = vsel %vm1931, %v3975, 0
        %3988 = vmatprep.subr.mxu0 0.0
        %3989 = vmatpush1.msra.mxu0 %v3409
        %3990 = vmatprep.subr.mxu0 0.0
        %3991 = vmatpush1.msra.mxu0 %v3410
        %3992 = vmatprep.subr.mxu0 0.0
        %3993 = vmatpush1.msra.mxu0 0.0
        %3994 = vmatprep.subr.mxu0 0.0
        %3995 = vmatpush1.msra.mxu0 0.0
        %3996 = vmatprep.subr.mxu0 0.0
        %3997 = vmatpush1.msra.mxu0 0.0
        %3998 = vmatprep.subr.mxu0 0.0
        %3999 = vmatpush1.msra.mxu0 0.0
        %4000 = vmatprep.subr.mxu0 0.0
        %4001 = vmatpush1.msra.mxu0 0.0
        %4002 = vmatprep.subr.mxu0 0.0
        %4003 = vmatpush1.msra.mxu0 0.0
        %4004 = vmatprep.subr.mxu0 0.0
        %4005 = vmatpush1.msra.mxu0 0.0
        %4006 = vmatprep.subr.mxu0 0.0
        %4007 = vmatpush1.msra.mxu0 0.0
        %4008 = vmatprep.subr.mxu0 0.0
        %4009 = vmatpush1.msra.mxu0 0.0
        %4010 = vmatprep.subr.mxu0 0.0
        %4011 = vmatpush1.msra.mxu0 0.0
        %4012 = vmatprep.subr.mxu0 0.0
        %4013 = vmatpush1.msra.mxu0 0.0
        %4014 = vmatprep.subr.mxu0 0.0
        %4015 = vmatpush1.msra.mxu0 0.0
        %4016 = vmatprep.subr.mxu0 0.0
        %4017 = vmatpush1.msra.mxu0 0.0
        %4018 = vmatprep.subr.mxu0 0.0
        %4019 = vmatpush1.msra.mxu0 0.0
        %4020 = vmatprep.subr.mxu0 0.0
        %4021 = vmatpush1.msra.mxu0 0.0
        %4022 = vmatprep.subr.mxu0 0.0
        %4023 = vmatpush1.msra.mxu0 0.0
        %4024 = vmatprep.subr.mxu0 0.0
        %4025 = vmatpush1.msra.mxu0 0.0
        %4026 = vmatprep.subr.mxu0 0.0
        %4027 = vmatpush1.msra.mxu0 0.0
        %4028 = vmatprep.subr.mxu0 0.0
        %4029 = vmatpush1.msra.mxu0 0.0
        %4030 = vmatprep.subr.mxu0 0.0
        %4031 = vmatpush1.msra.mxu0 0.0
        %4032 = vmatprep.subr.mxu0 0.0
        %4033 = vmatpush1.msra.mxu0 0.0
        %4034 = vmatprep.subr.mxu0 0.0
        %4035 = vmatpush1.msra.mxu0 0.0
        %4036 = vmatprep.subr.mxu0 0.0
        %4037 = vmatpush1.msra.mxu0 0.0
        %4038 = vmatprep.subr.mxu0 0.0
        %4039 = vmatpush1.msra.mxu0 0.0
        %4040 = vmatprep.subr.mxu0 0.0
        %4041 = vmatpush1.msra.mxu0 0.0
        %4042 = vmatprep.subr.mxu0 0.0
        %4043 = vmatpush1.msra.mxu0 0.0
        %4044 = vmatprep.subr.mxu0 0.0
        %4045 = vmatpush1.msra.mxu0 0.0
        %4046 = vmatprep.subr.mxu0 0.0
        %4047 = vmatpush1.msra.mxu0 0.0
        %4048 = vmatprep.subr.mxu0 0.0
        %4049 = vmatpush1.msra.mxu0 0.0
        %4050 = vmatprep.subr.mxu0 0.0
        %4051 = vmatpush1.msra.mxu0 0.0
        %4052 = vmatprep.mubr.f32.mxu0 0.0
        %4053 = vmatmul.mubr.f32.gmra.mrb[0].mxu0 %v3976
        %v4054 = vpop.f32.mrb[0].mxu0
        %v4055 = vadd.f32 0.0, %v4054
        %v4056 = vpop.f32.mrb[0].mxu0
        %4057 = vmatprep.mubr.f32.mxu0 0.0
        %4058 = vmatmul.mubr.f32.gmra.mrb[0].mxu0 %v3978
        %v4059 = vpop.f32.mrb[0].mxu0
        %v4060 = vadd.f32 0.0, %v4059
        %v4061 = vpop.f32.mrb[0].mxu0
        %4062 = vmatprep.mubr.f32.mxu0 0.0
        %4063 = vmatmul.mubr.f32.gmra.mrb[0].mxu0 %v3980
        %v4064 = vpop.f32.mrb[0].mxu0
        %v4065 = vadd.f32 0.0, %v4064
        %v4066 = vpop.f32.mrb[0].mxu0
        %4067 = vmatprep.mubr.f32.mxu0 0.0
        %4068 = vmatmul.mubr.f32.gmra.mrb[0].mxu0 %v3982
        %v4069 = vpop.f32.mrb[0].mxu0
        %v4070 = vadd.f32 0.0, %v4069
        %v4071 = vpop.f32.mrb[0].mxu0
        %4072 = vmatprep.mubr.f32.mxu0 0.0
        %4073 = vmatmul.mubr.f32.gmra.mrb[0].mxu0 %v3984
        %v4074 = vpop.f32.mrb[0].mxu0
        %v4075 = vadd.f32 0.0, %v4074
        %v4076 = vpop.f32.mrb[0].mxu0
        %4077 = vmatprep.mubr.f32.mxu0 0.0
        %4078 = vmatmul.mubr.f32.gmra.mrb[0].mxu0 %v3986
        %v4079 = vpop.f32.mrb[0].mxu0
        %v4080 = vadd.f32 0.0, %v4079
        %v4081 = vpop.f32.mrb[0].mxu0
        %4082 = vdwg.mxu0
        %v4089 = vcombine.high %v4055, %v4055
        %v4091 = vunpack.c.l.s4 1966171168
        %v4092 = vunpack.c.0.s8 %v4091
        %v4093 = vlaneseq
        %v4094 = vshrl.u32 %v4093, 7
        %v4095 = vsub.s32 %v4092, %v4094
        %v4096 = vrot.slane %v4055, %v4095
        %v4098 = vunpack.c.l.s4 1966171168
        %v4099 = vunpack.c.0.s8 %v4098
        %v4100 = vlaneseq
        %v4101 = vshrl.u32 %v4100, 7
        %v4102 = vsub.s32 %v4099, %v4101
        %v4103 = vrot.slane %v4089, %v4102
        %v4104 = vcombine.high %v4096, %v4096
        %v4105 = vcombine.high %v4103, %v4103
        %v4107 = vunpack.c.l.s4 1966171168
        %v4108 = vunpack.c.0.s8 %v4107
        %v4109 = vlaneseq
        %v4110 = vshrl.u32 %v4109, 7
        %v4111 = vsub.s32 %v4108, %v4110
        %v4112 = vrot.slane %v4096, %v4111
        %v4114 = vunpack.c.l.s4 1966171168
        %v4115 = vunpack.c.0.s8 %v4114
        %v4116 = vlaneseq
        %v4117 = vshrl.u32 %v4116, 7
        %v4118 = vsub.s32 %v4115, %v4117
        %v4119 = vrot.slane %v4103, %v4118
        %v4121 = vunpack.c.l.s4 1966171168
        %v4122 = vunpack.c.0.s8 %v4121
        %v4123 = vlaneseq
        %v4124 = vshrl.u32 %v4123, 7
        %v4125 = vsub.s32 %v4122, %v4124
        %v4126 = vrot.slane %v4104, %v4125
        %v4128 = vunpack.c.l.s4 1966171168
        %v4129 = vunpack.c.0.s8 %v4128
        %v4130 = vlaneseq
        %v4131 = vshrl.u32 %v4130, 7
        %v4132 = vsub.s32 %v4129, %v4131
        %v4133 = vrot.slane %v4105, %v4132
        %v4134 = vcombine.high %v4112, %v4112
        %v4135 = vcombine.high %v4119, %v4119
        %v4136 = vcombine.high %v4126, %v4126
        %v4137 = vcombine.high %v4133, %v4133
        %v4138 = vcombine.high %v4060, %v4060
        %v4140 = vunpack.c.l.s4 1966171168
        %v4141 = vunpack.c.0.s8 %v4140
        %v4142 = vlaneseq
        %v4143 = vshrl.u32 %v4142, 7
        %v4144 = vsub.s32 %v4141, %v4143
        %v4145 = vrot.slane %v4060, %v4144
        %v4147 = vunpack.c.l.s4 1966171168
        %v4148 = vunpack.c.0.s8 %v4147
        %v4149 = vlaneseq
        %v4150 = vshrl.u32 %v4149, 7
        %v4151 = vsub.s32 %v4148, %v4150
        %v4152 = vrot.slane %v4138, %v4151
        %v4153 = vcombine.high %v4145, %v4145
        %v4154 = vcombine.high %v4152, %v4152
        %v4156 = vunpack.c.l.s4 1966171168
        %v4157 = vunpack.c.0.s8 %v4156
        %v4158 = vlaneseq
        %v4159 = vshrl.u32 %v4158, 7
        %v4160 = vsub.s32 %v4157, %v4159
        %v4161 = vrot.slane %v4145, %v4160
        %v4163 = vunpack.c.l.s4 1966171168
        %v4164 = vunpack.c.0.s8 %v4163
        %v4165 = vlaneseq
        %v4166 = vshrl.u32 %v4165, 7
        %v4167 = vsub.s32 %v4164, %v4166
        %v4168 = vrot.slane %v4152, %v4167
        %v4170 = vunpack.c.l.s4 1966171168
        %v4171 = vunpack.c.0.s8 %v4170
        %v4172 = vlaneseq
        %v4173 = vshrl.u32 %v4172, 7
        %v4174 = vsub.s32 %v4171, %v4173
        %v4175 = vrot.slane %v4153, %v4174
        %v4177 = vunpack.c.l.s4 1966171168
        %v4178 = vunpack.c.0.s8 %v4177
        %v4179 = vlaneseq
        %v4180 = vshrl.u32 %v4179, 7
        %v4181 = vsub.s32 %v4178, %v4180
        %v4182 = vrot.slane %v4154, %v4181
        %v4183 = vcombine.high %v4161, %v4161
        %v4184 = vcombine.high %v4168, %v4168
        %v4185 = vcombine.high %v4175, %v4175
        %v4186 = vcombine.high %v4182, %v4182
        %v4187 = vcombine.high %v4065, %v4065
        %v4189 = vunpack.c.l.s4 1966171168
        %v4190 = vunpack.c.0.s8 %v4189
        %v4191 = vlaneseq
        %v4192 = vshrl.u32 %v4191, 7
        %v4193 = vsub.s32 %v4190, %v4192
        %v4194 = vrot.slane %v4065, %v4193
        %v4196 = vunpack.c.l.s4 1966171168
        %v4197 = vunpack.c.0.s8 %v4196
        %v4198 = vlaneseq
        %v4199 = vshrl.u32 %v4198, 7
        %v4200 = vsub.s32 %v4197, %v4199
        %v4201 = vrot.slane %v4187, %v4200
        %v4202 = vcombine.high %v4194, %v4194
        %v4203 = vcombine.high %v4201, %v4201
        %v4205 = vunpack.c.l.s4 1966171168
        %v4206 = vunpack.c.0.s8 %v4205
        %v4207 = vlaneseq
        %v4208 = vshrl.u32 %v4207, 7
        %v4209 = vsub.s32 %v4206, %v4208
        %v4210 = vrot.slane %v4194, %v4209
        %v4212 = vunpack.c.l.s4 1966171168
        %v4213 = vunpack.c.0.s8 %v4212
        %v4214 = vlaneseq
        %v4215 = vshrl.u32 %v4214, 7
        %v4216 = vsub.s32 %v4213, %v4215
        %v4217 = vrot.slane %v4201, %v4216
        %v4219 = vunpack.c.l.s4 1966171168
        %v4220 = vunpack.c.0.s8 %v4219
        %v4221 = vlaneseq
        %v4222 = vshrl.u32 %v4221, 7
        %v4223 = vsub.s32 %v4220, %v4222
        %v4224 = vrot.slane %v4202, %v4223
        %v4226 = vunpack.c.l.s4 1966171168
        %v4227 = vunpack.c.0.s8 %v4226
        %v4228 = vlaneseq
        %v4229 = vshrl.u32 %v4228, 7
        %v4230 = vsub.s32 %v4227, %v4229
        %v4231 = vrot.slane %v4203, %v4230
        %v4232 = vcombine.high %v4210, %v4210
        %v4233 = vcombine.high %v4217, %v4217
        %v4234 = vcombine.high %v4224, %v4224
        %v4235 = vcombine.high %v4231, %v4231
        %v4236 = vcombine.high %v4070, %v4070
        %v4238 = vunpack.c.l.s4 1966171168
        %v4239 = vunpack.c.0.s8 %v4238
        %v4240 = vlaneseq
        %v4241 = vshrl.u32 %v4240, 7
        %v4242 = vsub.s32 %v4239, %v4241
        %v4243 = vrot.slane %v4070, %v4242
        %v4245 = vunpack.c.l.s4 1966171168
        %v4246 = vunpack.c.0.s8 %v4245
        %v4247 = vlaneseq
        %v4248 = vshrl.u32 %v4247, 7
        %v4249 = vsub.s32 %v4246, %v4248
        %v4250 = vrot.slane %v4236, %v4249
        %v4251 = vcombine.high %v4243, %v4243
        %v4252 = vcombine.high %v4250, %v4250
        %v4254 = vunpack.c.l.s4 1966171168
        %v4255 = vunpack.c.0.s8 %v4254
        %v4256 = vlaneseq
        %v4257 = vshrl.u32 %v4256, 7
        %v4258 = vsub.s32 %v4255, %v4257
        %v4259 = vrot.slane %v4243, %v4258
        %v4261 = vunpack.c.l.s4 1966171168
        %v4262 = vunpack.c.0.s8 %v4261
        %v4263 = vlaneseq
        %v4264 = vshrl.u32 %v4263, 7
        %v4265 = vsub.s32 %v4262, %v4264
        %v4266 = vrot.slane %v4250, %v4265
        %v4268 = vunpack.c.l.s4 1966171168
        %v4269 = vunpack.c.0.s8 %v4268
        %v4270 = vlaneseq
        %v4271 = vshrl.u32 %v4270, 7
        %v4272 = vsub.s32 %v4269, %v4271
        %v4273 = vrot.slane %v4251, %v4272
        %v4275 = vunpack.c.l.s4 1966171168
        %v4276 = vunpack.c.0.s8 %v4275
        %v4277 = vlaneseq
        %v4278 = vshrl.u32 %v4277, 7
        %v4279 = vsub.s32 %v4276, %v4278
        %v4280 = vrot.slane %v4252, %v4279
        %v4281 = vcombine.high %v4259, %v4259
        %v4282 = vcombine.high %v4266, %v4266
        %v4283 = vcombine.high %v4273, %v4273
        %v4284 = vcombine.high %v4280, %v4280
        %v4285 = vcombine.high %v4075, %v4075
        %v4287 = vunpack.c.l.s4 1966171168
        %v4288 = vunpack.c.0.s8 %v4287
        %v4289 = vlaneseq
        %v4290 = vshrl.u32 %v4289, 7
        %v4291 = vsub.s32 %v4288, %v4290
        %v4292 = vrot.slane %v4075, %v4291
        %v4294 = vunpack.c.l.s4 1966171168
        %v4295 = vunpack.c.0.s8 %v4294
        %v4296 = vlaneseq
        %v4297 = vshrl.u32 %v4296, 7
        %v4298 = vsub.s32 %v4295, %v4297
        %v4299 = vrot.slane %v4285, %v4298
        %v4300 = vcombine.high %v4292, %v4292
        %v4301 = vcombine.high %v4299, %v4299
        %v4303 = vunpack.c.l.s4 1966171168
        %v4304 = vunpack.c.0.s8 %v4303
        %v4305 = vlaneseq
        %v4306 = vshrl.u32 %v4305, 7
        %v4307 = vsub.s32 %v4304, %v4306
        %v4308 = vrot.slane %v4292, %v4307
        %v4310 = vunpack.c.l.s4 1966171168
        %v4311 = vunpack.c.0.s8 %v4310
        %v4312 = vlaneseq
        %v4313 = vshrl.u32 %v4312, 7
        %v4314 = vsub.s32 %v4311, %v4313
        %v4315 = vrot.slane %v4299, %v4314
        %v4317 = vunpack.c.l.s4 1966171168
        %v4318 = vunpack.c.0.s8 %v4317
        %v4319 = vlaneseq
        %v4320 = vshrl.u32 %v4319, 7
        %v4321 = vsub.s32 %v4318, %v4320
        %v4322 = vrot.slane %v4300, %v4321
        %v4324 = vunpack.c.l.s4 1966171168
        %v4325 = vunpack.c.0.s8 %v4324
        %v4326 = vlaneseq
        %v4327 = vshrl.u32 %v4326, 7
        %v4328 = vsub.s32 %v4325, %v4327
        %v4329 = vrot.slane %v4301, %v4328
        %v4330 = vcombine.high %v4308, %v4308
        %v4331 = vcombine.high %v4315, %v4315
        %v4332 = vcombine.high %v4322, %v4322
        %v4333 = vcombine.high %v4329, %v4329
        %v4335 = vunpack.c.l.s4 1966171168
        %v4336 = vunpack.c.0.s8 %v4335
        %v4337 = vlaneseq
        %v4338 = vshrl.u32 %v4337, 7
        %v4339 = vsub.s32 %v4336, %v4338
        %v4340 = vrot.slane %v4080, %v4339
        %v4341 = vcombine.high %v4340, %v4340
        %v4343 = vunpack.c.l.s4 1966171168
        %v4344 = vunpack.c.0.s8 %v4343
        %v4345 = vlaneseq
        %v4346 = vshrl.u32 %v4345, 7
        %v4347 = vsub.s32 %v4344, %v4346
        %v4348 = vrot.slane %v4340, %v4347
        %v4350 = vunpack.c.l.s4 1966171168
        %v4351 = vunpack.c.0.s8 %v4350
        %v4352 = vlaneseq
        %v4353 = vshrl.u32 %v4352, 7
        %v4354 = vsub.s32 %v4351, %v4353
        %v4355 = vrot.slane %v4341, %v4354
        %v4356 = vcombine.high %v4348, %v4348
        %v4357 = vcombine.high %v4355, %v4355
        %v4402 = vld [vmem:[#allocation11] sm:$0xff]
        %v4403 = vld [vmem:[#allocation11 + $0x8] sm:$0xff]
        %4404 = vmatprep.subr.mxu0 0.0
        %4405 = vmatpush1.msra.mxu0 %v4402
        %4406 = vmatprep.subr.mxu0 0.0
        %4407 = vmatpush1.msra.mxu0 %v4403
        %4408 = vmatprep.subr.mxu0 0.0
        %4409 = vmatpush1.msra.mxu0 0.0
        %4410 = vmatprep.subr.mxu0 0.0
        %4411 = vmatpush1.msra.mxu0 0.0
        %4412 = vmatprep.subr.mxu0 0.0
        %4413 = vmatpush1.msra.mxu0 0.0
        %4414 = vmatprep.subr.mxu0 0.0
        %4415 = vmatpush1.msra.mxu0 0.0
        %4416 = vmatprep.subr.mxu0 0.0
        %4417 = vmatpush1.msra.mxu0 0.0
        %4418 = vmatprep.subr.mxu0 0.0
        %4419 = vmatpush1.msra.mxu0 0.0
        %4420 = vmatprep.subr.mxu0 0.0
        %4421 = vmatpush1.msra.mxu0 0.0
        %4422 = vmatprep.subr.mxu0 0.0
        %4423 = vmatpush1.msra.mxu0 0.0
        %4424 = vmatprep.subr.mxu0 0.0
        %4425 = vmatpush1.msra.mxu0 0.0
        %4426 = vmatprep.subr.mxu0 0.0
        %4427 = vmatpush1.msra.mxu0 0.0
        %4428 = vmatprep.subr.mxu0 0.0
        %4429 = vmatpush1.msra.mxu0 0.0
        %4430 = vmatprep.subr.mxu0 0.0
        %4431 = vmatpush1.msra.mxu0 0.0
        %4432 = vmatprep.subr.mxu0 0.0
        %4433 = vmatpush1.msra.mxu0 0.0
        %4434 = vmatprep.subr.mxu0 0.0
        %4435 = vmatpush1.msra.mxu0 0.0
        %4436 = vmatprep.subr.mxu0 0.0
        %4437 = vmatpush1.msra.mxu0 0.0
        %4438 = vmatprep.subr.mxu0 0.0
        %4439 = vmatpush1.msra.mxu0 0.0
        %4440 = vmatprep.subr.mxu0 0.0
        %4441 = vmatpush1.msra.mxu0 0.0
        %4442 = vmatprep.subr.mxu0 0.0
        %4443 = vmatpush1.msra.mxu0 0.0
        %4444 = vmatprep.subr.mxu0 0.0
        %4445 = vmatpush1.msra.mxu0 0.0
        %4446 = vmatprep.subr.mxu0 0.0
        %4447 = vmatpush1.msra.mxu0 0.0
        %4448 = vmatprep.subr.mxu0 0.0
        %4449 = vmatpush1.msra.mxu0 0.0
        %4450 = vmatprep.subr.mxu0 0.0
        %4451 = vmatpush1.msra.mxu0 0.0
        %4452 = vmatprep.subr.mxu0 0.0
        %4453 = vmatpush1.msra.mxu0 0.0
        %4454 = vmatprep.subr.mxu0 0.0
        %4455 = vmatpush1.msra.mxu0 0.0
        %4456 = vmatprep.subr.mxu0 0.0
        %4457 = vmatpush1.msra.mxu0 0.0
        %4458 = vmatprep.subr.mxu0 0.0
        %4459 = vmatpush1.msra.mxu0 0.0
        %4460 = vmatprep.subr.mxu0 0.0
        %4461 = vmatpush1.msra.mxu0 0.0
        %4462 = vmatprep.subr.mxu0 0.0
        %4463 = vmatpush1.msra.mxu0 0.0
        %4464 = vmatprep.subr.mxu0 0.0
        %4465 = vmatpush1.msra.mxu0 0.0
        %4466 = vmatprep.subr.mxu0 0.0
        %4467 = vmatpush1.msra.mxu0 0.0
        %4468 = vmatprep.mubr.f32.mxu0 0.0
        %4469 = vmatmul.mubr.f32.gmra.mrb[0].mxu0 %v3976
        %v4470 = vpop.f32.mrb[0].mxu0
        %v4471 = vadd.f32 0.0, %v4470
        %v4472 = vpop.f32.mrb[0].mxu0
        %4473 = vmatprep.mubr.f32.mxu0 0.0
        %4474 = vmatmul.mubr.f32.gmra.mrb[0].mxu0 %v3978
        %v4475 = vpop.f32.mrb[0].mxu0
        %v4476 = vadd.f32 0.0, %v4475
        %v4477 = vpop.f32.mrb[0].mxu0
        %4478 = vmatprep.mubr.f32.mxu0 0.0
        %4479 = vmatmul.mubr.f32.gmra.mrb[0].mxu0 %v3980
        %v4480 = vpop.f32.mrb[0].mxu0
        %v4481 = vadd.f32 0.0, %v4480
        %v4482 = vpop.f32.mrb[0].mxu0
        %4483 = vmatprep.mubr.f32.mxu0 0.0
        %4484 = vmatmul.mubr.f32.gmra.mrb[0].mxu0 %v3982
        %v4485 = vpop.f32.mrb[0].mxu0
        %v4486 = vadd.f32 0.0, %v4485
        %v4487 = vpop.f32.mrb[0].mxu0
        %4488 = vmatprep.mubr.f32.mxu0 0.0
        %4489 = vmatmul.mubr.f32.gmra.mrb[0].mxu0 %v3984
        %v4490 = vpop.f32.mrb[0].mxu0
        %v4491 = vadd.f32 0.0, %v4490
        %v4492 = vpop.f32.mrb[0].mxu0
        %4493 = vmatprep.mubr.f32.mxu0 0.0
        %4494 = vmatmul.mubr.f32.gmra.mrb[0].mxu0 %v3986
        %v4495 = vpop.f32.mrb[0].mxu0
        %v4496 = vadd.f32 0.0, %v4495
        %v4497 = vpop.f32.mrb[0].mxu0
        %4498 = vdwg.mxu0
        %v4505 = vcombine.high %v4471, %v4471
        %v4507 = vunpack.c.l.s4 1966171168
        %v4508 = vunpack.c.0.s8 %v4507
        %v4509 = vlaneseq
        %v4510 = vshrl.u32 %v4509, 7
        %v4511 = vsub.s32 %v4508, %v4510
        %v4512 = vrot.slane %v4471, %v4511
        %v4514 = vunpack.c.l.s4 1966171168
        %v4515 = vunpack.c.0.s8 %v4514
        %v4516 = vlaneseq
        %v4517 = vshrl.u32 %v4516, 7
        %v4518 = vsub.s32 %v4515, %v4517
        %v4519 = vrot.slane %v4505, %v4518
        %v4520 = vcombine.high %v4512, %v4512
        %v4521 = vcombine.high %v4519, %v4519
        %v4523 = vunpack.c.l.s4 1966171168
        %v4524 = vunpack.c.0.s8 %v4523
        %v4525 = vlaneseq
        %v4526 = vshrl.u32 %v4525, 7
        %v4527 = vsub.s32 %v4524, %v4526
        %v4528 = vrot.slane %v4512, %v4527
        %v4530 = vunpack.c.l.s4 1966171168
        %v4531 = vunpack.c.0.s8 %v4530
        %v4532 = vlaneseq
        %v4533 = vshrl.u32 %v4532, 7
        %v4534 = vsub.s32 %v4531, %v4533
        %v4535 = vrot.slane %v4519, %v4534
        %v4537 = vunpack.c.l.s4 1966171168
        %v4538 = vunpack.c.0.s8 %v4537
        %v4539 = vlaneseq
        %v4540 = vshrl.u32 %v4539, 7
        %v4541 = vsub.s32 %v4538, %v4540
        %v4542 = vrot.slane %v4520, %v4541
        %v4544 = vunpack.c.l.s4 1966171168
        %v4545 = vunpack.c.0.s8 %v4544
        %v4546 = vlaneseq
        %v4547 = vshrl.u32 %v4546, 7
        %v4548 = vsub.s32 %v4545, %v4547
        %v4549 = vrot.slane %v4521, %v4548
        %v4550 = vcombine.high %v4528, %v4528
        %v4551 = vcombine.high %v4535, %v4535
        %v4552 = vcombine.high %v4542, %v4542
        %v4553 = vcombine.high %v4549, %v4549
        %v4554 = vcombine.high %v4476, %v4476
        %v4556 = vunpack.c.l.s4 1966171168
        %v4557 = vunpack.c.0.s8 %v4556
        %v4558 = vlaneseq
        %v4559 = vshrl.u32 %v4558, 7
        %v4560 = vsub.s32 %v4557, %v4559
        %v4561 = vrot.slane %v4476, %v4560
        %v4563 = vunpack.c.l.s4 1966171168
        %v4564 = vunpack.c.0.s8 %v4563
        %v4565 = vlaneseq
        %v4566 = vshrl.u32 %v4565, 7
        %v4567 = vsub.s32 %v4564, %v4566
        %v4568 = vrot.slane %v4554, %v4567
        %v4569 = vcombine.high %v4561, %v4561
        %v4570 = vcombine.high %v4568, %v4568
        %v4572 = vunpack.c.l.s4 1966171168
        %v4573 = vunpack.c.0.s8 %v4572
        %v4574 = vlaneseq
        %v4575 = vshrl.u32 %v4574, 7
        %v4576 = vsub.s32 %v4573, %v4575
        %v4577 = vrot.slane %v4561, %v4576
        %v4579 = vunpack.c.l.s4 1966171168
        %v4580 = vunpack.c.0.s8 %v4579
        %v4581 = vlaneseq
        %v4582 = vshrl.u32 %v4581, 7
        %v4583 = vsub.s32 %v4580, %v4582
        %v4584 = vrot.slane %v4568, %v4583
        %v4586 = vunpack.c.l.s4 1966171168
        %v4587 = vunpack.c.0.s8 %v4586
        %v4588 = vlaneseq
        %v4589 = vshrl.u32 %v4588, 7
        %v4590 = vsub.s32 %v4587, %v4589
        %v4591 = vrot.slane %v4569, %v4590
        %v4593 = vunpack.c.l.s4 1966171168
        %v4594 = vunpack.c.0.s8 %v4593
        %v4595 = vlaneseq
        %v4596 = vshrl.u32 %v4595, 7
        %v4597 = vsub.s32 %v4594, %v4596
        %v4598 = vrot.slane %v4570, %v4597
        %v4599 = vcombine.high %v4577, %v4577
        %v4600 = vcombine.high %v4584, %v4584
        %v4601 = vcombine.high %v4591, %v4591
        %v4602 = vcombine.high %v4598, %v4598
        %v4603 = vcombine.high %v4481, %v4481
        %v4605 = vunpack.c.l.s4 1966171168
        %v4606 = vunpack.c.0.s8 %v4605
        %v4607 = vlaneseq
        %v4608 = vshrl.u32 %v4607, 7
        %v4609 = vsub.s32 %v4606, %v4608
        %v4610 = vrot.slane %v4481, %v4609
        %v4612 = vunpack.c.l.s4 1966171168
        %v4613 = vunpack.c.0.s8 %v4612
        %v4614 = vlaneseq
        %v4615 = vshrl.u32 %v4614, 7
        %v4616 = vsub.s32 %v4613, %v4615
        %v4617 = vrot.slane %v4603, %v4616
        %v4618 = vcombine.high %v4610, %v4610
        %v4619 = vcombine.high %v4617, %v4617
        %v4621 = vunpack.c.l.s4 1966171168
        %v4622 = vunpack.c.0.s8 %v4621
        %v4623 = vlaneseq
        %v4624 = vshrl.u32 %v4623, 7
        %v4625 = vsub.s32 %v4622, %v4624
        %v4626 = vrot.slane %v4610, %v4625
        %v4628 = vunpack.c.l.s4 1966171168
        %v4629 = vunpack.c.0.s8 %v4628
        %v4630 = vlaneseq
        %v4631 = vshrl.u32 %v4630, 7
        %v4632 = vsub.s32 %v4629, %v4631
        %v4633 = vrot.slane %v4617, %v4632
        %v4635 = vunpack.c.l.s4 1966171168
        %v4636 = vunpack.c.0.s8 %v4635
        %v4637 = vlaneseq
        %v4638 = vshrl.u32 %v4637, 7
        %v4639 = vsub.s32 %v4636, %v4638
        %v4640 = vrot.slane %v4618, %v4639
        %v4642 = vunpack.c.l.s4 1966171168
        %v4643 = vunpack.c.0.s8 %v4642
        %v4644 = vlaneseq
        %v4645 = vshrl.u32 %v4644, 7
        %v4646 = vsub.s32 %v4643, %v4645
        %v4647 = vrot.slane %v4619, %v4646
        %v4648 = vcombine.high %v4626, %v4626
        %v4649 = vcombine.high %v4633, %v4633
        %v4650 = vcombine.high %v4640, %v4640
        %v4651 = vcombine.high %v4647, %v4647
        %v4652 = vcombine.high %v4486, %v4486
        %v4654 = vunpack.c.l.s4 1966171168
        %v4655 = vunpack.c.0.s8 %v4654
        %v4656 = vlaneseq
        %v4657 = vshrl.u32 %v4656, 7
        %v4658 = vsub.s32 %v4655, %v4657
        %v4659 = vrot.slane %v4486, %v4658
        %v4661 = vunpack.c.l.s4 1966171168
        %v4662 = vunpack.c.0.s8 %v4661
        %v4663 = vlaneseq
        %v4664 = vshrl.u32 %v4663, 7
        %v4665 = vsub.s32 %v4662, %v4664
        %v4666 = vrot.slane %v4652, %v4665
        %v4667 = vcombine.high %v4659, %v4659
        %v4668 = vcombine.high %v4666, %v4666
        %v4670 = vunpack.c.l.s4 1966171168
        %v4671 = vunpack.c.0.s8 %v4670
        %v4672 = vlaneseq
        %v4673 = vshrl.u32 %v4672, 7
        %v4674 = vsub.s32 %v4671, %v4673
        %v4675 = vrot.slane %v4659, %v4674
        %v4677 = vunpack.c.l.s4 1966171168
        %v4678 = vunpack.c.0.s8 %v4677
        %v4679 = vlaneseq
        %v4680 = vshrl.u32 %v4679, 7
        %v4681 = vsub.s32 %v4678, %v4680
        %v4682 = vrot.slane %v4666, %v4681
        %v4684 = vunpack.c.l.s4 1966171168
        %v4685 = vunpack.c.0.s8 %v4684
        %v4686 = vlaneseq
        %v4687 = vshrl.u32 %v4686, 7
        %v4688 = vsub.s32 %v4685, %v4687
        %v4689 = vrot.slane %v4667, %v4688
        %v4691 = vunpack.c.l.s4 1966171168
        %v4692 = vunpack.c.0.s8 %v4691
        %v4693 = vlaneseq
        %v4694 = vshrl.u32 %v4693, 7
        %v4695 = vsub.s32 %v4692, %v4694
        %v4696 = vrot.slane %v4668, %v4695
        %v4697 = vcombine.high %v4675, %v4675
        %v4698 = vcombine.high %v4682, %v4682
        %v4699 = vcombine.high %v4689, %v4689
        %v4700 = vcombine.high %v4696, %v4696
        %v4701 = vcombine.high %v4491, %v4491
        %v4703 = vunpack.c.l.s4 1966171168
        %v4704 = vunpack.c.0.s8 %v4703
        %v4705 = vlaneseq
        %v4706 = vshrl.u32 %v4705, 7
        %v4707 = vsub.s32 %v4704, %v4706
        %v4708 = vrot.slane %v4491, %v4707
        %v4710 = vunpack.c.l.s4 1966171168
        %v4711 = vunpack.c.0.s8 %v4710
        %v4712 = vlaneseq
        %v4713 = vshrl.u32 %v4712, 7
        %v4714 = vsub.s32 %v4711, %v4713
        %v4715 = vrot.slane %v4701, %v4714
        %v4716 = vcombine.high %v4708, %v4708
        %v4717 = vcombine.high %v4715, %v4715
        %v4719 = vunpack.c.l.s4 1966171168
        %v4720 = vunpack.c.0.s8 %v4719
        %v4721 = vlaneseq
        %v4722 = vshrl.u32 %v4721, 7
        %v4723 = vsub.s32 %v4720, %v4722
        %v4724 = vrot.slane %v4708, %v4723
        %v4726 = vunpack.c.l.s4 1966171168
        %v4727 = vunpack.c.0.s8 %v4726
        %v4728 = vlaneseq
        %v4729 = vshrl.u32 %v4728, 7
        %v4730 = vsub.s32 %v4727, %v4729
        %v4731 = vrot.slane %v4715, %v4730
        %v4733 = vunpack.c.l.s4 1966171168
        %v4734 = vunpack.c.0.s8 %v4733
        %v4735 = vlaneseq
        %v4736 = vshrl.u32 %v4735, 7
        %v4737 = vsub.s32 %v4734, %v4736
        %v4738 = vrot.slane %v4716, %v4737
        %v4740 = vunpack.c.l.s4 1966171168
        %v4741 = vunpack.c.0.s8 %v4740
        %v4742 = vlaneseq
        %v4743 = vshrl.u32 %v4742, 7
        %v4744 = vsub.s32 %v4741, %v4743
        %v4745 = vrot.slane %v4717, %v4744
        %v4746 = vcombine.high %v4724, %v4724
        %v4747 = vcombine.high %v4731, %v4731
        %v4748 = vcombine.high %v4738, %v4738
        %v4749 = vcombine.high %v4745, %v4745
        %v4751 = vunpack.c.l.s4 1966171168
        %v4752 = vunpack.c.0.s8 %v4751
        %v4753 = vlaneseq
        %v4754 = vshrl.u32 %v4753, 7
        %v4755 = vsub.s32 %v4752, %v4754
        %v4756 = vrot.slane %v4496, %v4755
        %v4757 = vcombine.high %v4756, %v4756
        %v4759 = vunpack.c.l.s4 1966171168
        %v4760 = vunpack.c.0.s8 %v4759
        %v4761 = vlaneseq
        %v4762 = vshrl.u32 %v4761, 7
        %v4763 = vsub.s32 %v4760, %v4762
        %v4764 = vrot.slane %v4756, %v4763
        %v4766 = vunpack.c.l.s4 1966171168
        %v4767 = vunpack.c.0.s8 %v4766
        %v4768 = vlaneseq
        %v4769 = vshrl.u32 %v4768, 7
        %v4770 = vsub.s32 %v4767, %v4769
        %v4771 = vrot.slane %v4757, %v4770
        %v4772 = vcombine.high %v4764, %v4764
        %v4773 = vcombine.high %v4771, %v4771
        %v4818 = vand.u32 2147483647, %v3119
        %v4819 = vand.u32 2147483647, %v3133
        %v4820 = vand.u32 2147483647, %v3141
        %v4821 = vand.u32 2147483647, %v3143
        %v4822 = vand.u32 2147483647, %v3126
        %v4823 = vand.u32 2147483647, %v3140
        %v4824 = vand.u32 2147483647, %v3142
        %v4825 = vand.u32 2147483647, %v3144
        %v4826 = vand.u32 2147483647, %v3168
        %v4827 = vand.u32 2147483647, %v3182
        %v4828 = vand.u32 2147483647, %v3190
        %v4829 = vand.u32 2147483647, %v3192
        %v4830 = vand.u32 2147483647, %v3175
        %v4831 = vand.u32 2147483647, %v3189
        %v4832 = vand.u32 2147483647, %v3191
        %v4833 = vand.u32 2147483647, %v3193
        %v4834 = vand.u32 2147483647, %v3217
        %v4835 = vand.u32 2147483647, %v3231
        %v4836 = vand.u32 2147483647, %v3239
        %v4837 = vand.u32 2147483647, %v3241
        %v4838 = vand.u32 2147483647, %v3224
        %v4839 = vand.u32 2147483647, %v3238
        %v4840 = vand.u32 2147483647, %v3240
        %v4841 = vand.u32 2147483647, %v3242
        %v4842 = vand.u32 2147483647, %v3266
        %v4843 = vand.u32 2147483647, %v3280
        %v4844 = vand.u32 2147483647, %v3288
        %v4845 = vand.u32 2147483647, %v3290
        %v4846 = vand.u32 2147483647, %v3273
        %v4847 = vand.u32 2147483647, %v3287
        %v4848 = vand.u32 2147483647, %v3289
        %v4849 = vand.u32 2147483647, %v3291
        %v4850 = vand.u32 2147483647, %v3315
        %v4851 = vand.u32 2147483647, %v3329
        %v4852 = vand.u32 2147483647, %v3337
        %v4853 = vand.u32 2147483647, %v3339
        %v4854 = vand.u32 2147483647, %v3322
        %v4855 = vand.u32 2147483647, %v3336
        %v4856 = vand.u32 2147483647, %v3338
        %v4857 = vand.u32 2147483647, %v3340
        %v4858 = vand.u32 2147483647, %v3355
        %v4859 = vand.u32 2147483647, %v3362
        %v4860 = vand.u32 2147483647, %v3363
        %v4861 = vand.u32 2147483647, %v3364
        %v4862 = vand.u32 2147483647, %v4112
        %v4863 = vand.u32 2147483647, %v4126
        %v4864 = vand.u32 2147483647, %v4134
        %v4865 = vand.u32 2147483647, %v4136
        %v4866 = vand.u32 2147483647, %v4119
        %v4867 = vand.u32 2147483647, %v4133
        %v4868 = vand.u32 2147483647, %v4135
        %v4869 = vand.u32 2147483647, %v4137
        %v4870 = vand.u32 2147483647, %v4161
        %v4871 = vand.u32 2147483647, %v4175
        %v4872 = vand.u32 2147483647, %v4183
        %v4873 = vand.u32 2147483647, %v4185
        %v4874 = vand.u32 2147483647, %v4168
        %v4875 = vand.u32 2147483647, %v4182
        %v4876 = vand.u32 2147483647, %v4184
        %v4877 = vand.u32 2147483647, %v4186
        %v4878 = vand.u32 2147483647, %v4210
        %v4879 = vand.u32 2147483647, %v4224
        %v4880 = vand.u32 2147483647, %v4232
        %v4881 = vand.u32 2147483647, %v4234
        %v4882 = vand.u32 2147483647, %v4217
        %v4883 = vand.u32 2147483647, %v4231
        %v4884 = vand.u32 2147483647, %v4233
        %v4885 = vand.u32 2147483647, %v4235
        %v4886 = vand.u32 2147483647, %v4259
        %v4887 = vand.u32 2147483647, %v4273
        %v4888 = vand.u32 2147483647, %v4281
        %v4889 = vand.u32 2147483647, %v4283
        %v4890 = vand.u32 2147483647, %v4266
        %v4891 = vand.u32 2147483647, %v4280
        %v4892 = vand.u32 2147483647, %v4282
        %v4893 = vand.u32 2147483647, %v4284
        %v4894 = vand.u32 2147483647, %v4308
        %v4895 = vand.u32 2147483647, %v4322
        %v4896 = vand.u32 2147483647, %v4330
        %v4897 = vand.u32 2147483647, %v4332
        %v4898 = vand.u32 2147483647, %v4315
        %v4899 = vand.u32 2147483647, %v4329
        %v4900 = vand.u32 2147483647, %v4331
        %v4901 = vand.u32 2147483647, %v4333
        %v4902 = vand.u32 2147483647, %v4348
        %v4903 = vand.u32 2147483647, %v4355
        %v4904 = vand.u32 2147483647, %v4356
        %v4905 = vand.u32 2147483647, %v4357
        %v4906 = vadd.f32 %v4818, %v4862
        %v4907 = vadd.f32 %v4819, %v4863
        %v4908 = vadd.f32 %v4820, %v4864
        %v4909 = vadd.f32 %v4821, %v4865
        %v4910 = vadd.f32 %v4822, %v4866
        %v4911 = vadd.f32 %v4823, %v4867
        %v4912 = vadd.f32 %v4824, %v4868
        %v4913 = vadd.f32 %v4825, %v4869
        %v4914 = vadd.f32 %v4826, %v4870
        %v4915 = vadd.f32 %v4827, %v4871
        %v4916 = vadd.f32 %v4828, %v4872
        %v4917 = vadd.f32 %v4829, %v4873
        %v4918 = vadd.f32 %v4830, %v4874
        %v4919 = vadd.f32 %v4831, %v4875
        %v4920 = vadd.f32 %v4832, %v4876
        %v4921 = vadd.f32 %v4833, %v4877
        %v4922 = vadd.f32 %v4834, %v4878
        %v4923 = vadd.f32 %v4835, %v4879
        %v4924 = vadd.f32 %v4836, %v4880
        %v4925 = vadd.f32 %v4837, %v4881
        %v4926 = vadd.f32 %v4838, %v4882
        %v4927 = vadd.f32 %v4839, %v4883
        %v4928 = vadd.f32 %v4840, %v4884
        %v4929 = vadd.f32 %v4841, %v4885
        %v4930 = vadd.f32 %v4842, %v4886
        %v4931 = vadd.f32 %v4843, %v4887
        %v4932 = vadd.f32 %v4844, %v4888
        %v4933 = vadd.f32 %v4845, %v4889
        %v4934 = vadd.f32 %v4846, %v4890
        %v4935 = vadd.f32 %v4847, %v4891
        %v4936 = vadd.f32 %v4848, %v4892
        %v4937 = vadd.f32 %v4849, %v4893
        %v4938 = vadd.f32 %v4850, %v4894
        %v4939 = vadd.f32 %v4851, %v4895
        %v4940 = vadd.f32 %v4852, %v4896
        %v4941 = vadd.f32 %v4853, %v4897
        %v4942 = vadd.f32 %v4854, %v4898
        %v4943 = vadd.f32 %v4855, %v4899
        %v4944 = vadd.f32 %v4856, %v4900
        %v4945 = vadd.f32 %v4857, %v4901
        %v4946 = vadd.f32 %v4858, %v4902
        %v4947 = vadd.f32 %v4859, %v4903
        %v4948 = vadd.f32 %v4860, %v4904
        %v4949 = vadd.f32 %v4861, %v4905
        %v4950 = vand.u32 2147483647, %v4528
        %v4951 = vand.u32 2147483647, %v4542
        %v4952 = vand.u32 2147483647, %v4550
        %v4953 = vand.u32 2147483647, %v4552
        %v4954 = vand.u32 2147483647, %v4535
        %v4955 = vand.u32 2147483647, %v4549
        %v4956 = vand.u32 2147483647, %v4551
        %v4957 = vand.u32 2147483647, %v4553
        %v4958 = vand.u32 2147483647, %v4577
        %v4959 = vand.u32 2147483647, %v4591
        %v4960 = vand.u32 2147483647, %v4599
        %v4961 = vand.u32 2147483647, %v4601
        %v4962 = vand.u32 2147483647, %v4584
        %v4963 = vand.u32 2147483647, %v4598
        %v4964 = vand.u32 2147483647, %v4600
        %v4965 = vand.u32 2147483647, %v4602
        %v4966 = vand.u32 2147483647, %v4626
        %v4967 = vand.u32 2147483647, %v4640
        %v4968 = vand.u32 2147483647, %v4648
        %v4969 = vand.u32 2147483647, %v4650
        %v4970 = vand.u32 2147483647, %v4633
        %v4971 = vand.u32 2147483647, %v4647
        %v4972 = vand.u32 2147483647, %v4649
        %v4973 = vand.u32 2147483647, %v4651
        %v4974 = vand.u32 2147483647, %v4675
        %v4975 = vand.u32 2147483647, %v4689
        %v4976 = vand.u32 2147483647, %v4697
        %v4977 = vand.u32 2147483647, %v4699
        %v4978 = vand.u32 2147483647, %v4682
        %v4979 = vand.u32 2147483647, %v4696
        %v4980 = vand.u32 2147483647, %v4698
        %v4981 = vand.u32 2147483647, %v4700
        %v4982 = vand.u32 2147483647, %v4724
        %v4983 = vand.u32 2147483647, %v4738
        %v4984 = vand.u32 2147483647, %v4746
        %v4985 = vand.u32 2147483647, %v4748
        %v4986 = vand.u32 2147483647, %v4731
        %v4987 = vand.u32 2147483647, %v4745
        %v4988 = vand.u32 2147483647, %v4747
        %v4989 = vand.u32 2147483647, %v4749
        %v4990 = vand.u32 2147483647, %v4764
        %v4991 = vand.u32 2147483647, %v4771
        %v4992 = vand.u32 2147483647, %v4772
        %v4993 = vand.u32 2147483647, %v4773
        %v4994 = vadd.f32 %v4906, %v4950
        %v4995 = vadd.f32 %v4907, %v4951
        %v4996 = vadd.f32 %v4908, %v4952
        %v4997 = vadd.f32 %v4909, %v4953
        %v4998 = vadd.f32 %v4910, %v4954
        %v4999 = vadd.f32 %v4911, %v4955
        %v5000 = vadd.f32 %v4912, %v4956
        %v5001 = vadd.f32 %v4913, %v4957
        %v5002 = vadd.f32 %v4914, %v4958
        %v5003 = vadd.f32 %v4915, %v4959
        %v5004 = vadd.f32 %v4916, %v4960
        %v5005 = vadd.f32 %v4917, %v4961
        %v5006 = vadd.f32 %v4918, %v4962
        %v5007 = vadd.f32 %v4919, %v4963
        %v5008 = vadd.f32 %v4920, %v4964
        %v5009 = vadd.f32 %v4921, %v4965
        %v5010 = vadd.f32 %v4922, %v4966
        %v5011 = vadd.f32 %v4923, %v4967
        %v5012 = vadd.f32 %v4924, %v4968
        %v5013 = vadd.f32 %v4925, %v4969
        %v5014 = vadd.f32 %v4926, %v4970
        %v5015 = vadd.f32 %v4927, %v4971
        %v5016 = vadd.f32 %v4928, %v4972
        %v5017 = vadd.f32 %v4929, %v4973
        %v5018 = vadd.f32 %v4930, %v4974
        %v5019 = vadd.f32 %v4931, %v4975
        %v5020 = vadd.f32 %v4932, %v4976
        %v5021 = vadd.f32 %v4933, %v4977
        %v5022 = vadd.f32 %v4934, %v4978
        %v5023 = vadd.f32 %v4935, %v4979
        %v5024 = vadd.f32 %v4936, %v4980
        %v5025 = vadd.f32 %v4937, %v4981
        %v5026 = vadd.f32 %v4938, %v4982
        %v5027 = vadd.f32 %v4939, %v4983
        %v5028 = vadd.f32 %v4940, %v4984
        %v5029 = vadd.f32 %v4941, %v4985
        %v5030 = vadd.f32 %v4942, %v4986
        %v5031 = vadd.f32 %v4943, %v4987
        %v5032 = vadd.f32 %v4944, %v4988
        %v5033 = vadd.f32 %v4945, %v4989
        %v5034 = vadd.f32 %v4946, %v4990
        %v5035 = vadd.f32 %v4947, %v4991
        %v5036 = vadd.f32 %v4948, %v4992
        %v5037 = vadd.f32 %v4949, %v4993
        %v5038 = vld [vmem:[#allocation12] sm:$0xff]
        %v5039 = vld [vmem:[#allocation12 + $0x8] sm:$0x7]
        %v5084 = vcombine.low %v4994, %v4995
        %v5085 = vcombine.low %v4996, %v4997
        %v5086 = vcombine.low %v4998, %v4999
        %v5087 = vcombine.low %v5000, %v5001
        %v5089 = vunpack.c.l.s4 1966171168
        %v5090 = vunpack.c.0.s8 %v5089
        %v5091 = vlaneseq
        %v5092 = vshrl.u32 %v5091, 7
        %v5093 = vsub.s32 %v5090, %v5092
        %v5094 = vrot.slane %v5084, %v5093
        %v5096 = vunpack.c.l.s4 1966171168
        %v5097 = vunpack.c.0.s8 %v5096
        %v5098 = vlaneseq
        %v5099 = vshrl.u32 %v5098, 7
        %v5100 = vsub.s32 %v5097, %v5099
        %v5101 = vrot.slane %v5085, %v5100
        %v5103 = vunpack.c.l.s4 1966171168
        %v5104 = vunpack.c.0.s8 %v5103
        %v5105 = vlaneseq
        %v5106 = vshrl.u32 %v5105, 7
        %v5107 = vsub.s32 %v5104, %v5106
        %v5108 = vrot.slane %v5086, %v5107
        %v5110 = vunpack.c.l.s4 1966171168
        %v5111 = vunpack.c.0.s8 %v5110
        %v5112 = vlaneseq
        %v5113 = vshrl.u32 %v5112, 7
        %v5114 = vsub.s32 %v5111, %v5113
        %v5115 = vrot.slane %v5087, %v5114
        %v5116 = vcombine.low %v5094, %v5101
        %v5117 = vcombine.low %v5108, %v5115
        %v5119 = vunpack.c.l.s4 1966171168
        %v5120 = vunpack.c.0.s8 %v5119
        %v5121 = vlaneseq
        %v5122 = vshrl.u32 %v5121, 7
        %v5123 = vsub.s32 %v5120, %v5122
        %v5124 = vrot.slane %v5116, %v5123
        %v5126 = vunpack.c.l.s4 1966171168
        %v5127 = vunpack.c.0.s8 %v5126
        %v5128 = vlaneseq
        %v5129 = vshrl.u32 %v5128, 7
        %v5130 = vsub.s32 %v5127, %v5129
        %v5131 = vrot.slane %v5117, %v5130
        %v5132 = vcombine.low %v5124, %v5131
        %v5133 = vcombine.low %v5002, %v5003
        %v5134 = vcombine.low %v5004, %v5005
        %v5135 = vcombine.low %v5006, %v5007
        %v5136 = vcombine.low %v5008, %v5009
        %v5138 = vunpack.c.l.s4 1966171168
        %v5139 = vunpack.c.0.s8 %v5138
        %v5140 = vlaneseq
        %v5141 = vshrl.u32 %v5140, 7
        %v5142 = vsub.s32 %v5139, %v5141
        %v5143 = vrot.slane %v5133, %v5142
        %v5145 = vunpack.c.l.s4 1966171168
        %v5146 = vunpack.c.0.s8 %v5145
        %v5147 = vlaneseq
        %v5148 = vshrl.u32 %v5147, 7
        %v5149 = vsub.s32 %v5146, %v5148
        %v5150 = vrot.slane %v5134, %v5149
        %v5152 = vunpack.c.l.s4 1966171168
        %v5153 = vunpack.c.0.s8 %v5152
        %v5154 = vlaneseq
        %v5155 = vshrl.u32 %v5154, 7
        %v5156 = vsub.s32 %v5153, %v5155
        %v5157 = vrot.slane %v5135, %v5156
        %v5159 = vunpack.c.l.s4 1966171168
        %v5160 = vunpack.c.0.s8 %v5159
        %v5161 = vlaneseq
        %v5162 = vshrl.u32 %v5161, 7
        %v5163 = vsub.s32 %v5160, %v5162
        %v5164 = vrot.slane %v5136, %v5163
        %v5165 = vcombine.low %v5143, %v5150
        %v5166 = vcombine.low %v5157, %v5164
        %v5168 = vunpack.c.l.s4 1966171168
        %v5169 = vunpack.c.0.s8 %v5168
        %v5170 = vlaneseq
        %v5171 = vshrl.u32 %v5170, 7
        %v5172 = vsub.s32 %v5169, %v5171
        %v5173 = vrot.slane %v5165, %v5172
        %v5175 = vunpack.c.l.s4 1966171168
        %v5176 = vunpack.c.0.s8 %v5175
        %v5177 = vlaneseq
        %v5178 = vshrl.u32 %v5177, 7
        %v5179 = vsub.s32 %v5176, %v5178
        %v5180 = vrot.slane %v5166, %v5179
        %v5181 = vcombine.low %v5173, %v5180
        %v5182 = vcombine.low %v5010, %v5011
        %v5183 = vcombine.low %v5012, %v5013
        %v5184 = vcombine.low %v5014, %v5015
        %v5185 = vcombine.low %v5016, %v5017
        %v5187 = vunpack.c.l.s4 1966171168
        %v5188 = vunpack.c.0.s8 %v5187
        %v5189 = vlaneseq
        %v5190 = vshrl.u32 %v5189, 7
        %v5191 = vsub.s32 %v5188, %v5190
        %v5192 = vrot.slane %v5182, %v5191
        %v5194 = vunpack.c.l.s4 1966171168
        %v5195 = vunpack.c.0.s8 %v5194
        %v5196 = vlaneseq
        %v5197 = vshrl.u32 %v5196, 7
        %v5198 = vsub.s32 %v5195, %v5197
        %v5199 = vrot.slane %v5183, %v5198
        %v5201 = vunpack.c.l.s4 1966171168
        %v5202 = vunpack.c.0.s8 %v5201
        %v5203 = vlaneseq
        %v5204 = vshrl.u32 %v5203, 7
        %v5205 = vsub.s32 %v5202, %v5204
        %v5206 = vrot.slane %v5184, %v5205
        %v5208 = vunpack.c.l.s4 1966171168
        %v5209 = vunpack.c.0.s8 %v5208
        %v5210 = vlaneseq
        %v5211 = vshrl.u32 %v5210, 7
        %v5212 = vsub.s32 %v5209, %v5211
        %v5213 = vrot.slane %v5185, %v5212
        %v5214 = vcombine.low %v5192, %v5199
        %v5215 = vcombine.low %v5206, %v5213
        %v5217 = vunpack.c.l.s4 1966171168
        %v5218 = vunpack.c.0.s8 %v5217
        %v5219 = vlaneseq
        %v5220 = vshrl.u32 %v5219, 7
        %v5221 = vsub.s32 %v5218, %v5220
        %v5222 = vrot.slane %v5214, %v5221
        %v5224 = vunpack.c.l.s4 1966171168
        %v5225 = vunpack.c.0.s8 %v5224
        %v5226 = vlaneseq
        %v5227 = vshrl.u32 %v5226, 7
        %v5228 = vsub.s32 %v5225, %v5227
        %v5229 = vrot.slane %v5215, %v5228
        %v5230 = vcombine.low %v5222, %v5229
        %v5231 = vcombine.low %v5018, %v5019
        %v5232 = vcombine.low %v5020, %v5021
        %v5233 = vcombine.low %v5022, %v5023
        %v5234 = vcombine.low %v5024, %v5025
        %v5236 = vunpack.c.l.s4 1966171168
        %v5237 = vunpack.c.0.s8 %v5236
        %v5238 = vlaneseq
        %v5239 = vshrl.u32 %v5238, 7
        %v5240 = vsub.s32 %v5237, %v5239
        %v5241 = vrot.slane %v5231, %v5240
        %v5243 = vunpack.c.l.s4 1966171168
        %v5244 = vunpack.c.0.s8 %v5243
        %v5245 = vlaneseq
        %v5246 = vshrl.u32 %v5245, 7
        %v5247 = vsub.s32 %v5244, %v5246
        %v5248 = vrot.slane %v5232, %v5247
        %v5250 = vunpack.c.l.s4 1966171168
        %v5251 = vunpack.c.0.s8 %v5250
        %v5252 = vlaneseq
        %v5253 = vshrl.u32 %v5252, 7
        %v5254 = vsub.s32 %v5251, %v5253
        %v5255 = vrot.slane %v5233, %v5254
        %v5257 = vunpack.c.l.s4 1966171168
        %v5258 = vunpack.c.0.s8 %v5257
        %v5259 = vlaneseq
        %v5260 = vshrl.u32 %v5259, 7
        %v5261 = vsub.s32 %v5258, %v5260
        %v5262 = vrot.slane %v5234, %v5261
        %v5263 = vcombine.low %v5241, %v5248
        %v5264 = vcombine.low %v5255, %v5262
        %v5266 = vunpack.c.l.s4 1966171168
        %v5267 = vunpack.c.0.s8 %v5266
        %v5268 = vlaneseq
        %v5269 = vshrl.u32 %v5268, 7
        %v5270 = vsub.s32 %v5267, %v5269
        %v5271 = vrot.slane %v5263, %v5270
        %v5273 = vunpack.c.l.s4 1966171168
        %v5274 = vunpack.c.0.s8 %v5273
        %v5275 = vlaneseq
        %v5276 = vshrl.u32 %v5275, 7
        %v5277 = vsub.s32 %v5274, %v5276
        %v5278 = vrot.slane %v5264, %v5277
        %v5279 = vcombine.low %v5271, %v5278
        %v5280 = vcombine.low %v5026, %v5027
        %v5281 = vcombine.low %v5028, %v5029
        %v5282 = vcombine.low %v5030, %v5031
        %v5283 = vcombine.low %v5032, %v5033
        %v5285 = vunpack.c.l.s4 1966171168
        %v5286 = vunpack.c.0.s8 %v5285
        %v5287 = vlaneseq
        %v5288 = vshrl.u32 %v5287, 7
        %v5289 = vsub.s32 %v5286, %v5288
        %v5290 = vrot.slane %v5280, %v5289
        %v5292 = vunpack.c.l.s4 1966171168
        %v5293 = vunpack.c.0.s8 %v5292
        %v5294 = vlaneseq
        %v5295 = vshrl.u32 %v5294, 7
        %v5296 = vsub.s32 %v5293, %v5295
        %v5297 = vrot.slane %v5281, %v5296
        %v5299 = vunpack.c.l.s4 1966171168
        %v5300 = vunpack.c.0.s8 %v5299
        %v5301 = vlaneseq
        %v5302 = vshrl.u32 %v5301, 7
        %v5303 = vsub.s32 %v5300, %v5302
        %v5304 = vrot.slane %v5282, %v5303
        %v5306 = vunpack.c.l.s4 1966171168
        %v5307 = vunpack.c.0.s8 %v5306
        %v5308 = vlaneseq
        %v5309 = vshrl.u32 %v5308, 7
        %v5310 = vsub.s32 %v5307, %v5309
        %v5311 = vrot.slane %v5283, %v5310
        %v5312 = vcombine.low %v5290, %v5297
        %v5313 = vcombine.low %v5304, %v5311
        %v5315 = vunpack.c.l.s4 1966171168
        %v5316 = vunpack.c.0.s8 %v5315
        %v5317 = vlaneseq
        %v5318 = vshrl.u32 %v5317, 7
        %v5319 = vsub.s32 %v5316, %v5318
        %v5320 = vrot.slane %v5312, %v5319
        %v5322 = vunpack.c.l.s4 1966171168
        %v5323 = vunpack.c.0.s8 %v5322
        %v5324 = vlaneseq
        %v5325 = vshrl.u32 %v5324, 7
        %v5326 = vsub.s32 %v5323, %v5325
        %v5327 = vrot.slane %v5313, %v5326
        %v5328 = vcombine.low %v5320, %v5327
        %v5329 = vcombine.low %v5034, %v5035
        %v5330 = vcombine.low %v5036, %v5037
        %v5332 = vunpack.c.l.s4 1966171168
        %v5333 = vunpack.c.0.s8 %v5332
        %v5334 = vlaneseq
        %v5335 = vshrl.u32 %v5334, 7
        %v5336 = vsub.s32 %v5333, %v5335
        %v5337 = vrot.slane %v5329, %v5336
        %v5339 = vunpack.c.l.s4 1966171168
        %v5340 = vunpack.c.0.s8 %v5339
        %v5341 = vlaneseq
        %v5342 = vshrl.u32 %v5341, 7
        %v5343 = vsub.s32 %v5340, %v5342
        %v5344 = vrot.slane %v5330, %v5343
        %v5345 = vcombine.low %v5337, %v5344
        %v5347 = vunpack.c.l.s4 1966171168
        %v5348 = vunpack.c.0.s8 %v5347
        %v5349 = vlaneseq
        %v5350 = vshrl.u32 %v5349, 7
        %v5351 = vsub.s32 %v5348, %v5350
        %v5352 = vrot.slane %v5345, %v5351
        %vm5353 = vcmask 89088
        %v5354 = vsel %vm5353, %v5132, 0
        %v5356 = vsel %vm5353, %v5181, 0
        %v5358 = vsel %vm5353, %v5230, 0
        %v5360 = vsel %vm5353, %v5279, 0
        %v5362 = vsel %vm5353, %v5328, 0
        %v5364 = vsel %vm5353, %v5352, 0
        %vm5366 = vcmask 1042432
        %v5368 = vsel %vm5366, %v5039, 0
        %5370 = vmatprep.subr.mxu0 0.0
        %5371 = vmatpush1.msra.mxu0 %v5038
        %5372 = vmatprep.subr.mxu0 0.0
        %5373 = vmatpush1.msra.mxu0 %v5368
        %5374 = vmatprep.subr.mxu0 0.0
        %5375 = vmatpush1.msra.mxu0 0.0
        %5376 = vmatprep.subr.mxu0 0.0
        %5377 = vmatpush1.msra.mxu0 0.0
        %5378 = vmatprep.subr.mxu0 0.0
        %5379 = vmatpush1.msra.mxu0 0.0
        %5380 = vmatprep.subr.mxu0 0.0
        %5381 = vmatpush1.msra.mxu0 0.0
        %5382 = vmatprep.subr.mxu0 0.0
        %5383 = vmatpush1.msra.mxu0 0.0
        %5384 = vmatprep.subr.mxu0 0.0
        %5385 = vmatpush1.msra.mxu0 0.0
        %5386 = vmatprep.subr.mxu0 0.0
        %5387 = vmatpush1.msra.mxu0 0.0
        %5388 = vmatprep.subr.mxu0 0.0
        %5389 = vmatpush1.msra.mxu0 0.0
        %5390 = vmatprep.subr.mxu0 0.0
        %5391 = vmatpush1.msra.mxu0 0.0
        %5392 = vmatprep.subr.mxu0 0.0
        %5393 = vmatpush1.msra.mxu0 0.0
        %5394 = vmatprep.subr.mxu0 0.0
        %5395 = vmatpush1.msra.mxu0 0.0
        %5396 = vmatprep.subr.mxu0 0.0
        %5397 = vmatpush1.msra.mxu0 0.0
        %5398 = vmatprep.subr.mxu0 0.0
        %5399 = vmatpush1.msra.mxu0 0.0
        %5400 = vmatprep.subr.mxu0 0.0
        %5401 = vmatpush1.msra.mxu0 0.0
        %5402 = vmatprep.subr.mxu0 0.0
        %5403 = vmatpush1.msra.mxu0 0.0
        %5404 = vmatprep.subr.mxu0 0.0
        %5405 = vmatpush1.msra.mxu0 0.0
        %5406 = vmatprep.subr.mxu0 0.0
        %5407 = vmatpush1.msra.mxu0 0.0
        %5408 = vmatprep.subr.mxu0 0.0
        %5409 = vmatpush1.msra.mxu0 0.0
        %5410 = vmatprep.subr.mxu0 0.0
        %5411 = vmatpush1.msra.mxu0 0.0
        %5412 = vmatprep.subr.mxu0 0.0
        %5413 = vmatpush1.msra.mxu0 0.0
        %5414 = vmatprep.subr.mxu0 0.0
        %5415 = vmatpush1.msra.mxu0 0.0
        %5416 = vmatprep.subr.mxu0 0.0
        %5417 = vmatpush1.msra.mxu0 0.0
        %5418 = vmatprep.subr.mxu0 0.0
        %5419 = vmatpush1.msra.mxu0 0.0
        %5420 = vmatprep.subr.mxu0 0.0
        %5421 = vmatpush1.msra.mxu0 0.0
        %5422 = vmatprep.subr.mxu0 0.0
        %5423 = vmatpush1.msra.mxu0 0.0
        %5424 = vmatprep.subr.mxu0 0.0
        %5425 = vmatpush1.msra.mxu0 0.0
        %5426 = vmatprep.subr.mxu0 0.0
        %5427 = vmatpush1.msra.mxu0 0.0
        %5428 = vmatprep.subr.mxu0 0.0
        %5429 = vmatpush1.msra.mxu0 0.0
        %5430 = vmatprep.subr.mxu0 0.0
        %5431 = vmatpush1.msra.mxu0 0.0
        %5432 = vmatprep.subr.mxu0 0.0
        %5433 = vmatpush1.msra.mxu0 0.0
        %5434 = vmatprep.mubr.f32.mxu0 0.0
        %5435 = vmatmul.mubr.f32.gmra.mrb[0].mxu0 %v5354
        %v5436 = vpop.f32.mrb[0].mxu0
        %v5437 = vadd.f32 0.0, %v5436
        %v5438 = vpop.f32.mrb[0].mxu0
        %5439 = vmatprep.mubr.f32.mxu0 0.0
        %5440 = vmatmul.mubr.f32.gmra.mrb[0].mxu0 %v5356
        %v5441 = vpop.f32.mrb[0].mxu0
        %v5442 = vadd.f32 0.0, %v5441
        %v5443 = vpop.f32.mrb[0].mxu0
        %5444 = vmatprep.mubr.f32.mxu0 0.0
        %5445 = vmatmul.mubr.f32.gmra.mrb[0].mxu0 %v5358
        %v5446 = vpop.f32.mrb[0].mxu0
        %v5447 = vadd.f32 0.0, %v5446
        %v5448 = vpop.f32.mrb[0].mxu0
        %5449 = vmatprep.mubr.f32.mxu0 0.0
        %5450 = vmatmul.mubr.f32.gmra.mrb[0].mxu0 %v5360
        %v5451 = vpop.f32.mrb[0].mxu0
        %v5452 = vadd.f32 0.0, %v5451
        %v5453 = vpop.f32.mrb[0].mxu0
        %5454 = vmatprep.mubr.f32.mxu0 0.0
        %5455 = vmatmul.mubr.f32.gmra.mrb[0].mxu0 %v5362
        %v5456 = vpop.f32.mrb[0].mxu0
        %v5457 = vadd.f32 0.0, %v5456
        %v5458 = vpop.f32.mrb[0].mxu0
        %5459 = vmatprep.mubr.f32.mxu0 0.0
        %5460 = vmatmul.mubr.f32.gmra.mrb[0].mxu0 %v5364
        %v5461 = vpop.f32.mrb[0].mxu0
        %v5462 = vadd.f32 0.0, %v5461
        %v5463 = vpop.f32.mrb[0].mxu0
        %5464 = vdwg.mxu0
        %v5471 = vcombine.high %v5437, %v5437
        %v5473 = vunpack.c.l.s4 1966171168
        %v5474 = vunpack.c.0.s8 %v5473
        %v5475 = vlaneseq
        %v5476 = vshrl.u32 %v5475, 7
        %v5477 = vsub.s32 %v5474, %v5476
        %v5478 = vrot.slane %v5437, %v5477
        %v5480 = vunpack.c.l.s4 1966171168
        %v5481 = vunpack.c.0.s8 %v5480
        %v5482 = vlaneseq
        %v5483 = vshrl.u32 %v5482, 7
        %v5484 = vsub.s32 %v5481, %v5483
        %v5485 = vrot.slane %v5471, %v5484
        %v5486 = vcombine.high %v5478, %v5478
        %v5487 = vcombine.high %v5485, %v5485
        %v5489 = vunpack.c.l.s4 1966171168
        %v5490 = vunpack.c.0.s8 %v5489
        %v5491 = vlaneseq
        %v5492 = vshrl.u32 %v5491, 7
        %v5493 = vsub.s32 %v5490, %v5492
        %v5494 = vrot.slane %v5478, %v5493
        %v5496 = vunpack.c.l.s4 1966171168
        %v5497 = vunpack.c.0.s8 %v5496
        %v5498 = vlaneseq
        %v5499 = vshrl.u32 %v5498, 7
        %v5500 = vsub.s32 %v5497, %v5499
        %v5501 = vrot.slane %v5485, %v5500
        %v5503 = vunpack.c.l.s4 1966171168
        %v5504 = vunpack.c.0.s8 %v5503
        %v5505 = vlaneseq
        %v5506 = vshrl.u32 %v5505, 7
        %v5507 = vsub.s32 %v5504, %v5506
        %v5508 = vrot.slane %v5486, %v5507
        %v5510 = vunpack.c.l.s4 1966171168
        %v5511 = vunpack.c.0.s8 %v5510
        %v5512 = vlaneseq
        %v5513 = vshrl.u32 %v5512, 7
        %v5514 = vsub.s32 %v5511, %v5513
        %v5515 = vrot.slane %v5487, %v5514
        %v5516 = vcombine.high %v5494, %v5494
        %v5517 = vcombine.high %v5501, %v5501
        %v5518 = vcombine.high %v5508, %v5508
        %v5519 = vcombine.high %v5515, %v5515
        %v5520 = vcombine.high %v5442, %v5442
        %v5522 = vunpack.c.l.s4 1966171168
        %v5523 = vunpack.c.0.s8 %v5522
        %v5524 = vlaneseq
        %v5525 = vshrl.u32 %v5524, 7
        %v5526 = vsub.s32 %v5523, %v5525
        %v5527 = vrot.slane %v5442, %v5526
        %v5529 = vunpack.c.l.s4 1966171168
        %v5530 = vunpack.c.0.s8 %v5529
        %v5531 = vlaneseq
        %v5532 = vshrl.u32 %v5531, 7
        %v5533 = vsub.s32 %v5530, %v5532
        %v5534 = vrot.slane %v5520, %v5533
        %v5535 = vcombine.high %v5527, %v5527
        %v5536 = vcombine.high %v5534, %v5534
        %v5538 = vunpack.c.l.s4 1966171168
        %v5539 = vunpack.c.0.s8 %v5538
        %v5540 = vlaneseq
        %v5541 = vshrl.u32 %v5540, 7
        %v5542 = vsub.s32 %v5539, %v5541
        %v5543 = vrot.slane %v5527, %v5542
        %v5545 = vunpack.c.l.s4 1966171168
        %v5546 = vunpack.c.0.s8 %v5545
        %v5547 = vlaneseq
        %v5548 = vshrl.u32 %v5547, 7
        %v5549 = vsub.s32 %v5546, %v5548
        %v5550 = vrot.slane %v5534, %v5549
        %v5552 = vunpack.c.l.s4 1966171168
        %v5553 = vunpack.c.0.s8 %v5552
        %v5554 = vlaneseq
        %v5555 = vshrl.u32 %v5554, 7
        %v5556 = vsub.s32 %v5553, %v5555
        %v5557 = vrot.slane %v5535, %v5556
        %v5559 = vunpack.c.l.s4 1966171168
        %v5560 = vunpack.c.0.s8 %v5559
        %v5561 = vlaneseq
        %v5562 = vshrl.u32 %v5561, 7
        %v5563 = vsub.s32 %v5560, %v5562
        %v5564 = vrot.slane %v5536, %v5563
        %v5565 = vcombine.high %v5543, %v5543
        %v5566 = vcombine.high %v5550, %v5550
        %v5567 = vcombine.high %v5557, %v5557
        %v5568 = vcombine.high %v5564, %v5564
        %v5569 = vcombine.high %v5447, %v5447
        %v5571 = vunpack.c.l.s4 1966171168
        %v5572 = vunpack.c.0.s8 %v5571
        %v5573 = vlaneseq
        %v5574 = vshrl.u32 %v5573, 7
        %v5575 = vsub.s32 %v5572, %v5574
        %v5576 = vrot.slane %v5447, %v5575
        %v5578 = vunpack.c.l.s4 1966171168
        %v5579 = vunpack.c.0.s8 %v5578
        %v5580 = vlaneseq
        %v5581 = vshrl.u32 %v5580, 7
        %v5582 = vsub.s32 %v5579, %v5581
        %v5583 = vrot.slane %v5569, %v5582
        %v5584 = vcombine.high %v5576, %v5576
        %v5585 = vcombine.high %v5583, %v5583
        %v5587 = vunpack.c.l.s4 1966171168
        %v5588 = vunpack.c.0.s8 %v5587
        %v5589 = vlaneseq
        %v5590 = vshrl.u32 %v5589, 7
        %v5591 = vsub.s32 %v5588, %v5590
        %v5592 = vrot.slane %v5576, %v5591
        %v5594 = vunpack.c.l.s4 1966171168
        %v5595 = vunpack.c.0.s8 %v5594
        %v5596 = vlaneseq
        %v5597 = vshrl.u32 %v5596, 7
        %v5598 = vsub.s32 %v5595, %v5597
        %v5599 = vrot.slane %v5583, %v5598
        %v5601 = vunpack.c.l.s4 1966171168
        %v5602 = vunpack.c.0.s8 %v5601
        %v5603 = vlaneseq
        %v5604 = vshrl.u32 %v5603, 7
        %v5605 = vsub.s32 %v5602, %v5604
        %v5606 = vrot.slane %v5584, %v5605
        %v5608 = vunpack.c.l.s4 1966171168
        %v5609 = vunpack.c.0.s8 %v5608
        %v5610 = vlaneseq
        %v5611 = vshrl.u32 %v5610, 7
        %v5612 = vsub.s32 %v5609, %v5611
        %v5613 = vrot.slane %v5585, %v5612
        %v5614 = vcombine.high %v5592, %v5592
        %v5615 = vcombine.high %v5599, %v5599
        %v5616 = vcombine.high %v5606, %v5606
        %v5617 = vcombine.high %v5613, %v5613
        %v5618 = vcombine.high %v5452, %v5452
        %v5620 = vunpack.c.l.s4 1966171168
        %v5621 = vunpack.c.0.s8 %v5620
        %v5622 = vlaneseq
        %v5623 = vshrl.u32 %v5622, 7
        %v5624 = vsub.s32 %v5621, %v5623
        %v5625 = vrot.slane %v5452, %v5624
        %v5627 = vunpack.c.l.s4 1966171168
        %v5628 = vunpack.c.0.s8 %v5627
        %v5629 = vlaneseq
        %v5630 = vshrl.u32 %v5629, 7
        %v5631 = vsub.s32 %v5628, %v5630
        %v5632 = vrot.slane %v5618, %v5631
        %v5633 = vcombine.high %v5625, %v5625
        %v5634 = vcombine.high %v5632, %v5632
        %v5636 = vunpack.c.l.s4 1966171168
        %v5637 = vunpack.c.0.s8 %v5636
        %v5638 = vlaneseq
        %v5639 = vshrl.u32 %v5638, 7
        %v5640 = vsub.s32 %v5637, %v5639
        %v5641 = vrot.slane %v5625, %v5640
        %v5643 = vunpack.c.l.s4 1966171168
        %v5644 = vunpack.c.0.s8 %v5643
        %v5645 = vlaneseq
        %v5646 = vshrl.u32 %v5645, 7
        %v5647 = vsub.s32 %v5644, %v5646
        %v5648 = vrot.slane %v5632, %v5647
        %v5650 = vunpack.c.l.s4 1966171168
        %v5651 = vunpack.c.0.s8 %v5650
        %v5652 = vlaneseq
        %v5653 = vshrl.u32 %v5652, 7
        %v5654 = vsub.s32 %v5651, %v5653
        %v5655 = vrot.slane %v5633, %v5654
        %v5657 = vunpack.c.l.s4 1966171168
        %v5658 = vunpack.c.0.s8 %v5657
        %v5659 = vlaneseq
        %v5660 = vshrl.u32 %v5659, 7
        %v5661 = vsub.s32 %v5658, %v5660
        %v5662 = vrot.slane %v5634, %v5661
        %v5663 = vcombine.high %v5641, %v5641
        %v5664 = vcombine.high %v5648, %v5648
        %v5665 = vcombine.high %v5655, %v5655
        %v5666 = vcombine.high %v5662, %v5662
        %v5667 = vcombine.high %v5457, %v5457
        %v5669 = vunpack.c.l.s4 1966171168
        %v5670 = vunpack.c.0.s8 %v5669
        %v5671 = vlaneseq
        %v5672 = vshrl.u32 %v5671, 7
        %v5673 = vsub.s32 %v5670, %v5672
        %v5674 = vrot.slane %v5457, %v5673
        %v5676 = vunpack.c.l.s4 1966171168
        %v5677 = vunpack.c.0.s8 %v5676
        %v5678 = vlaneseq
        %v5679 = vshrl.u32 %v5678, 7
        %v5680 = vsub.s32 %v5677, %v5679
        %v5681 = vrot.slane %v5667, %v5680
        %v5682 = vcombine.high %v5674, %v5674
        %v5683 = vcombine.high %v5681, %v5681
        %v5685 = vunpack.c.l.s4 1966171168
        %v5686 = vunpack.c.0.s8 %v5685
        %v5687 = vlaneseq
        %v5688 = vshrl.u32 %v5687, 7
        %v5689 = vsub.s32 %v5686, %v5688
        %v5690 = vrot.slane %v5674, %v5689
        %v5692 = vunpack.c.l.s4 1966171168
        %v5693 = vunpack.c.0.s8 %v5692
        %v5694 = vlaneseq
        %v5695 = vshrl.u32 %v5694, 7
        %v5696 = vsub.s32 %v5693, %v5695
        %v5697 = vrot.slane %v5681, %v5696
        %v5699 = vunpack.c.l.s4 1966171168
        %v5700 = vunpack.c.0.s8 %v5699
        %v5701 = vlaneseq
        %v5702 = vshrl.u32 %v5701, 7
        %v5703 = vsub.s32 %v5700, %v5702
        %v5704 = vrot.slane %v5682, %v5703
        %v5706 = vunpack.c.l.s4 1966171168
        %v5707 = vunpack.c.0.s8 %v5706
        %v5708 = vlaneseq
        %v5709 = vshrl.u32 %v5708, 7
        %v5710 = vsub.s32 %v5707, %v5709
        %v5711 = vrot.slane %v5683, %v5710
        %v5712 = vcombine.high %v5690, %v5690
        %v5713 = vcombine.high %v5697, %v5697
        %v5714 = vcombine.high %v5704, %v5704
        %v5715 = vcombine.high %v5711, %v5711
        %v5717 = vunpack.c.l.s4 1966171168
        %v5718 = vunpack.c.0.s8 %v5717
        %v5719 = vlaneseq
        %v5720 = vshrl.u32 %v5719, 7
        %v5721 = vsub.s32 %v5718, %v5720
        %v5722 = vrot.slane %v5462, %v5721
        %v5723 = vcombine.high %v5722, %v5722
        %v5725 = vunpack.c.l.s4 1966171168
        %v5726 = vunpack.c.0.s8 %v5725
        %v5727 = vlaneseq
        %v5728 = vshrl.u32 %v5727, 7
        %v5729 = vsub.s32 %v5726, %v5728
        %v5730 = vrot.slane %v5722, %v5729
        %v5732 = vunpack.c.l.s4 1966171168
        %v5733 = vunpack.c.0.s8 %v5732
        %v5734 = vlaneseq
        %v5735 = vshrl.u32 %v5734, 7
        %v5736 = vsub.s32 %v5733, %v5735
        %v5737 = vrot.slane %v5723, %v5736
        %v5738 = vcombine.high %v5730, %v5730
        %v5739 = vcombine.high %v5737, %v5737
        %v5740 = vcombine.low %v5494, %v5508
        %v5741 = vcombine.low %v5516, %v5518
        %v5742 = vcombine.low %v5501, %v5515
        %v5743 = vcombine.low %v5517, %v5519
        %v5745 = vunpack.c.l.s4 1966171168
        %v5746 = vunpack.c.0.s8 %v5745
        %v5747 = vlaneseq
        %v5748 = vshrl.u32 %v5747, 7
        %v5749 = vsub.s32 %v5746, %v5748
        %v5750 = vrot.slane %v5740, %v5749
        %v5752 = vunpack.c.l.s4 1966171168
        %v5753 = vunpack.c.0.s8 %v5752
        %v5754 = vlaneseq
        %v5755 = vshrl.u32 %v5754, 7
        %v5756 = vsub.s32 %v5753, %v5755
        %v5757 = vrot.slane %v5741, %v5756
        %v5759 = vunpack.c.l.s4 1966171168
        %v5760 = vunpack.c.0.s8 %v5759
        %v5761 = vlaneseq
        %v5762 = vshrl.u32 %v5761, 7
        %v5763 = vsub.s32 %v5760, %v5762
        %v5764 = vrot.slane %v5742, %v5763
        %v5766 = vunpack.c.l.s4 1966171168
        %v5767 = vunpack.c.0.s8 %v5766
        %v5768 = vlaneseq
        %v5769 = vshrl.u32 %v5768, 7
        %v5770 = vsub.s32 %v5767, %v5769
        %v5771 = vrot.slane %v5743, %v5770
        %v5772 = vcombine.low %v5750, %v5757
        %v5773 = vcombine.low %v5764, %v5771
        %v5775 = vunpack.c.l.s4 1966171168
        %v5776 = vunpack.c.0.s8 %v5775
        %v5777 = vlaneseq
        %v5778 = vshrl.u32 %v5777, 7
        %v5779 = vsub.s32 %v5776, %v5778
        %v5780 = vrot.slane %v5772, %v5779
        %v5782 = vunpack.c.l.s4 1966171168
        %v5783 = vunpack.c.0.s8 %v5782
        %v5784 = vlaneseq
        %v5785 = vshrl.u32 %v5784, 7
        %v5786 = vsub.s32 %v5783, %v5785
        %v5787 = vrot.slane %v5773, %v5786
        %v5788 = vcombine.low %v5780, %v5787
        %v5789 = vcombine.low %v5543, %v5557
        %v5791 = vunpack.c.l.s4 1966171168
        %v5792 = vunpack.c.0.s8 %v5791
        %v5793 = vlaneseq
        %v5794 = vshrl.u32 %v5793, 7
        %v5795 = vsub.s32 %v5792, %v5794
        %v5796 = vrot.slane %v5789, %v5795
        %v5798 = vunpack.c.l.s4 1966171168
        %v5799 = vunpack.c.0.s8 %v5798
        %v5800 = vlaneseq
        %v5801 = vshrl.u32 %v5800, 7
        %v5802 = vsub.s32 %v5799, %v5801
        %v5803 = vrot.slane %v5565, %v5802
        %v5804 = vcombine.low %v5796, %v5803
        %v5806 = vunpack.c.l.s4 1966171168
        %v5807 = vunpack.c.0.s8 %v5806
        %v5808 = vlaneseq
        %v5809 = vshrl.u32 %v5808, 7
        %v5810 = vsub.s32 %v5807, %v5809
        %v5811 = vrot.slane %v5804, %v5810
        %v5812 = vcombine.low %v5567, %v5550
        %v5813 = vcombine.low %v5564, %v5566
        %v5814 = vcombine.low %v5568, %v5592
        %v5815 = vcombine.low %v5606, %v5614
        %v5817 = vunpack.c.l.s4 1966171168
        %v5818 = vunpack.c.0.s8 %v5817
        %v5819 = vlaneseq
        %v5820 = vshrl.u32 %v5819, 7
        %v5821 = vsub.s32 %v5818, %v5820
        %v5822 = vrot.slane %v5812, %v5821
        %v5824 = vunpack.c.l.s4 1966171168
        %v5825 = vunpack.c.0.s8 %v5824
        %v5826 = vlaneseq
        %v5827 = vshrl.u32 %v5826, 7
        %v5828 = vsub.s32 %v5825, %v5827
        %v5829 = vrot.slane %v5813, %v5828
        %v5831 = vunpack.c.l.s4 1966171168
        %v5832 = vunpack.c.0.s8 %v5831
        %v5833 = vlaneseq
        %v5834 = vshrl.u32 %v5833, 7
        %v5835 = vsub.s32 %v5832, %v5834
        %v5836 = vrot.slane %v5814, %v5835
        %v5838 = vunpack.c.l.s4 1966171168
        %v5839 = vunpack.c.0.s8 %v5838
        %v5840 = vlaneseq
        %v5841 = vshrl.u32 %v5840, 7
        %v5842 = vsub.s32 %v5839, %v5841
        %v5843 = vrot.slane %v5815, %v5842
        %v5844 = vcombine.low %v5822, %v5829
        %v5845 = vcombine.low %v5836, %v5843
        %v5847 = vunpack.c.l.s4 1966171168
        %v5848 = vunpack.c.0.s8 %v5847
        %v5849 = vlaneseq
        %v5850 = vshrl.u32 %v5849, 7
        %v5851 = vsub.s32 %v5848, %v5850
        %v5852 = vrot.slane %v5844, %v5851
        %v5854 = vunpack.c.l.s4 1966171168
        %v5855 = vunpack.c.0.s8 %v5854
        %v5856 = vlaneseq
        %v5857 = vshrl.u32 %v5856, 7
        %v5858 = vsub.s32 %v5855, %v5857
        %v5859 = vrot.slane %v5845, %v5858
        %v5860 = vcombine.low %v5852, %v5859
        %v5861 = vcombine.low %v5616, %v5599
        %v5863 = vunpack.c.l.s4 1966171168
        %v5864 = vunpack.c.0.s8 %v5863
        %v5865 = vlaneseq
        %v5866 = vshrl.u32 %v5865, 7
        %v5867 = vsub.s32 %v5864, %v5866
        %v5868 = vrot.slane %v5861, %v5867
        %v5870 = vunpack.c.l.s4 1966171168
        %v5871 = vunpack.c.0.s8 %v5870
        %v5872 = vlaneseq
        %v5873 = vshrl.u32 %v5872, 7
        %v5874 = vsub.s32 %v5871, %v5873
        %v5875 = vrot.slane %v5613, %v5874
        %v5876 = vcombine.low %v5868, %v5875
        %v5878 = vunpack.c.l.s4 1966171168
        %v5879 = vunpack.c.0.s8 %v5878
        %v5880 = vlaneseq
        %v5881 = vshrl.u32 %v5880, 7
        %v5882 = vsub.s32 %v5879, %v5881
        %v5883 = vrot.slane %v5876, %v5882
        %v5884 = vcombine.low %v5615, %v5617
        %v5885 = vcombine.low %v5641, %v5655
        %v5886 = vcombine.low %v5663, %v5665
        %v5887 = vcombine.low %v5648, %v5662
        %v5889 = vunpack.c.l.s4 1966171168
        %v5890 = vunpack.c.0.s8 %v5889
        %v5891 = vlaneseq
        %v5892 = vshrl.u32 %v5891, 7
        %v5893 = vsub.s32 %v5890, %v5892
        %v5894 = vrot.slane %v5884, %v5893
        %v5896 = vunpack.c.l.s4 1966171168
        %v5897 = vunpack.c.0.s8 %v5896
        %v5898 = vlaneseq
        %v5899 = vshrl.u32 %v5898, 7
        %v5900 = vsub.s32 %v5897, %v5899
        %v5901 = vrot.slane %v5885, %v5900
        %v5903 = vunpack.c.l.s4 1966171168
        %v5904 = vunpack.c.0.s8 %v5903
        %v5905 = vlaneseq
        %v5906 = vshrl.u32 %v5905, 7
        %v5907 = vsub.s32 %v5904, %v5906
        %v5908 = vrot.slane %v5886, %v5907
        %v5910 = vunpack.c.l.s4 1966171168
        %v5911 = vunpack.c.0.s8 %v5910
        %v5912 = vlaneseq
        %v5913 = vshrl.u32 %v5912, 7
        %v5914 = vsub.s32 %v5911, %v5913
        %v5915 = vrot.slane %v5887, %v5914
        %v5916 = vcombine.low %v5894, %v5901
        %v5917 = vcombine.low %v5908, %v5915
        %v5919 = vunpack.c.l.s4 1966171168
        %v5920 = vunpack.c.0.s8 %v5919
        %v5921 = vlaneseq
        %v5922 = vshrl.u32 %v5921, 7
        %v5923 = vsub.s32 %v5920, %v5922
        %v5924 = vrot.slane %v5916, %v5923
        %v5926 = vunpack.c.l.s4 1966171168
        %v5927 = vunpack.c.0.s8 %v5926
        %v5928 = vlaneseq
        %v5929 = vshrl.u32 %v5928, 7
        %v5930 = vsub.s32 %v5927, %v5929
        %v5931 = vrot.slane %v5917, %v5930
        %v5932 = vcombine.low %v5924, %v5931
        %v5933 = vcombine.low %v5664, %v5666
        %v5935 = vunpack.c.l.s4 1966171168
        %v5936 = vunpack.c.0.s8 %v5935
        %v5937 = vlaneseq
        %v5938 = vshrl.u32 %v5937, 7
        %v5939 = vsub.s32 %v5936, %v5938
        %v5940 = vrot.slane %v5933, %v5939
        %v5942 = vunpack.c.l.s4 1966171168
        %v5943 = vunpack.c.0.s8 %v5942
        %v5944 = vlaneseq
        %v5945 = vshrl.u32 %v5944, 7
        %v5946 = vsub.s32 %v5943, %v5945
        %v5947 = vrot.slane %v5690, %v5946
        %v5948 = vcombine.low %v5940, %v5947
        %v5950 = vunpack.c.l.s4 1966171168
        %v5951 = vunpack.c.0.s8 %v5950
        %v5952 = vlaneseq
        %v5953 = vshrl.u32 %v5952, 7
        %v5954 = vsub.s32 %v5951, %v5953
        %v5955 = vrot.slane %v5948, %v5954
        %v5956 = vcombine.low %v5704, %v5712
        %v5957 = vcombine.low %v5714, %v5697
        %v5958 = vcombine.low %v5711, %v5713
        %v5959 = vcombine.low %v5715, %v5730
        %v5961 = vunpack.c.l.s4 1966171168
        %v5962 = vunpack.c.0.s8 %v5961
        %v5963 = vlaneseq
        %v5964 = vshrl.u32 %v5963, 7
        %v5965 = vsub.s32 %v5962, %v5964
        %v5966 = vrot.slane %v5956, %v5965
        %v5968 = vunpack.c.l.s4 1966171168
        %v5969 = vunpack.c.0.s8 %v5968
        %v5970 = vlaneseq
        %v5971 = vshrl.u32 %v5970, 7
        %v5972 = vsub.s32 %v5969, %v5971
        %v5973 = vrot.slane %v5957, %v5972
        %v5975 = vunpack.c.l.s4 1966171168
        %v5976 = vunpack.c.0.s8 %v5975
        %v5977 = vlaneseq
        %v5978 = vshrl.u32 %v5977, 7
        %v5979 = vsub.s32 %v5976, %v5978
        %v5980 = vrot.slane %v5958, %v5979
        %v5982 = vunpack.c.l.s4 1966171168
        %v5983 = vunpack.c.0.s8 %v5982
        %v5984 = vlaneseq
        %v5985 = vshrl.u32 %v5984, 7
        %v5986 = vsub.s32 %v5983, %v5985
        %v5987 = vrot.slane %v5959, %v5986
        %v5988 = vcombine.low %v5966, %v5973
        %v5989 = vcombine.low %v5980, %v5987
        %v5991 = vunpack.c.l.s4 1966171168
        %v5992 = vunpack.c.0.s8 %v5991
        %v5993 = vlaneseq
        %v5994 = vshrl.u32 %v5993, 7
        %v5995 = vsub.s32 %v5992, %v5994
        %v5996 = vrot.slane %v5988, %v5995
        %v5998 = vunpack.c.l.s4 1966171168
        %v5999 = vunpack.c.0.s8 %v5998
        %v6000 = vlaneseq
        %v6001 = vshrl.u32 %v6000, 7
        %v6002 = vsub.s32 %v5999, %v6001
        %v6003 = vrot.slane %v5989, %v6002
        %v6004 = vcombine.low %v5996, %v6003
        %v6005 = vcombine.low %v5737, %v5738
        %v6007 = vunpack.c.l.s4 1966171168
        %v6008 = vunpack.c.0.s8 %v6007
        %v6009 = vlaneseq
        %v6010 = vshrl.u32 %v6009, 7
        %v6011 = vsub.s32 %v6008, %v6010
        %v6012 = vrot.slane %v6005, %v6011
        %v6014 = vunpack.c.l.s4 1966171168
        %v6015 = vunpack.c.0.s8 %v6014
        %v6016 = vlaneseq
        %v6017 = vshrl.u32 %v6016, 7
        %v6018 = vsub.s32 %v6015, %v6017
        %v6019 = vrot.slane %v5739, %v6018
        %v6020 = vcombine.low %v6012, %v6019
        %v6022 = vunpack.c.l.s4 1966171168
        %v6023 = vunpack.c.0.s8 %v6022
        %v6024 = vlaneseq
        %v6025 = vshrl.u32 %v6024, 7
        %v6026 = vsub.s32 %v6023, %v6025
        %v6027 = vrot.slane %v6020, %v6026
        %6036 = vxpose.xlu0.b32.start [1/16] %v5788, 128
        %6037 = vxpose.xlu0.b32.cont [2/16] %v5811, 128
        %6038 = vxpose.xlu0.b32.cont [3/16] 0.0, 128
        %6039 = vxpose.xlu0.b32.cont [4/16] 0.0, 128
        %6040 = vxpose.xlu0.b32.cont [5/16] 0.0, 128
        %6041 = vxpose.xlu0.b32.cont [6/16] 0.0, 128
        %6042 = vxpose.xlu0.b32.cont [7/16] 0.0, 128
        %6043 = vxpose.xlu0.b32.cont [8/16] 0.0, 128
        %6044 = vxpose.xlu0.b32.cont [9/16] 0.0, 128
        %6045 = vxpose.xlu0.b32.cont [10/16] 0.0, 128
        %6046 = vxpose.xlu0.b32.cont [11/16] 0.0, 128
        %6047 = vxpose.xlu0.b32.cont [12/16] 0.0, 128
        %6048 = vxpose.xlu0.b32.cont [13/16] 0.0, 128
        %6049 = vxpose.xlu0.b32.cont [14/16] 0.0, 128
        %6050 = vxpose.xlu0.b32.cont [15/16] 0.0, 128
        %6051 = vxpose.xlu0.b32.end [16/16] 0.0, 128
        %v6052 = vpop.trf.xlu0
        %v6053 = vpop.trf.xlu0
        %v6054 = vpop.trf.xlu0
        %v6055 = vpop.trf.xlu0
        %v6056 = vpop.trf.xlu0
        %v6057 = vpop.trf.xlu0
        %v6058 = vpop.trf.xlu0
        %v6059 = vpop.trf.xlu0
        %v6060 = vpop.trf.xlu0
        %v6061 = vpop.trf.xlu0
        %v6062 = vpop.trf.xlu0
        %v6063 = vpop.trf.xlu0
        %v6064 = vpop.trf.xlu0
        %v6065 = vpop.trf.xlu0
        %v6066 = vpop.trf.xlu0
        %v6067 = vpop.trf.xlu0
        %6068 = vxpose.xlu0.b32.start [1/16] %v5860, 128
        %6069 = vxpose.xlu0.b32.cont [2/16] %v5883, 128
        %6070 = vxpose.xlu0.b32.cont [3/16] 0.0, 128
        %6071 = vxpose.xlu0.b32.cont [4/16] 0.0, 128
        %6072 = vxpose.xlu0.b32.cont [5/16] 0.0, 128
        %6073 = vxpose.xlu0.b32.cont [6/16] 0.0, 128
        %6074 = vxpose.xlu0.b32.cont [7/16] 0.0, 128
        %6075 = vxpose.xlu0.b32.cont [8/16] 0.0, 128
        %6076 = vxpose.xlu0.b32.cont [9/16] 0.0, 128
        %6077 = vxpose.xlu0.b32.cont [10/16] 0.0, 128
        %6078 = vxpose.xlu0.b32.cont [11/16] 0.0, 128
        %6079 = vxpose.xlu0.b32.cont [12/16] 0.0, 128
        %6080 = vxpose.xlu0.b32.cont [13/16] 0.0, 128
        %6081 = vxpose.xlu0.b32.cont [14/16] 0.0, 128
        %6082 = vxpose.xlu0.b32.cont [15/16] 0.0, 128
        %6083 = vxpose.xlu0.b32.end [16/16] 0.0, 128
        %v6084 = vpop.trf.xlu0
        %v6085 = vpop.trf.xlu0
        %v6086 = vpop.trf.xlu0
        %v6087 = vpop.trf.xlu0
        %v6088 = vpop.trf.xlu0
        %v6089 = vpop.trf.xlu0
        %v6090 = vpop.trf.xlu0
        %v6091 = vpop.trf.xlu0
        %v6092 = vpop.trf.xlu0
        %v6093 = vpop.trf.xlu0
        %v6094 = vpop.trf.xlu0
        %v6095 = vpop.trf.xlu0
        %v6096 = vpop.trf.xlu0
        %v6097 = vpop.trf.xlu0
        %v6098 = vpop.trf.xlu0
        %v6099 = vpop.trf.xlu0
        %6100 = vxpose.xlu0.b32.start [1/16] %v5932, 128
        %6101 = vxpose.xlu0.b32.cont [2/16] %v5955, 128
        %6102 = vxpose.xlu0.b32.cont [3/16] 0.0, 128
        %6103 = vxpose.xlu0.b32.cont [4/16] 0.0, 128
        %6104 = vxpose.xlu0.b32.cont [5/16] 0.0, 128
        %6105 = vxpose.xlu0.b32.cont [6/16] 0.0, 128
        %6106 = vxpose.xlu0.b32.cont [7/16] 0.0, 128
        %6107 = vxpose.xlu0.b32.cont [8/16] 0.0, 128
        %6108 = vxpose.xlu0.b32.cont [9/16] 0.0, 128
        %6109 = vxpose.xlu0.b32.cont [10/16] 0.0, 128
        %6110 = vxpose.xlu0.b32.cont [11/16] 0.0, 128
        %6111 = vxpose.xlu0.b32.cont [12/16] 0.0, 128
        %6112 = vxpose.xlu0.b32.cont [13/16] 0.0, 128
        %6113 = vxpose.xlu0.b32.cont [14/16] 0.0, 128
        %6114 = vxpose.xlu0.b32.cont [15/16] 0.0, 128
        %6115 = vxpose.xlu0.b32.end [16/16] 0.0, 128
        %v6116 = vpop.trf.xlu0
        %v6117 = vpop.trf.xlu0
        %v6118 = vpop.trf.xlu0
        %v6119 = vpop.trf.xlu0
        %v6120 = vpop.trf.xlu0
        %v6121 = vpop.trf.xlu0
        %v6122 = vpop.trf.xlu0
        %v6123 = vpop.trf.xlu0
        %v6124 = vpop.trf.xlu0
        %v6125 = vpop.trf.xlu0
        %v6126 = vpop.trf.xlu0
        %v6127 = vpop.trf.xlu0
        %v6128 = vpop.trf.xlu0
        %v6129 = vpop.trf.xlu0
        %v6130 = vpop.trf.xlu0
        %v6131 = vpop.trf.xlu0
        %6132 = vxpose.xlu0.b32.start [1/16] %v6004, 128
        %6133 = vxpose.xlu0.b32.cont [2/16] %v6027, 128
        %6134 = vxpose.xlu0.b32.cont [3/16] 0.0, 128
        %6135 = vxpose.xlu0.b32.cont [4/16] 0.0, 128
        %6136 = vxpose.xlu0.b32.cont [5/16] 0.0, 128
        %6137 = vxpose.xlu0.b32.cont [6/16] 0.0, 128
        %6138 = vxpose.xlu0.b32.cont [7/16] 0.0, 128
        %6139 = vxpose.xlu0.b32.cont [8/16] 0.0, 128
        %6140 = vxpose.xlu0.b32.cont [9/16] 0.0, 128
        %6141 = vxpose.xlu0.b32.cont [10/16] 0.0, 128
        %6142 = vxpose.xlu0.b32.cont [11/16] 0.0, 128
        %6143 = vxpose.xlu0.b32.cont [12/16] 0.0, 128
        %6144 = vxpose.xlu0.b32.cont [13/16] 0.0, 128
        %6145 = vxpose.xlu0.b32.cont [14/16] 0.0, 128
        %6146 = vxpose.xlu0.b32.cont [15/16] 0.0, 128
        %6147 = vxpose.xlu0.b32.end [16/16] 0.0, 128
        %v6148 = vpop.trf.xlu0
        %v6149 = vpop.trf.xlu0
        %v6150 = vpop.trf.xlu0
        %v6151 = vpop.trf.xlu0
        %v6152 = vpop.trf.xlu0
        %v6153 = vpop.trf.xlu0
        %v6154 = vpop.trf.xlu0
        %v6155 = vpop.trf.xlu0
        %v6156 = vpop.trf.xlu0
        %v6157 = vpop.trf.xlu0
        %v6158 = vpop.trf.xlu0
        %v6159 = vpop.trf.xlu0
        %v6160 = vpop.trf.xlu0
        %v6161 = vpop.trf.xlu0
        %v6162 = vpop.trf.xlu0
        %v6163 = vpop.trf.xlu0
        %v6164 = vld [vmem:[#allocation14] sm:$0xff]
        %v6165 = vld [vmem:[#allocation14 + $0x8] sm:$0x7]
        %6174 = vrot.lane.b32.xlu0 %v1921, 127
        %v6175 = vpop.permute.xlu0 %6174
        %6176 = vrot.lane.b32.xlu0 %v1922, 127
        %v6177 = vpop.permute.xlu0 %6176
        %6178 = vrot.lane.b32.xlu0 %v1923, 127
        %v6179 = vpop.permute.xlu0 %6178
        %6180 = vrot.lane.b32.xlu0 %v1924, 127
        %v6181 = vpop.permute.xlu0 %6180
        %6182 = vrot.lane.b32.xlu0 %v1925, 127
        %v6183 = vpop.permute.xlu0 %6182
        %6184 = vrot.lane.b32.xlu0 %v1926, 127
        %v6185 = vpop.permute.xlu0 %6184
        %6186 = vrot.lane.b32.xlu0 %v1927, 127
        %v6187 = vpop.permute.xlu0 %6186
        %6188 = vrot.lane.b32.xlu0 %v1928, 127
        %v6189 = vpop.permute.xlu0 %6188
        %v6199 = vsel %vm5353, %v6052, 0
        %v6202 = vsel %vm5353, %v6053, 0
        %v6205 = vsel %vm5353, %v6084, 0
        %v6208 = vsel %vm5353, %v6085, 0
        %v6211 = vsel %vm5353, %v6116, 0
        %v6214 = vsel %vm5353, %v6117, 0
        %v6217 = vsel %vm5353, %v6148, 0
        %v6220 = vsel %vm5353, %v6149, 0
        %v6223 = vsel %vm5366, %v6165, 0
        %6225 = vmatprep.subr.mxu0 0.0
        %6226 = vmatpush1.msra.mxu0 %v6164
        %6227 = vmatprep.subr.mxu0 0.0
        %6228 = vmatpush1.msra.mxu0 %v6223
        %6229 = vmatprep.subr.mxu0 0.0
        %6230 = vmatpush1.msra.mxu0 0.0
        %6231 = vmatprep.subr.mxu0 0.0
        %6232 = vmatpush1.msra.mxu0 0.0
        %6233 = vmatprep.subr.mxu0 0.0
        %6234 = vmatpush1.msra.mxu0 0.0
        %6235 = vmatprep.subr.mxu0 0.0
        %6236 = vmatpush1.msra.mxu0 0.0
        %6237 = vmatprep.subr.mxu0 0.0
        %6238 = vmatpush1.msra.mxu0 0.0
        %6239 = vmatprep.subr.mxu0 0.0
        %6240 = vmatpush1.msra.mxu0 0.0
        %6241 = vmatprep.subr.mxu0 0.0
        %6242 = vmatpush1.msra.mxu0 0.0
        %6243 = vmatprep.subr.mxu0 0.0
        %6244 = vmatpush1.msra.mxu0 0.0
        %6245 = vmatprep.subr.mxu0 0.0
        %6246 = vmatpush1.msra.mxu0 0.0
        %6247 = vmatprep.subr.mxu0 0.0
        %6248 = vmatpush1.msra.mxu0 0.0
        %6249 = vmatprep.subr.mxu0 0.0
        %6250 = vmatpush1.msra.mxu0 0.0
        %6251 = vmatprep.subr.mxu0 0.0
        %6252 = vmatpush1.msra.mxu0 0.0
        %6253 = vmatprep.subr.mxu0 0.0
        %6254 = vmatpush1.msra.mxu0 0.0
        %6255 = vmatprep.subr.mxu0 0.0
        %6256 = vmatpush1.msra.mxu0 0.0
        %6257 = vmatprep.subr.mxu0 0.0
        %6258 = vmatpush1.msra.mxu0 0.0
        %6259 = vmatprep.subr.mxu0 0.0
        %6260 = vmatpush1.msra.mxu0 0.0
        %6261 = vmatprep.subr.mxu0 0.0
        %6262 = vmatpush1.msra.mxu0 0.0
        %6263 = vmatprep.subr.mxu0 0.0
        %6264 = vmatpush1.msra.mxu0 0.0
        %6265 = vmatprep.subr.mxu0 0.0
        %6266 = vmatpush1.msra.mxu0 0.0
        %6267 = vmatprep.subr.mxu0 0.0
        %6268 = vmatpush1.msra.mxu0 0.0
        %6269 = vmatprep.subr.mxu0 0.0
        %6270 = vmatpush1.msra.mxu0 0.0
        %6271 = vmatprep.subr.mxu0 0.0
        %6272 = vmatpush1.msra.mxu0 0.0
        %6273 = vmatprep.subr.mxu0 0.0
        %6274 = vmatpush1.msra.mxu0 0.0
        %6275 = vmatprep.subr.mxu0 0.0
        %6276 = vmatpush1.msra.mxu0 0.0
        %6277 = vmatprep.subr.mxu0 0.0
        %6278 = vmatpush1.msra.mxu0 0.0
        %6279 = vmatprep.subr.mxu0 0.0
        %6280 = vmatpush1.msra.mxu0 0.0
        %6281 = vmatprep.subr.mxu0 0.0
        %6282 = vmatpush1.msra.mxu0 0.0
        %6283 = vmatprep.subr.mxu0 0.0
        %6284 = vmatpush1.msra.mxu0 0.0
        %6285 = vmatprep.subr.mxu0 0.0
        %6286 = vmatpush1.msra.mxu0 0.0
        %6287 = vmatprep.subr.mxu0 0.0
        %6288 = vmatpush1.msra.mxu0 0.0
        %6289 = vmatprep.mubr.f32.mxu0 0.0
        %6290 = vmatmul.mubr.f32.gmra.mrb[0].mxu0 %v6199
        %v6291 = vpop.f32.mrb[0].mxu0
        %v6292 = vadd.f32 %v6175, %v6291
        %v6293 = vpop.f32.mrb[0].mxu0
        %6294 = vmatprep.mubr.f32.mxu0 0.0
        %6295 = vmatmul.mubr.f32.gmra.mrb[0].mxu0 %v6202
        %v6296 = vpop.f32.mrb[0].mxu0
        %v6297 = vadd.f32 %v6177, %v6296
        %v6298 = vpop.f32.mrb[0].mxu0
        %6299 = vmatprep.mubr.f32.mxu0 0.0
        %6300 = vmatmul.mubr.f32.gmra.mrb[0].mxu0 %v6205
        %v6301 = vpop.f32.mrb[0].mxu0
        %v6302 = vadd.f32 %v6179, %v6301
        %v6303 = vpop.f32.mrb[0].mxu0
        %6304 = vmatprep.mubr.f32.mxu0 0.0
        %6305 = vmatmul.mubr.f32.gmra.mrb[0].mxu0 %v6208
        %v6306 = vpop.f32.mrb[0].mxu0
        %v6307 = vadd.f32 %v6181, %v6306
        %v6308 = vpop.f32.mrb[0].mxu0
        %6309 = vmatprep.mubr.f32.mxu0 0.0
        %6310 = vmatmul.mubr.f32.gmra.mrb[0].mxu0 %v6211
        %v6311 = vpop.f32.mrb[0].mxu0
        %v6312 = vadd.f32 %v6183, %v6311
        %v6313 = vpop.f32.mrb[0].mxu0
        %6314 = vmatprep.mubr.f32.mxu0 0.0
        %6315 = vmatmul.mubr.f32.gmra.mrb[0].mxu0 %v6214
        %v6316 = vpop.f32.mrb[0].mxu0
        %v6317 = vadd.f32 %v6185, %v6316
        %v6318 = vpop.f32.mrb[0].mxu0
        %6319 = vmatprep.mubr.f32.mxu0 0.0
        %6320 = vmatmul.mubr.f32.gmra.mrb[0].mxu0 %v6217
        %v6321 = vpop.f32.mrb[0].mxu0
        %v6322 = vadd.f32 %v6187, %v6321
        %v6323 = vpop.f32.mrb[0].mxu0
        %6324 = vmatprep.mubr.f32.mxu0 0.0
        %6325 = vmatmul.mubr.f32.gmra.mrb[0].mxu0 %v6220
        %v6326 = vpop.f32.mrb[0].mxu0
        %v6327 = vadd.f32 %v6189, %v6326
        %v6328 = vpop.f32.mrb[0].mxu0
        %6329 = vdwg.mxu0
        %6330 = vst.msk [vmem:[%s384] sm:$0xff] %vm1931, %v6292
        %6331 = vst.msk [vmem:[%s384 + $0x8] sm:$0xff] %vm1931, %v6297
        %6332 = vst.msk [vmem:[%s384 + $0x10] sm:$0xff] %vm1931, %v6302
        %6333 = vst.msk [vmem:[%s384 + $0x18] sm:$0xff] %vm1931, %v6307
        %6334 = vst.msk [vmem:[%s384 + $0x20] sm:$0xff] %vm1931, %v6312
        %6335 = vst.msk [vmem:[%s384 + $0x28] sm:$0xff] %vm1931, %v6317
        %6336 = vst.msk [vmem:[%s384 + $0x30] sm:$0xff] %vm1931, %v6322
        %6337 = vst.msk [vmem:[%s384 + $0x38] sm:$0xff] %vm1931, %v6327
        %s6338 = sand.u32 %s187, 1
        %s6339 = scalar_lea.sflag [#allocation5], %s6338
        %s6340 = sand.u32 %s187, 1
        %s6341 = smul.addr %s6340, 64
        %s6342 = scalar_lea.vmem [#allocation15], %s6341
        // Predicated region
        $region77: #{composite_feature_extractor.1} parent=47 // pred_check
          %p6343 = pneg %p197
        $region78: #{composite_feature_extractor.1} parent=47 // pred_check_branch
          %6345 = sbr.rel (%p6343) target = $region80
        $region79: #{composite_feature_extractor.1} parent=47 // pred_region
          %s6346 = smul.u32 4, %s27
          %s6348 = ssub.s32 1024, 1024
          %6349 = vsyncadd %s6339, %s6348
          %s6350 = smul.addr %s6346, 2
          %s6351 = smul.addr %s6350, 128
          %s6352 = scalar_lea.hbm %s7, %s6351
          %s6353 = sshll.u32 %s6342, 4
          %s6354 = int_to_ptr.vmem [resolvable:$true] %s6353
          %6359 = dma.vmem_to_hbm [thread:$0]  %s6354, 1024, %s6352, %s6339, 128, 128, 8
        $region80: #{composite_feature_extractor.1} parent=47 // pred_fallthru
          _
      $region48: #{composite_feature_extractor.1} parent=5 // pred_fallthru
        _
      %p6360 = scmp.le.s32.totalorder 2, %s22
      // Predicated region
      $region81: #{composite_feature_extractor.1} parent=5 // pred_check
        %p6361 = pneg %p6360
      $region82: #{composite_feature_extractor.1} parent=5 // pred_check_branch
        %6363 = sbr.rel (%p6361) target = $region84
      $region83: #{composite_feature_extractor.1} parent=5 // pred_region
        %s6364 = ssub.s32 %s22, 2
        // Predicated region
        $region85: #{composite_feature_extractor.1} parent=83 // pred_check
          %p6365 = pneg %p203
        $region86: #{composite_feature_extractor.1} parent=83 // pred_check_branch
          %6367 = sbr.rel (%p6365) target = $region88
        $region87: #{composite_feature_extractor.1} parent=83 // pred_region
          %s6368 = sand.u32 %s188, 1
          %s6369 = scalar_lea.sflag [#allocation5], %s6368
          %s6370 = sand.u32 %s188, 1
          %s6371 = smul.addr %s6370, 64
          %s6372 = scalar_lea.vmem [#allocation15], %s6371
          %6373 = dma.done %s6369, 1024
        $region88: #{composite_feature_extractor.1} parent=83 // pred_fallthru
          _
      $region84: #{composite_feature_extractor.1} parent=5 // pred_fallthru
        _
    $region6: #{composite_feature_extractor.1} parent=1 // loop_footer
      %s26 = sadd.s32 1, %s22
    $region7: #{composite_feature_extractor.1} parent=1 // loop_footer_branch
      %21 = sbr.rel target = $region3
    $region8: #{composite_feature_extractor.1} parent=1 // loop_exit
      _
    %6374 = vsyncpa [#allocation4], 1
    %s6375 = scalar_lea.sflag [#allocation4], 1
    %6376 = vsyncpa %s6375, 1
    %6377 = vsyncpa [#allocation7], 1
    %6378 = vsyncpa [#allocation10], 1
    %6379 = vsyncpa [#allocation13], 1
    %6380 = vsyncpa [#allocation5], 1
    %s6381 = scalar_lea.sflag [#allocation5], 1
    %6382 = vsyncpa %s6381, 1

</llo_original>
